<compile_context>
chip_gen: v7x
topology: tpu7x:2x2x1
jax: 0.10.0
libtpu: 0.0.40
codegen_flags: <defaults>
</compile_context>

<pallas_src>
import functools

import jax
import jax.numpy as jnp
from jax.experimental import pallas as pl
from jax.experimental.pallas import tpu as pltpu


def _stgcn_kernel(x_ref, w1_ref, b1_ref, ag_ref, bg_ref, w2_ref, b2_ref,
                  wdec_ref, bd_ref, o_ref, *, lanes, nodes, group):
    f32 = jnp.float32

    # Per-sample V-boundary masks built in-kernel (hoisted out of the G loop).
    lane = jax.lax.broadcasted_iota(jnp.int32, (1, lanes), 1)
    v_of_lane = lane % nodes
    mask_l = (v_of_lane != 0).astype(x_ref.dtype)          # kill wrap into prev sample
    mask_r = (v_of_lane != nodes - 1).astype(x_ref.dtype)  # kill wrap into next sample

    def one_block(g):
        x = x_ref[g]                                       # (Cin*T, L)

        # ---- temporal1: Conv2d(Cin, Co, (1,3), pad (0,1)) along V.
        # 3 taps stacked along K into a single dot (K = 3*Cin*T is tiny; the
        # 3-vreg concat is cheaper than 2 extra (Co*T, L) VPU adds).
        xl = pltpu.roll(x, 1, axis=1) * mask_l             # x[:, v-1] per sample
        xr = pltpu.roll(x, lanes - 1, axis=1) * mask_r     # x[:, v+1] per sample
        taps1 = jnp.concatenate([xl, x, xr], axis=0)       # (3*Cin*T, L)
        w1 = w1_ref[...]
        y1 = jnp.dot(w1, taps1.astype(w1.dtype),
                     preferred_element_type=f32) + b1_ref[...]

        # ---- einsum('nctv,vw->nctw', ., A_hat) fused with graph Linear(V, V):
        # one right-multiply by kron(I_B, A_hat @ Wg^T).
        ag = ag_ref[...]
        z = jnp.dot(y1.astype(ag.dtype), ag,
                    preferred_element_type=f32) + bg_ref[...]

        # ---- temporal2: Conv2d(Co, Co, (1,3), pad (0,1)) + ReLU.
        # Three accumulated dots (each K = Co*T, a good MXU shape) instead of
        # a (3*Co*T, L) concatenate: removes the copy through the store slot.
        zl = pltpu.roll(z, 1, axis=1) * mask_l
        zr = pltpu.roll(z, lanes - 1, axis=1) * mask_r
        wdt = w2_ref.dtype
        y3 = (jnp.dot(w2_ref[0], zl.astype(wdt), preferred_element_type=f32)
              + jnp.dot(w2_ref[1], z.astype(wdt), preferred_element_type=f32)
              + jnp.dot(w2_ref[2], zr.astype(wdt), preferred_element_type=f32)
              + b2_ref[...])
        y3 = jnp.maximum(y3, 0.0)                          # (Co*T, L)

        # ---- T-mean folded into the decoder weight; logits kept transposed
        # (num_nodes, L): softmax reduces over sublanes, store is lane-dense.
        # (M = num_nodes is small for the MXU, but this layer is far from the
        #  bottleneck at these sizes.)
        wdec = wdec_ref[...]
        logits = jnp.dot(wdec, y3.astype(wdec.dtype),
                         preferred_element_type=f32) + bd_ref[...]

        mx = jnp.max(logits, axis=0, keepdims=True)
        e = jnp.exp(logits - mx)
        # exact reciprocal so each output row sums to 1 (review concern)
        inv = pl.reciprocal(jnp.sum(e, axis=0, keepdims=True), approx=False)
        o_ref[g] = (e * inv).astype(o_ref.dtype)

    if group == 1:
        one_block(0)
    else:
        pl.loop(0, group)(one_block)


def stgcn_route_forward(x, a_hat, params, *, lane_target=128, block_batch=None,
                        group=None, mxu_dtype=None):
    """STGCNRoute forward.  x: (N, Cin, T, V) -> (N, V, num_nodes)."""
    w1, b1 = params["w1"], params["b1"]
    wg, bg = params["wg"], params["bg"]
    w2, b2 = params["w2"], params["b2"]
    wd, bd = params["wd"], params["bd"]

    N, Cin, T, V = x.shape
    Co = w1.shape[0]
    K = wd.shape[0]                       # num_nodes (decoder output)
    dt = x.dtype
    mxu = jnp.dtype(mxu_dtype) if mxu_dtype is not None else jnp.dtype(dt)
    itemsize = jnp.dtype(dt).itemsize

    # ---- B: samples packed per block.  L = B*V targets one lane tile
    # (128 fills a v5e MXU; pass lane_target=256 on v6e/v7x when N*V allows).
    # Smallest B past the target: the fused graph matrix kron(I_B, A_hat@Wg^T)
    # grows O(L^2) while useful work grows O(L*V).
    if block_batch is None:
        B = N
        for cand in range(1, N + 1):
            if N % cand == 0 and cand * V >= lane_target:
                B = cand
                break
    else:
        B = block_batch
    assert N % B == 0
    blocks_total = N // B
    L = B * V

    # ---- G: sample-blocks per grid step (looped in-kernel).  Largest G that
    # still leaves >= 2 grid steps (v7x has 2 TensorCores) with a modest
    # double-buffered I/O tile; amortizes the ~0.35 us/step pipeline overhead.
    if group is None:
        G = 1
        min_steps = 2 if blocks_total >= 2 else 1
        for cand in range(blocks_total, 0, -1):
            if blocks_total % cand:
                continue
            io_tile = 2 * cand * L * (Cin * T + K) * itemsize
            if blocks_total // cand >= min_steps and io_tile <= (8 << 20):
                G = cand
                break
    else:
        G = group
    assert blocks_total % G == 0
    num_steps = blocks_total // G

    eyeT = jnp.eye(T, dtype=dt)
    eyeB = jnp.eye(B, dtype=dt)

    # ---- layout / parameter glue (plain JAX, runs once) ----
    # x: (N, Cin, T, V) -> (blocks_total, Cin*T, B*V); lanes = (sample, node)
    x2d = (x.reshape(blocks_total, B, Cin, T, V)
            .transpose(0, 2, 3, 1, 4)
            .reshape(blocks_total, Cin * T, L))

    # conv weights on the (c, t) row layout
    w1cat = jnp.concatenate([jnp.kron(w1[:, :, k], eyeT) for k in range(3)],
                            axis=1).astype(mxu)            # (Co*T, 3*Cin*T)
    w2stk = jnp.stack([jnp.kron(w2[:, :, k], eyeT) for k in range(3)],
                      axis=0).astype(mxu)                  # (3, Co*T, Co*T)
    b1col = jnp.repeat(b1, T)[:, None].astype(dt)          # (Co*T, 1)
    b2col = jnp.repeat(b2, T)[:, None].astype(dt)          # (Co*T, 1)

    # graph einsum + graph Linear fused: y @ kron(I_B, A_hat @ Wg^T) + bg
    ag = jnp.kron(eyeB, a_hat @ wg.T).astype(mxu)          # (L, L)
    bg_row = jnp.tile(bg, B)[None, :].astype(dt)           # (1, L)

    # T-mean folded into decoder weight
    mavg = jnp.kron(jnp.eye(Co, dtype=dt), jnp.full((1, T), 1.0 / T, dt))
    wdec = (wd @ mavg).astype(mxu)                         # (K, Co*T)
    bd_col = bd[:, None].astype(dt)                        # (K, 1)

    consts = (w1cat, b1col, ag, bg_row, w2stk, b2col, wdec, bd_col)

    # ---- explicit VMEM budget: constants (2x to also cover the non-single-
    # buffered fallback) + double-buffered x/out tiles + headroom.
    const_bytes = sum(int(c.size) * c.dtype.itemsize for c in consts)
    io_bytes = 2 * G * L * (Cin * T + K) * itemsize
    vmem_limit = int(min(max(2 * const_bytes + io_bytes + (8 << 20), 32 << 20),
                         64 << 20))      # 64 MiB = v7x physical VMEM

    kernel = functools.partial(_stgcn_kernel, lanes=L, nodes=V, group=G)

    def _call(single_buffer_consts):
        def const_spec(arr):
            nd = arr.ndim
            idx = lambda n, _nd=nd: (0,) * _nd
            if single_buffer_consts:
                # grid-invariant operand: no need for double buffering
                return pl.BlockSpec(arr.shape, idx, pipeline_mode=pl.Buffered(1))
            return pl.BlockSpec(arr.shape, idx)

        return pl.pallas_call(
            kernel,
            out_shape=jax.ShapeDtypeStruct((blocks_total, K, L), dt),
            grid=(num_steps,),
            in_specs=[pl.BlockSpec((G, Cin * T, L), lambda n: (n, 0, 0))]
                     + [const_spec(c) for c in consts],
            out_specs=pl.BlockSpec((G, K, L), lambda n: (n, 0, 0)),
            compiler_params=pltpu.CompilerParams(
                dimension_semantics=("parallel",),
                vmem_limit_bytes=vmem_limit),
        )(x2d, *consts)

    try:
        out_t = jax.block_until_ready(_call(True))
    except Exception:
        # Fallback for jax versions where BlockSpec(pipeline_mode=Buffered(1))
        # is not supported by the TPU pipeline: default double buffering.
        out_t = _call(False)

    # (blocks_total, K, B, V) -> (N, V, K): lane-dense store in-kernel,
    # cheap XLA permute out here.
    out = (out_t.reshape(blocks_total, K, B, V)
                .transpose(0, 2, 3, 1)
                .reshape(N, V, K))
    return out


def reference_forward(x, a_hat, params):
    """Pure-JAX reference with the exact PyTorch semantics (full f32 matmuls)."""
    w1, b1 = params["w1"], params["b1"]
    wg, bg = params["wg"], params["bg"]
    w2, b2 = params["w2"], params["b2"]
    wd, bd = params["wd"], params["bd"]
    N, Cin, T, V = x.shape

    with jax.default_matmul_precision("highest"):
        def conv_v(inp, w, b):  # Conv2d kernel (1,3), pad (0,1), cross-correlation
            xp = jnp.pad(inp, ((0, 0), (0, 0), (0, 0), (1, 1)))
            out = sum(jnp.einsum('oc,nctv->notv', w[:, :, k], xp[..., k:k + V])
                      for k in range(3))
            return out + b[None, :, None, None]

        y1 = conv_v(x, w1, b1)
        y2 = jnp.einsum('nctv,vw->nctw', y1, a_hat)
        z = jnp.einsum('nctv,wv->nctw', y2, wg) + bg        # Linear(V, V)
        y3 = jax.nn.relu(conv_v(z, w2, b2))
        m = y3.mean(axis=2)                                 # (N, Co, V)
        h = m.transpose(0, 2, 1)                            # (N, V, Co)
        logits = jnp.einsum('nvc,kc->nvk', h, wd) + bd      # decoder Linear
        return jax.nn.softmax(logits, axis=-1)


if __name__ == "__main__":
    # N = 16 so that 8 samples are packed per grid step (8 * 16 = 128 lanes)
    # and the grid has 2 steps (one per v7x TensorCore).
    N, Cin, T = 16, 1, 8
    num_nodes = 16     # V
    hidden = 16        # Co

    key = jax.random.PRNGKey(0)
    ks = jax.random.split(key, 12)
    f32 = jnp.float32

    x = jax.random.normal(ks[0], (N, Cin, T, num_nodes), dtype=f32)
    a_hat = jax.random.normal(ks[1], (num_nodes, num_nodes), dtype=f32) * 0.3 \
        + jnp.eye(num_nodes, dtype=f32)

    params = {
        "w1": jax.random.normal(ks[2], (hidden, Cin, 3), dtype=f32) * 0.2,
        "b1": jax.random.normal(ks[3], (hidden,), dtype=f32) * 0.1,
        "wg": jax.random.normal(ks[4], (num_nodes, num_nodes), dtype=f32) * 0.2,
        "bg": jax.random.normal(ks[5], (num_nodes,), dtype=f32) * 0.1,
        "w2": jax.random.normal(ks[6], (hidden, hidden, 3), dtype=f32) * 0.2,
        "b2": jax.random.normal(ks[7], (hidden,), dtype=f32) * 0.1,
        "wd": jax.random.normal(ks[8], (num_nodes, hidden), dtype=f32) * 0.2,
        "bd": jax.random.normal(ks[9], (num_nodes,), dtype=f32) * 0.1,
    }

    out = stgcn_route_forward(x, a_hat, params)
    out = jax.block_until_ready(out)

    ref = reference_forward(x, a_hat, params)
    assert out.shape == (N, num_nodes, num_nodes), out.shape
    if not jnp.allclose(out, ref, atol=5e-3, rtol=5e-3):
        raise AssertionError(
            f"mismatch vs reference, max abs diff = {jnp.abs(out - ref).max()}")
    print("KERNEL_OK")
</pallas_src>

<mosaic_0001>
module attributes {stable_mosaic.version = 11 : i64} {
  func.func @_stgcn_kernel(%arg0: i32, %arg1: memref<1x8x128xf32, #tpu.memory_space<vmem>>, %arg2: memref<128x24xf32, #tpu.memory_space<vmem>>, %arg3: memref<128x1xf32, #tpu.memory_space<vmem>>, %arg4: memref<128x128xf32, #tpu.memory_space<vmem>>, %arg5: memref<1x128xf32, #tpu.memory_space<vmem>>, %arg6: memref<3x128x128xf32, #tpu.memory_space<vmem>>, %arg7: memref<128x1xf32, #tpu.memory_space<vmem>>, %arg8: memref<16x128xf32, #tpu.memory_space<vmem>>, %arg9: memref<16x1xf32, #tpu.memory_space<vmem>>, %arg10: memref<1x16x128xf32, #tpu.memory_space<vmem>>) attributes {dimension_semantics = [#tpu.dimension_semantics<parallel>], iteration_bounds = array<i64: 2>, scalar_prefetch = 0 : i64, scratch_operands = 0 : i64, tpu.core_type = #tpu.core_type<tc>, window_params = [{transform_indices = @transform_0, window_bounds = array<i64: 1, 8, 128>}, {pipeline_mode = #tpu.pipeline_mode<synchronous>, transform_indices = @transform_1, window_bounds = array<i64: 128, 24>}, {pipeline_mode = #tpu.pipeline_mode<synchronous>, transform_indices = @transform_2, window_bounds = array<i64: 128, 1>}, {pipeline_mode = #tpu.pipeline_mode<synchronous>, transform_indices = @transform_3, window_bounds = array<i64: 128, 128>}, {pipeline_mode = #tpu.pipeline_mode<synchronous>, transform_indices = @transform_4, window_bounds = array<i64: 1, 128>}, {pipeline_mode = #tpu.pipeline_mode<synchronous>, transform_indices = @transform_5, window_bounds = array<i64: 3, 128, 128>}, {pipeline_mode = #tpu.pipeline_mode<synchronous>, transform_indices = @transform_6, window_bounds = array<i64: 128, 1>}, {pipeline_mode = #tpu.pipeline_mode<synchronous>, transform_indices = @transform_7, window_bounds = array<i64: 16, 128>}, {pipeline_mode = #tpu.pipeline_mode<synchronous>, transform_indices = @transform_8, window_bounds = array<i64: 16, 1>}, {transform_indices = @transform_9, window_bounds = array<i64: 1, 16, 128>}]} {
    %0 = tpu.iota {dimensions = array<i32: 1>} : vector<1x128xi32>
    %c16_i32 = arith.constant 16 : i32
    %c0_i32 = arith.constant 0 : i32
    %1 = arith.cmpi eq, %c16_i32, %c0_i32 : i32
    %c1_i32 = arith.constant 1 : i32
    %2 = arith.select %1, %c1_i32, %c16_i32 : i32
    %3 = vector.broadcast %2 : i32 to vector<1x128xi32>
    %4 = arith.remsi %0, %3 : vector<1x128xi32>
    %c0_i32_0 = arith.constant 0 : i32
    %5 = vector.broadcast %c0_i32_0 : i32 to vector<1x128xi32>
    %6 = arith.cmpi ne, %4, %5 : vector<1x128xi32>
    %c0_i32_1 = arith.constant 0 : i32
    %7 = vector.broadcast %c0_i32_1 : i32 to vector<1x128xi32>
    %8 = arith.cmpi slt, %4, %7 : vector<1x128xi32>
    %c0_i32_2 = arith.constant 0 : i32
    %9 = arith.cmpi slt, %2, %c0_i32_2 : i32
    %10 = vector.broadcast %9 : i1 to vector<1x128xi1>
    %11 = vector.broadcast %10 : vector<1x128xi1> to vector<1x128xi1>
    %12 = arith.xori %8, %11 : vector<1x128xi1>
    %13 = arith.andi %12, %6 : vector<1x128xi1>
    %14 = vector.broadcast %2 : i32 to vector<1x128xi32>
    %15 = arith.addi %4, %14 : vector<1x128xi32>
    %16 = arith.select %13, %15, %4 : vector<1x128xi1>, vector<1x128xi32>
    %c0_i32_3 = arith.constant 0 : i32
    %17 = vector.broadcast %c0_i32_3 : i32 to vector<1x128xi32>
    %18 = arith.cmpi ne, %16, %17 : vector<1x128xi32>
    %19 = arith.extui %18 : vector<1x128xi1> to vector<1x128xi32>
    %20 = arith.sitofp %19 : vector<1x128xi32> to vector<1x128xf32>
    %c15_i32 = arith.constant 15 : i32
    %21 = vector.broadcast %c15_i32 : i32 to vector<1x128xi32>
    %22 = arith.cmpi ne, %16, %21 : vector<1x128xi32>
    %23 = arith.extui %22 : vector<1x128xi1> to vector<1x128xi32>
    %24 = arith.sitofp %23 : vector<1x128xi32> to vector<1x128xf32>
    %c0 = arith.constant 0 : index
    %c0_4 = arith.constant 0 : index
    %c0_5 = arith.constant 0 : index
    %25 = vector.load %arg1[%c0, %c0_4, %c0_5] : memref<1x8x128xf32, #tpu.memory_space<vmem>>, vector<1x8x128xf32>
    %26 = vector.shape_cast %25 : vector<1x8x128xf32> to vector<8x128xf32>
    %c1_i32_6 = arith.constant 1 : i32
    %27 = tpu.dynamic_rotate %26 by %c1_i32_6 dim 1 : vector<8x128xf32>, i32 -> vector<8x128xf32>
    %28 = vector.broadcast %20 : vector<1x128xf32> to vector<8x128xf32>
    %29 = arith.mulf %27, %28 : vector<8x128xf32>
    %c127_i32 = arith.constant 127 : i32
    %30 = tpu.dynamic_rotate %26 by %c127_i32 dim 1 : vector<8x128xf32>, i32 -> vector<8x128xf32>
    %31 = vector.broadcast %24 : vector<1x128xf32> to vector<8x128xf32>
    %32 = arith.mulf %30, %31 : vector<8x128xf32>
    %33 = tpu.concatenate %29, %26, %32 in 0 : vector<8x128xf32>, vector<8x128xf32>, vector<8x128xf32> -> vector<24x128xf32>
    %c0_7 = arith.constant 0 : index
    %c0_8 = arith.constant 0 : index
    %34 = vector.load %arg2[%c0_7, %c0_8] : memref<128x24xf32, #tpu.memory_space<vmem>>, vector<128x24xf32>
    %cst = arith.constant dense<0.000000e+00> : vector<128x128xf32>
    %35 = tpu.matmul %34, %33, %cst {dimension_numbers = #tpu.dot_dimension_numbers<[1], [0], [0], [1], [0, 0, 1, 1], [], []>} : vector<128x24xf32>, vector<24x128xf32>, vector<128x128xf32> -> vector<128x128xf32>
    %c0_9 = arith.constant 0 : index
    %c0_10 = arith.constant 0 : index
    %36 = vector.load %arg3[%c0_9, %c0_10] : memref<128x1xf32, #tpu.memory_space<vmem>>, vector<128x1xf32>
    %37 = vector.broadcast %36 : vector<128x1xf32> to vector<128x128xf32>
    %38 = arith.addf %35, %37 : vector<128x128xf32>
    %c0_11 = arith.constant 0 : index
    %c0_12 = arith.constant 0 : index
    %39 = vector.load %arg4[%c0_11, %c0_12] : memref<128x128xf32, #tpu.memory_space<vmem>>, vector<128x128xf32>
    %cst_13 = arith.constant dense<0.000000e+00> : vector<128x128xf32>
    %40 = tpu.matmul %38, %39, %cst_13 {dimension_numbers = #tpu.dot_dimension_numbers<[1], [0], [0], [1], [0, 0, 1, 1], [], []>} : vector<128x128xf32>, vector<128x128xf32>, vector<128x128xf32> -> vector<128x128xf32>
    %c0_14 = arith.constant 0 : index
    %c0_15 = arith.constant 0 : index
    %41 = vector.load %arg5[%c0_14, %c0_15] : memref<1x128xf32, #tpu.memory_space<vmem>>, vector<1x128xf32>
    %42 = vector.broadcast %41 : vector<1x128xf32> to vector<128x128xf32>
    %43 = arith.addf %40, %42 : vector<128x128xf32>
    %c1_i32_16 = arith.constant 1 : i32
    %44 = tpu.dynamic_rotate %43 by %c1_i32_16 dim 1 : vector<128x128xf32>, i32 -> vector<128x128xf32>
    %45 = vector.broadcast %20 : vector<1x128xf32> to vector<128x128xf32>
    %46 = arith.mulf %44, %45 : vector<128x128xf32>
    %c127_i32_17 = arith.constant 127 : i32
    %47 = tpu.dynamic_rotate %43 by %c127_i32_17 dim 1 : vector<128x128xf32>, i32 -> vector<128x128xf32>
    %48 = vector.broadcast %24 : vector<1x128xf32> to vector<128x128xf32>
    %49 = arith.mulf %47, %48 : vector<128x128xf32>
    %c0_18 = arith.constant 0 : index
    %c0_19 = arith.constant 0 : index
    %c0_20 = arith.constant 0 : index
    %50 = vector.load %arg6[%c0_18, %c0_19, %c0_20] : memref<3x128x128xf32, #tpu.memory_space<vmem>>, vector<1x128x128xf32>
    %51 = vector.shape_cast %50 : vector<1x128x128xf32> to vector<128x128xf32>
    %cst_21 = arith.constant dense<0.000000e+00> : vector<128x128xf32>
    %52 = tpu.matmul %51, %46, %cst_21 {dimension_numbers = #tpu.dot_dimension_numbers<[1], [0], [0], [1], [0, 0, 1, 1], [], []>} : vector<128x128xf32>, vector<128x128xf32>, vector<128x128xf32> -> vector<128x128xf32>
    %c1 = arith.constant 1 : index
    %c0_22 = arith.constant 0 : index
    %c0_23 = arith.constant 0 : index
    %53 = vector.load %arg6[%c1, %c0_22, %c0_23] : memref<3x128x128xf32, #tpu.memory_space<vmem>>, vector<1x128x128xf32>
    %54 = vector.shape_cast %53 : vector<1x128x128xf32> to vector<128x128xf32>
    %cst_24 = arith.constant dense<0.000000e+00> : vector<128x128xf32>
    %55 = tpu.matmul %54, %43, %cst_24 {dimension_numbers = #tpu.dot_dimension_numbers<[1], [0], [0], [1], [0, 0, 1, 1], [], []>} : vector<128x128xf32>, vector<128x128xf32>, vector<128x128xf32> -> vector<128x128xf32>
    %56 = arith.addf %52, %55 : vector<128x128xf32>
    %c2 = arith.constant 2 : index
    %c0_25 = arith.constant 0 : index
    %c0_26 = arith.constant 0 : index
    %57 = vector.load %arg6[%c2, %c0_25, %c0_26] : memref<3x128x128xf32, #tpu.memory_space<vmem>>, vector<1x128x128xf32>
    %58 = vector.shape_cast %57 : vector<1x128x128xf32> to vector<128x128xf32>
    %cst_27 = arith.constant dense<0.000000e+00> : vector<128x128xf32>
    %59 = tpu.matmul %58, %49, %cst_27 {dimension_numbers = #tpu.dot_dimension_numbers<[1], [0], [0], [1], [0, 0, 1, 1], [], []>} : vector<128x128xf32>, vector<128x128xf32>, vector<128x128xf32> -> vector<128x128xf32>
    %60 = arith.addf %56, %59 : vector<128x128xf32>
    %c0_28 = arith.constant 0 : index
    %c0_29 = arith.constant 0 : index
    %61 = vector.load %arg7[%c0_28, %c0_29] : memref<128x1xf32, #tpu.memory_space<vmem>>, vector<128x1xf32>
    %62 = vector.broadcast %61 : vector<128x1xf32> to vector<128x128xf32>
    %63 = arith.addf %60, %62 : vector<128x128xf32>
    %cst_30 = arith.constant 0.000000e+00 : f32
    %64 = vector.broadcast %cst_30 : f32 to vector<128x128xf32>
    %65 = arith.maximumf %63, %64 : vector<128x128xf32>
    %c0_31 = arith.constant 0 : index
    %c0_32 = arith.constant 0 : index
    %66 = vector.load %arg8[%c0_31, %c0_32] : memref<16x128xf32, #tpu.memory_space<vmem>>, vector<16x128xf32>
    %cst_33 = arith.constant dense<0.000000e+00> : vector<16x128xf32>
    %67 = tpu.matmul %66, %65, %cst_33 {dimension_numbers = #tpu.dot_dimension_numbers<[1], [0], [0], [1], [0, 0, 1, 1], [], []>} : vector<16x128xf32>, vector<128x128xf32>, vector<16x128xf32> -> vector<16x128xf32>
    %c0_34 = arith.constant 0 : index
    %c0_35 = arith.constant 0 : index
    %68 = vector.load %arg9[%c0_34, %c0_35] : memref<16x1xf32, #tpu.memory_space<vmem>>, vector<16x1xf32>
    %69 = vector.broadcast %68 : vector<16x1xf32> to vector<16x128xf32>
    %70 = arith.addf %67, %69 : vector<16x128xf32>
    %cst_36 = arith.constant dense<0xFF800000> : vector<128xf32>
    %71 = vector.multi_reduction <maximumf>, %70, %cst_36 [0] : vector<16x128xf32> to vector<128xf32>
    %72 = vector.shape_cast %71 : vector<128xf32> to vector<1x128xf32>
    %73 = vector.broadcast %72 : vector<1x128xf32> to vector<16x128xf32>
    %74 = arith.subf %70, %73 : vector<16x128xf32>
    %75 = math.exp %74 : vector<16x128xf32>
    %cst_37 = arith.constant dense<0.000000e+00> : vector<128xf32>
    %76 = vector.multi_reduction <add>, %75, %cst_37 [0] : vector<16x128xf32> to vector<128xf32>
    %77 = vector.shape_cast %76 : vector<128xf32> to vector<1x128xf32>
    %78 = tpu.reciprocal %77 : vector<1x128xf32> -> vector<1x128xf32>
    %79 = vector.broadcast %78 : vector<1x128xf32> to vector<16x128xf32>
    %80 = arith.mulf %75, %79 : vector<16x128xf32>
    %c0_38 = arith.constant 0 : index
    %c0_39 = arith.constant 0 : index
    %c0_40 = arith.constant 0 : index
    %81 = vector.load %arg10[%c0_38, %c0_39, %c0_40] : memref<1x16x128xf32, #tpu.memory_space<vmem>>, vector<1x16x128xf32>
    %82 = vector.shape_cast %81 : vector<1x16x128xf32> to vector<16x128xf32>
    %83 = vector.shape_cast %80 : vector<16x128xf32> to vector<1x16x128xf32>
    tpu.vector_store %arg10[%c0_38, %c0_39, %c0_40], %83 {strides = array<i32>} : memref<1x16x128xf32, #tpu.memory_space<vmem>>, vector<1x16x128xf32>,
    return
  }
  func.func @transform_0(%arg0: i32) -> (i32, i32, i32) {
    %c0_i32 = arith.constant 0 : i32
    %c0_i32_0 = arith.constant 0 : i32
    %c0_i32_1 = arith.constant 0 : i32
    return %arg0, %c0_i32, %c0_i32_0 : i32, i32, i32
  }
  func.func @transform_1(%arg0: i32) -> (i32, i32) {
    %c0_i32 = arith.constant 0 : i32
    %c0_i32_0 = arith.constant 0 : i32
    %c0_i32_1 = arith.constant 0 : i32
    return %c0_i32, %c0_i32_0 : i32, i32
  }
  func.func @transform_2(%arg0: i32) -> (i32, i32) {
    %c0_i32 = arith.constant 0 : i32
    %c0_i32_0 = arith.constant 0 : i32
    %c0_i32_1 = arith.constant 0 : i32
    return %c0_i32, %c0_i32_0 : i32, i32
  }
  func.func @transform_3(%arg0: i32) -> (i32, i32) {
    %c0_i32 = arith.constant 0 : i32
    %c0_i32_0 = arith.constant 0 : i32
    %c0_i32_1 = arith.constant 0 : i32
    return %c0_i32, %c0_i32_0 : i32, i32
  }
  func.func @transform_4(%arg0: i32) -> (i32, i32) {
    %c0_i32 = arith.constant 0 : i32
    %c0_i32_0 = arith.constant 0 : i32
    %c0_i32_1 = arith.constant 0 : i32
    return %c0_i32, %c0_i32_0 : i32, i32
  }
  func.func @transform_5(%arg0: i32) -> (i32, i32, i32) {
    %c0_i32 = arith.constant 0 : i32
    %c0_i32_0 = arith.constant 0 : i32
    %c0_i32_1 = arith.constant 0 : i32
    %c0_i32_2 = arith.constant 0 : i32
    return %c0_i32, %c0_i32_0, %c0_i32_1 : i32, i32, i32
  }
  func.func @transform_6(%arg0: i32) -> (i32, i32) {
    %c0_i32 = arith.constant 0 : i32
    %c0_i32_0 = arith.constant 0 : i32
    %c0_i32_1 = arith.constant 0 : i32
    return %c0_i32, %c0_i32_0 : i32, i32
  }
  func.func @transform_7(%arg0: i32) -> (i32, i32) {
    %c0_i32 = arith.constant 0 : i32
    %c0_i32_0 = arith.constant 0 : i32
    %c0_i32_1 = arith.constant 0 : i32
    return %c0_i32, %c0_i32_0 : i32, i32
  }
  func.func @transform_8(%arg0: i32) -> (i32, i32) {
    %c0_i32 = arith.constant 0 : i32
    %c0_i32_0 = arith.constant 0 : i32
    %c0_i32_1 = arith.constant 0 : i32
    return %c0_i32, %c0_i32_0 : i32, i32
  }
  func.func @transform_9(%arg0: i32) -> (i32, i32, i32) {
    %c0_i32 = arith.constant 0 : i32
    %c0_i32_0 = arith.constant 0 : i32
    %c0_i32_1 = arith.constant 0 : i32
    return %arg0, %c0_i32, %c0_i32_0 : i32, i32, i32
  }
}

module attributes {stable_mosaic.version = 11 : i64} {
  func.func @_stgcn_kernel(%arg0: i32, %arg1: memref<1x8x128xf32, #tpu.memory_space<vmem>>, %arg2: memref<128x24xf32, #tpu.memory_space<vmem>>, %arg3: memref<128x1xf32, #tpu.memory_space<vmem>>, %arg4: memref<128x128xf32, #tpu.memory_space<vmem>>, %arg5: memref<1x128xf32, #tpu.memory_space<vmem>>, %arg6: memref<3x128x128xf32, #tpu.memory_space<vmem>>, %arg7: memref<128x1xf32, #tpu.memory_space<vmem>>, %arg8: memref<16x128xf32, #tpu.memory_space<vmem>>, %arg9: memref<16x1xf32, #tpu.memory_space<vmem>>, %arg10: memref<1x16x128xf32, #tpu.memory_space<vmem>>) attributes {dimension_semantics = [#tpu.dimension_semantics<parallel>], iteration_bounds = array<i64: 2>, scalar_prefetch = 0 : i64, scratch_operands = 0 : i64, tpu.core_type = #tpu.core_type<tc>, window_params = [{transform_indices = @transform_0, window_bounds = array<i64: 1, 8, 128>}, {pipeline_mode = #tpu.pipeline_mode<synchronous>, transform_indices = @transform_1, window_bounds = array<i64: 128, 24>}, {pipeline_mode = #tpu.pipeline_mode<synchronous>, transform_indices = @transform_2, window_bounds = array<i64: 128, 1>}, {pipeline_mode = #tpu.pipeline_mode<synchronous>, transform_indices = @transform_3, window_bounds = array<i64: 128, 128>}, {pipeline_mode = #tpu.pipeline_mode<synchronous>, transform_indices = @transform_4, window_bounds = array<i64: 1, 128>}, {pipeline_mode = #tpu.pipeline_mode<synchronous>, transform_indices = @transform_5, window_bounds = array<i64: 3, 128, 128>}, {pipeline_mode = #tpu.pipeline_mode<synchronous>, transform_indices = @transform_6, window_bounds = array<i64: 128, 1>}, {pipeline_mode = #tpu.pipeline_mode<synchronous>, transform_indices = @transform_7, window_bounds = array<i64: 16, 128>}, {pipeline_mode = #tpu.pipeline_mode<synchronous>, transform_indices = @transform_8, window_bounds = array<i64: 16, 1>}, {transform_indices = @transform_9, window_bounds = array<i64: 1, 16, 128>}]} {
    %0 = tpu.iota {dimensions = array<i32: 1>} : vector<1x128xi32>
    %c16_i32 = arith.constant 16 : i32
    %c0_i32 = arith.constant 0 : i32
    %1 = arith.cmpi eq, %c16_i32, %c0_i32 : i32
    %c1_i32 = arith.constant 1 : i32
    %2 = arith.select %1, %c1_i32, %c16_i32 : i32
    %3 = vector.broadcast %2 : i32 to vector<1x128xi32>
    %4 = arith.remsi %0, %3 : vector<1x128xi32>
    %c0_i32_0 = arith.constant 0 : i32
    %5 = vector.broadcast %c0_i32_0 : i32 to vector<1x128xi32>
    %6 = arith.cmpi ne, %4, %5 : vector<1x128xi32>
    %c0_i32_1 = arith.constant 0 : i32
    %7 = vector.broadcast %c0_i32_1 : i32 to vector<1x128xi32>
    %8 = arith.cmpi slt, %4, %7 : vector<1x128xi32>
    %c0_i32_2 = arith.constant 0 : i32
    %9 = arith.cmpi slt, %2, %c0_i32_2 : i32
    %10 = vector.broadcast %9 : i1 to vector<1x128xi1>
    %11 = vector.broadcast %10 : vector<1x128xi1> to vector<1x128xi1>
    %12 = arith.xori %8, %11 : vector<1x128xi1>
    %13 = arith.andi %12, %6 : vector<1x128xi1>
    %14 = vector.broadcast %2 : i32 to vector<1x128xi32>
    %15 = arith.addi %4, %14 : vector<1x128xi32>
    %16 = arith.select %13, %15, %4 : vector<1x128xi1>, vector<1x128xi32>
    %c0_i32_3 = arith.constant 0 : i32
    %17 = vector.broadcast %c0_i32_3 : i32 to vector<1x128xi32>
    %18 = arith.cmpi ne, %16, %17 : vector<1x128xi32>
    %19 = arith.extui %18 : vector<1x128xi1> to vector<1x128xi32>
    %20 = arith.sitofp %19 : vector<1x128xi32> to vector<1x128xf32>
    %c15_i32 = arith.constant 15 : i32
    %21 = vector.broadcast %c15_i32 : i32 to vector<1x128xi32>
    %22 = arith.cmpi ne, %16, %21 : vector<1x128xi32>
    %23 = arith.extui %22 : vector<1x128xi1> to vector<1x128xi32>
    %24 = arith.sitofp %23 : vector<1x128xi32> to vector<1x128xf32>
    %c0 = arith.constant 0 : index
    %c0_4 = arith.constant 0 : index
    %c0_5 = arith.constant 0 : index
    %25 = vector.load %arg1[%c0, %c0_4, %c0_5] : memref<1x8x128xf32, #tpu.memory_space<vmem>>, vector<1x8x128xf32>
    %26 = vector.shape_cast %25 : vector<1x8x128xf32> to vector<8x128xf32>
    %c1_i32_6 = arith.constant 1 : i32
    %27 = tpu.dynamic_rotate %26 by %c1_i32_6 dim 1 : vector<8x128xf32>, i32 -> vector<8x128xf32>
    %28 = vector.broadcast %20 : vector<1x128xf32> to vector<8x128xf32>
    %29 = arith.mulf %27, %28 : vector<8x128xf32>
    %c127_i32 = arith.constant 127 : i32
    %30 = tpu.dynamic_rotate %26 by %c127_i32 dim 1 : vector<8x128xf32>, i32 -> vector<8x128xf32>
    %31 = vector.broadcast %24 : vector<1x128xf32> to vector<8x128xf32>
    %32 = arith.mulf %30, %31 : vector<8x128xf32>
    %33 = tpu.concatenate %29, %26, %32 in 0 : vector<8x128xf32>, vector<8x128xf32>, vector<8x128xf32> -> vector<24x128xf32>
    %c0_7 = arith.constant 0 : index
    %c0_8 = arith.constant 0 : index
    %34 = vector.load %arg2[%c0_7, %c0_8] : memref<128x24xf32, #tpu.memory_space<vmem>>, vector<128x24xf32>
    %cst = arith.constant dense<0.000000e+00> : vector<128x128xf32>
    %35 = tpu.matmul %34, %33, %cst {dimension_numbers = #tpu.dot_dimension_numbers<[1], [0], [0], [1], [0, 0, 1, 1], [], []>} : vector<128x24xf32>, vector<24x128xf32>, vector<128x128xf32> -> vector<128x128xf32>
    %c0_9 = arith.constant 0 : index
    %c0_10 = arith.constant 0 : index
    %36 = vector.load %arg3[%c0_9, %c0_10] : memref<128x1xf32, #tpu.memory_space<vmem>>, vector<128x1xf32>
    %37 = vector.broadcast %36 : vector<128x1xf32> to vector<128x128xf32>
    %38 = arith.addf %35, %37 : vector<128x128xf32>
    %c0_11 = arith.constant 0 : index
    %c0_12 = arith.constant 0 : index
    %39 = vector.load %arg4[%c0_11, %c0_12] : memref<128x128xf32, #tpu.memory_space<vmem>>, vector<128x128xf32>
    %cst_13 = arith.constant dense<0.000000e+00> : vector<128x128xf32>
    %40 = tpu.matmul %38, %39, %cst_13 {dimension_numbers = #tpu.dot_dimension_numbers<[1], [0], [0], [1], [0, 0, 1, 1], [], []>} : vector<128x128xf32>, vector<128x128xf32>, vector<128x128xf32> -> vector<128x128xf32>
    %c0_14 = arith.constant 0 : index
    %c0_15 = arith.constant 0 : index
    %41 = vector.load %arg5[%c0_14, %c0_15] : memref<1x128xf32, #tpu.memory_space<vmem>>, vector<1x128xf32>
    %42 = vector.broadcast %41 : vector<1x128xf32> to vector<128x128xf32>
    %43 = arith.addf %40, %42 : vector<128x128xf32>
    %c1_i32_16 = arith.constant 1 : i32
    %44 = tpu.dynamic_rotate %43 by %c1_i32_16 dim 1 : vector<128x128xf32>, i32 -> vector<128x128xf32>
    %45 = vector.broadcast %20 : vector<1x128xf32> to vector<128x128xf32>
    %46 = arith.mulf %44, %45 : vector<128x128xf32>
    %c127_i32_17 = arith.constant 127 : i32
    %47 = tpu.dynamic_rotate %43 by %c127_i32_17 dim 1 : vector<128x128xf32>, i32 -> vector<128x128xf32>
    %48 = vector.broadcast %24 : vector<1x128xf32> to vector<128x128xf32>
    %49 = arith.mulf %47, %48 : vector<128x128xf32>
    %c0_18 = arith.constant 0 : index
    %c0_19 = arith.constant 0 : index
    %c0_20 = arith.constant 0 : index
    %50 = vector.load %arg6[%c0_18, %c0_19, %c0_20] : memref<3x128x128xf32, #tpu.memory_space<vmem>>, vector<1x128x128xf32>
    %51 = vector.shape_cast %50 : vector<1x128x128xf32> to vector<128x128xf32>
    %cst_21 = arith.constant dense<0.000000e+00> : vector<128x128xf32>
    %52 = tpu.matmul %51, %46, %cst_21 {dimension_numbers = #tpu.dot_dimension_numbers<[1], [0], [0], [1], [0, 0, 1, 1], [], []>} : vector<128x128xf32>, vector<128x128xf32>, vector<128x128xf32> -> vector<128x128xf32>
    %c1 = arith.constant 1 : index
    %c0_22 = arith.constant 0 : index
    %c0_23 = arith.constant 0 : index
    %53 = vector.load %arg6[%c1, %c0_22, %c0_23] : memref<3x128x128xf32, #tpu.memory_space<vmem>>, vector<1x128x128xf32>
    %54 = vector.shape_cast %53 : vector<1x128x128xf32> to vector<128x128xf32>
    %cst_24 = arith.constant dense<0.000000e+00> : vector<128x128xf32>
    %55 = tpu.matmul %54, %43, %cst_24 {dimension_numbers = #tpu.dot_dimension_numbers<[1], [0], [0], [1], [0, 0, 1, 1], [], []>} : vector<128x128xf32>, vector<128x128xf32>, vector<128x128xf32> -> vector<128x128xf32>
    %56 = arith.addf %52, %55 : vector<128x128xf32>
    %c2 = arith.constant 2 : index
    %c0_25 = arith.constant 0 : index
    %c0_26 = arith.constant 0 : index
    %57 = vector.load %arg6[%c2, %c0_25, %c0_26] : memref<3x128x128xf32, #tpu.memory_space<vmem>>, vector<1x128x128xf32>
    %58 = vector.shape_cast %57 : vector<1x128x128xf32> to vector<128x128xf32>
    %cst_27 = arith.constant dense<0.000000e+00> : vector<128x128xf32>
    %59 = tpu.matmul %58, %49, %cst_27 {dimension_numbers = #tpu.dot_dimension_numbers<[1], [0], [0], [1], [0, 0, 1, 1], [], []>} : vector<128x128xf32>, vector<128x128xf32>, vector<128x128xf32> -> vector<128x128xf32>
    %60 = arith.addf %56, %59 : vector<128x128xf32>
    %c0_28 = arith.constant 0 : index
    %c0_29 = arith.constant 0 : index
    %61 = vector.load %arg7[%c0_28, %c0_29] : memref<128x1xf32, #tpu.memory_space<vmem>>, vector<128x1xf32>
    %62 = vector.broadcast %61 : vector<128x1xf32> to vector<128x128xf32>
    %63 = arith.addf %60, %62 : vector<128x128xf32>
    %cst_30 = arith.constant 0.000000e+00 : f32
    %64 = vector.broadcast %cst_30 : f32 to vector<128x128xf32>
    %65 = arith.maximumf %63, %64 : vector<128x128xf32>
    %c0_31 = arith.constant 0 : index
    %c0_32 = arith.constant 0 : index
    %66 = vector.load %arg8[%c0_31, %c0_32] : memref<16x128xf32, #tpu.memory_space<vmem>>, vector<16x128xf32>
    %cst_33 = arith.constant dense<0.000000e+00> : vector<16x128xf32>
    %67 = tpu.matmul %66, %65, %cst_33 {dimension_numbers = #tpu.dot_dimension_numbers<[1], [0], [0], [1], [0, 0, 1, 1], [], []>} : vector<16x128xf32>, vector<128x128xf32>, vector<16x128xf32> -> vector<16x128xf32>
    %c0_34 = arith.constant 0 : index
    %c0_35 = arith.constant 0 : index
    %68 = vector.load %arg9[%c0_34, %c0_35] : memref<16x1xf32, #tpu.memory_space<vmem>>, vector<16x1xf32>
    %69 = vector.broadcast %68 : vector<16x1xf32> to vector<16x128xf32>
    %70 = arith.addf %67, %69 : vector<16x128xf32>
    %cst_36 = arith.constant dense<0xFF800000> : vector<128xf32>
    %71 = vector.multi_reduction <maximumf>, %70, %cst_36 [0] : vector<16x128xf32> to vector<128xf32>
    %72 = vector.shape_cast %71 : vector<128xf32> to vector<1x128xf32>
    %73 = vector.broadcast %72 : vector<1x128xf32> to vector<16x128xf32>
    %74 = arith.subf %70, %73 : vector<16x128xf32>
    %75 = math.exp %74 : vector<16x128xf32>
    %cst_37 = arith.constant dense<0.000000e+00> : vector<128xf32>
    %76 = vector.multi_reduction <add>, %75, %cst_37 [0] : vector<16x128xf32> to vector<128xf32>
    %77 = vector.shape_cast %76 : vector<128xf32> to vector<1x128xf32>
    %78 = tpu.reciprocal %77 : vector<1x128xf32> -> vector<1x128xf32>
    %79 = vector.broadcast %78 : vector<1x128xf32> to vector<16x128xf32>
    %80 = arith.mulf %75, %79 : vector<16x128xf32>
    %c0_38 = arith.constant 0 : index
    %c0_39 = arith.constant 0 : index
    %c0_40 = arith.constant 0 : index
    %81 = vector.load %arg10[%c0_38, %c0_39, %c0_40] : memref<1x16x128xf32, #tpu.memory_space<vmem>>, vector<1x16x128xf32>
    %82 = vector.shape_cast %81 : vector<1x16x128xf32> to vector<16x128xf32>
    %83 = vector.shape_cast %80 : vector<16x128xf32> to vector<1x16x128xf32>
    tpu.vector_store %arg10[%c0_38, %c0_39, %c0_40], %83 {strides = array<i32>} : memref<1x16x128xf32, #tpu.memory_space<vmem>>, vector<1x16x128xf32>,
    return
  }
  func.func @transform_0(%arg0: i32) -> (i32, i32, i32) {
    %c0_i32 = arith.constant 0 : i32
    %c0_i32_0 = arith.constant 0 : i32
    %c0_i32_1 = arith.constant 0 : i32
    return %arg0, %c0_i32, %c0_i32_0 : i32, i32, i32
  }
  func.func @transform_1(%arg0: i32) -> (i32, i32) {
    %c0_i32 = arith.constant 0 : i32
    %c0_i32_0 = arith.constant 0 : i32
    %c0_i32_1 = arith.constant 0 : i32
    return %c0_i32, %c0_i32_0 : i32, i32
  }
  func.func @transform_2(%arg0: i32) -> (i32, i32) {
    %c0_i32 = arith.constant 0 : i32
    %c0_i32_0 = arith.constant 0 : i32
    %c0_i32_1 = arith.constant 0 : i32
    return %c0_i32, %c0_i32_0 : i32, i32
  }
  func.func @transform_3(%arg0: i32) -> (i32, i32) {
    %c0_i32 = arith.constant 0 : i32
    %c0_i32_0 = arith.constant 0 : i32
    %c0_i32_1 = arith.constant 0 : i32
    return %c0_i32, %c0_i32_0 : i32, i32
  }
  func.func @transform_4(%arg0: i32) -> (i32, i32) {
    %c0_i32 = arith.constant 0 : i32
    %c0_i32_0 = arith.constant 0 : i32
    %c0_i32_1 = arith.constant 0 : i32
    return %c0_i32, %c0_i32_0 : i32, i32
  }
  func.func @transform_5(%arg0: i32) -> (i32, i32, i32) {
    %c0_i32 = arith.constant 0 : i32
    %c0_i32_0 = arith.constant 0 : i32
    %c0_i32_1 = arith.constant 0 : i32
    %c0_i32_2 = arith.constant 0 : i32
    return %c0_i32, %c0_i32_0, %c0_i32_1 : i32, i32, i32
  }
  func.func @transform_6(%arg0: i32) -> (i32, i32) {
    %c0_i32 = arith.constant 0 : i32
    %c0_i32_0 = arith.constant 0 : i32
    %c0_i32_1 = arith.constant 0 : i32
    return %c0_i32, %c0_i32_0 : i32, i32
  }
  func.func @transform_7(%arg0: i32) -> (i32, i32) {
    %c0_i32 = arith.constant 0 : i32
    %c0_i32_0 = arith.constant 0 : i32
    %c0_i32_1 = arith.constant 0 : i32
    return %c0_i32, %c0_i32_0 : i32, i32
  }
  func.func @transform_8(%arg0: i32) -> (i32, i32) {
    %c0_i32 = arith.constant 0 : i32
    %c0_i32_0 = arith.constant 0 : i32
    %c0_i32_1 = arith.constant 0 : i32
    return %c0_i32, %c0_i32_0 : i32, i32
  }
  func.func @transform_9(%arg0: i32) -> (i32, i32, i32) {
    %c0_i32 = arith.constant 0 : i32
    %c0_i32_0 = arith.constant 0 : i32
    %c0_i32_1 = arith.constant 0 : i32
    return %arg0, %c0_i32, %c0_i32_0 : i32, i32, i32
  }
}

</mosaic_0001>

<llo_original>
// kernel: tpu_custom_call.1
$region0: #{tpu_custom_call.1}
  #allocation0 [shape = 'u32[]', space=smem, size = 0x4, offset = 0x4, fixed_abs, tag = 'smem constant byte address 0x4 - core index']
  #allocation1 [shape = 'u32[144,128]{1,0:T(1,128)}', space=vmem, size = 0x12000, scoped, tag = 'internal scratch']
  %s0 = inlined_call_operand.vmem [shape: f32[2,8,128], index: 0, kind: input, shape index: {}]
  %s1 = inlined_call_operand.vmem [shape: f32[128,24], index: 1, kind: input, shape index: {}]
  %s2 = inlined_call_operand.vmem [shape: f32[128,1], index: 2, kind: input, shape index: {}]
  %s3 = inlined_call_operand.hbm [shape: f32[128,128], index: 3, kind: input, shape index: {}]
  %s4 = inlined_call_operand.vmem [shape: f32[1,128], index: 4, kind: input, shape index: {}]
  %s5 = inlined_call_operand.vmem [shape: f32[3,128,128], index: 5, kind: input, shape index: {}]
  %s6 = inlined_call_operand.vmem [shape: f32[128,1], index: 6, kind: input, shape index: {}]
  %s7 = inlined_call_operand.vmem [shape: f32[16,128], index: 7, kind: input, shape index: {}]
  %s8 = inlined_call_operand.vmem [shape: f32[16,1], index: 8, kind: input, shape index: {}]
  %s9 = inlined_call_operand.hbm [shape: f32[2,16,128], index: 9, kind: output, shape index: {}]
  %s10 = sld [smem:[#allocation0]]
  $region73: #{tpu_custom_call.1} parent=0
    _
  %s12 = ssub.s32 1, %s10
  %s13 = scalar_select 0, %s12, %s10
  $region1: #{tpu_custom_call.1} parent=0
    #allocation2 [shape = 'u8[65536]{0}', space=vmem, size = 0x10000, scoped, tag = 'input window, operand 3, single buffered']
    #allocation3 [shape = 's32[2]{0}', space=sflag, size = 0x8, scoped, tag = 'scoped memory for tpu_custom_call.1']
    #allocation4 [shape = 's32[2]{0}', space=sflag, size = 0x8, scoped, tag = 'scoped memory for tpu_custom_call.1']
    #allocation5 [shape = 'u8[16384]{0}', space=vmem, size = 0x4000, scoped, tag = 'output window, operand 0']
    %14 = vsyncpa [#allocation3], 0
    %15 = vsyncpa [#allocation4], 0
    %s16 = scalar_lea.sflag [#allocation4], 1
    %17 = vsyncpa %s16, 0
    loop: start=0, step=1, limit=4
    $region2: #{tpu_custom_call.1} parent=1 // loop_pre_header
      _
    $region3: #{tpu_custom_call.1} parent=1 // loop_header
      %s19 = sphi 0, %s23
      %p20 = scmp.ge.s32.totalorder %s19, 4
      %s29 = sphi 0, %s31
      %s32 = sphi 0, %s29
      %s33 = sphi 0, %s32
      %s49 = sphi 0, %s33
      %s53 = sphi 0, %s53
      %s55 = sphi 0, %s53
      %s56 = sphi 0, %s55
      %s70 = sphi 0, %s56
      %s74 = sphi 0, %s74
      %s76 = sphi 0, %s74
      %s77 = sphi 0, %s76
      %s91 = sphi 0, %s77
      %s95 = sphi 0, %s95
      %s97 = sphi 0, %s95
      %s98 = sphi 0, %s97
      %s112 = sphi 0, %s98
      %s116 = sphi 0, %s116
      %s118 = sphi 0, %s116
      %s119 = sphi 0, %s118
      %s133 = sphi 0, %s119
      %s137 = sphi 0, %s137
      %s139 = sphi 0, %s137
      %s140 = sphi 0, %s139
      %s154 = sphi 0, %s140
      %s158 = sphi 0, %s158
      %s160 = sphi 0, %s158
      %s161 = sphi 0, %s160
      %s175 = sphi 0, %s161
      %s179 = sphi 0, %s179
      %s181 = sphi 0, %s179
      %s182 = sphi 0, %s181
      %s196 = sphi 0, %s182
      %s200 = sphi 0, %s200
      %s202 = sphi 0, %s200
      %s203 = sphi 0, %s202
      %s217 = sphi 0, %s203
      %s223 = sphi 0, %s225
      %s226 = sphi 0, %s223
      %s227 = sphi 0, %s226
      %s243 = sphi 0, %s227
    $region4: #{tpu_custom_call.1} parent=1 // loop_header_branch
      %22 = sbr.rel (%p20) target = $region8
    $region5: #{tpu_custom_call.1} parent=1 // loop_body
      %s24 = ssub.s32 %s19, 1
      %s25 = ssub.s32 %s19, 2
      %s26 = sadd.s32 %s19, 1
      %s27 = ssub.s32 %s19, %s26
      %p28 = scmp.eq.s32.totalorder %s27, 0
      %s30 = sadd.s32 %s29, 1
      %s31 = scalar_select %p28, %s29, %s30
      %p34 = pneg %p28
      %p35 = scmp.eq.s32.totalorder %s19, 1
      %p36 = por %p34, %p35
      %p37 = scmp.ne.s32.totalorder %s29, %s32
      %p38 = scmp.eq.s32.totalorder %s19, 0
      %p39 = por %p37, %p38
      %p40 = scmp.ne.s32.totalorder %s29, %s32
      %p41 = scmp.eq.s32.totalorder %s24, 1
      %p42 = por %p40, %p41
      %p43 = scmp.ne.s32.totalorder %s32, %s33
      %p44 = scmp.eq.s32.totalorder %s24, 0
      %p45 = por %p43, %p44
      %p46 = scmp.ne.s32.totalorder %s32, %s33
      %p47 = scmp.eq.s32.totalorder %s25, 1
      %p48 = por %p46, %p47
      %p50 = scmp.ne.s32.totalorder %s33, %s49
      %p51 = scmp.eq.s32.totalorder %s25, 0
      %p52 = por %p50, %p51
      %s54 = sadd.s32 %s53, 1
      %p57 = scmp.eq.s32.totalorder %s19, 1
      %p58 = scmp.ne.s32.totalorder %s53, %s55
      %p59 = scmp.eq.s32.totalorder %s19, 0
      %p60 = por %p58, %p59
      %p61 = scmp.ne.s32.totalorder %s53, %s55
      %p62 = scmp.eq.s32.totalorder %s24, 1
      %p63 = por %p61, %p62
      %p64 = scmp.ne.s32.totalorder %s55, %s56
      %p65 = scmp.eq.s32.totalorder %s24, 0
      %p66 = por %p64, %p65
      %p67 = scmp.ne.s32.totalorder %s55, %s56
      %p68 = scmp.eq.s32.totalorder %s25, 1
      %p69 = por %p67, %p68
      %p71 = scmp.ne.s32.totalorder %s56, %s70
      %p72 = scmp.eq.s32.totalorder %s25, 0
      %p73 = por %p71, %p72
      %s75 = sadd.s32 %s74, 1
      %p78 = scmp.eq.s32.totalorder %s19, 1
      %p79 = scmp.ne.s32.totalorder %s74, %s76
      %p80 = scmp.eq.s32.totalorder %s19, 0
      %p81 = por %p79, %p80
      %p82 = scmp.ne.s32.totalorder %s74, %s76
      %p83 = scmp.eq.s32.totalorder %s24, 1
      %p84 = por %p82, %p83
      %p85 = scmp.ne.s32.totalorder %s76, %s77
      %p86 = scmp.eq.s32.totalorder %s24, 0
      %p87 = por %p85, %p86
      %p88 = scmp.ne.s32.totalorder %s76, %s77
      %p89 = scmp.eq.s32.totalorder %s25, 1
      %p90 = por %p88, %p89
      %p92 = scmp.ne.s32.totalorder %s77, %s91
      %p93 = scmp.eq.s32.totalorder %s25, 0
      %p94 = por %p92, %p93
      %s96 = sadd.s32 %s95, 1
      %p99 = scmp.eq.s32.totalorder %s19, 1
      %p100 = scmp.ne.s32.totalorder %s95, %s97
      %p101 = scmp.eq.s32.totalorder %s19, 0
      %p102 = por %p100, %p101
      %p103 = scmp.ne.s32.totalorder %s95, %s97
      %p104 = scmp.eq.s32.totalorder %s24, 1
      %p105 = por %p103, %p104
      %p106 = scmp.ne.s32.totalorder %s97, %s98
      %p107 = scmp.eq.s32.totalorder %s24, 0
      %p108 = por %p106, %p107
      %p109 = scmp.ne.s32.totalorder %s97, %s98
      %p110 = scmp.eq.s32.totalorder %s25, 1
      %p111 = por %p109, %p110
      %p113 = scmp.ne.s32.totalorder %s98, %s112
      %p114 = scmp.eq.s32.totalorder %s25, 0
      %p115 = por %p113, %p114
      %s117 = sadd.s32 %s116, 1
      %p120 = scmp.eq.s32.totalorder %s19, 1
      %p121 = scmp.ne.s32.totalorder %s116, %s118
      %p122 = scmp.eq.s32.totalorder %s19, 0
      %p123 = por %p121, %p122
      %p124 = scmp.ne.s32.totalorder %s116, %s118
      %p125 = scmp.eq.s32.totalorder %s24, 1
      %p126 = por %p124, %p125
      %p127 = scmp.ne.s32.totalorder %s118, %s119
      %p128 = scmp.eq.s32.totalorder %s24, 0
      %p129 = por %p127, %p128
      %p130 = scmp.ne.s32.totalorder %s118, %s119
      %p131 = scmp.eq.s32.totalorder %s25, 1
      %p132 = por %p130, %p131
      %p134 = scmp.ne.s32.totalorder %s119, %s133
      %p135 = scmp.eq.s32.totalorder %s25, 0
      %p136 = por %p134, %p135
      %s138 = sadd.s32 %s137, 1
      %p141 = scmp.eq.s32.totalorder %s19, 1
      %p142 = scmp.ne.s32.totalorder %s137, %s139
      %p143 = scmp.eq.s32.totalorder %s19, 0
      %p144 = por %p142, %p143
      %p145 = scmp.ne.s32.totalorder %s137, %s139
      %p146 = scmp.eq.s32.totalorder %s24, 1
      %p147 = por %p145, %p146
      %p148 = scmp.ne.s32.totalorder %s139, %s140
      %p149 = scmp.eq.s32.totalorder %s24, 0
      %p150 = por %p148, %p149
      %p151 = scmp.ne.s32.totalorder %s139, %s140
      %p152 = scmp.eq.s32.totalorder %s25, 1
      %p153 = por %p151, %p152
      %p155 = scmp.ne.s32.totalorder %s140, %s154
      %p156 = scmp.eq.s32.totalorder %s25, 0
      %p157 = por %p155, %p156
      %s159 = sadd.s32 %s158, 1
      %p162 = scmp.eq.s32.totalorder %s19, 1
      %p163 = scmp.ne.s32.totalorder %s158, %s160
      %p164 = scmp.eq.s32.totalorder %s19, 0
      %p165 = por %p163, %p164
      %p166 = scmp.ne.s32.totalorder %s158, %s160
      %p167 = scmp.eq.s32.totalorder %s24, 1
      %p168 = por %p166, %p167
      %p169 = scmp.ne.s32.totalorder %s160, %s161
      %p170 = scmp.eq.s32.totalorder %s24, 0
      %p171 = por %p169, %p170
      %p172 = scmp.ne.s32.totalorder %s160, %s161
      %p173 = scmp.eq.s32.totalorder %s25, 1
      %p174 = por %p172, %p173
      %p176 = scmp.ne.s32.totalorder %s161, %s175
      %p177 = scmp.eq.s32.totalorder %s25, 0
      %p178 = por %p176, %p177
      %s180 = sadd.s32 %s179, 1
      %p183 = scmp.eq.s32.totalorder %s19, 1
      %p184 = scmp.ne.s32.totalorder %s179, %s181
      %p185 = scmp.eq.s32.totalorder %s19, 0
      %p186 = por %p184, %p185
      %p187 = scmp.ne.s32.totalorder %s179, %s181
      %p188 = scmp.eq.s32.totalorder %s24, 1
      %p189 = por %p187, %p188
      %p190 = scmp.ne.s32.totalorder %s181, %s182
      %p191 = scmp.eq.s32.totalorder %s24, 0
      %p192 = por %p190, %p191
      %p193 = scmp.ne.s32.totalorder %s181, %s182
      %p194 = scmp.eq.s32.totalorder %s25, 1
      %p195 = por %p193, %p194
      %p197 = scmp.ne.s32.totalorder %s182, %s196
      %p198 = scmp.eq.s32.totalorder %s25, 0
      %p199 = por %p197, %p198
      %s201 = sadd.s32 %s200, 1
      %p204 = scmp.eq.s32.totalorder %s19, 1
      %p205 = scmp.ne.s32.totalorder %s200, %s202
      %p206 = scmp.eq.s32.totalorder %s19, 0
      %p207 = por %p205, %p206
      %p208 = scmp.ne.s32.totalorder %s200, %s202
      %p209 = scmp.eq.s32.totalorder %s24, 1
      %p210 = por %p208, %p209
      %p211 = scmp.ne.s32.totalorder %s202, %s203
      %p212 = scmp.eq.s32.totalorder %s24, 0
      %p213 = por %p211, %p212
      %p214 = scmp.ne.s32.totalorder %s202, %s203
      %p215 = scmp.eq.s32.totalorder %s25, 1
      %p216 = por %p214, %p215
      %p218 = scmp.ne.s32.totalorder %s203, %s217
      %p219 = scmp.eq.s32.totalorder %s25, 0
      %p220 = por %p218, %p219
      %s221 = ssub.s32 %s19, %s26
      %p222 = scmp.eq.s32.totalorder %s221, 0
      %s224 = sadd.s32 %s223, 1
      %s225 = scalar_select %p222, %s223, %s224
      %p228 = pneg %p222
      %p229 = scmp.eq.s32.totalorder %s19, 1
      %p230 = por %p228, %p229
      %p231 = scmp.ne.s32.totalorder %s223, %s226
      %p232 = scmp.eq.s32.totalorder %s19, 0
      %p233 = por %p231, %p232
      %p234 = scmp.ne.s32.totalorder %s223, %s226
      %p235 = scmp.eq.s32.totalorder %s24, 1
      %p236 = por %p234, %p235
      %p237 = scmp.ne.s32.totalorder %s226, %s227
      %p238 = scmp.eq.s32.totalorder %s24, 0
      %p239 = por %p237, %p238
      %p240 = scmp.ne.s32.totalorder %s226, %s227
      %p241 = scmp.eq.s32.totalorder %s25, 1
      %p242 = por %p240, %p241
      %p244 = scmp.ne.s32.totalorder %s227, %s243
      %p245 = scmp.eq.s32.totalorder %s25, 0
      %p246 = por %p244, %p245
      %p247 = scmp.le.s32.totalorder 1, %s19
      %p248 = scmp.lt.s32.totalorder %s19, 3
      %p249 = pnand %p247, %p248
      %p250 = pneg %p249
      // Predicated region
      $region9: #{tpu_custom_call.1} parent=5 // pred_check
        _
      $region10: #{tpu_custom_call.1} parent=5 // pred_check_branch
        %252 = sbr.rel (%p249) target = $region12
      $region11: #{tpu_custom_call.1} parent=5 // pred_region
        %s253 = ssub.s32 %s19, 1
        // Predicated region
        $region13: #{tpu_custom_call.1} parent=11 // pred_check
          %p254 = pneg %p66
        $region14: #{tpu_custom_call.1} parent=11 // pred_check_branch
          %256 = sbr.rel (%p254) target = $region16
        $region15: #{tpu_custom_call.1} parent=11 // pred_region
          _
        $region16: #{tpu_custom_call.1} parent=11 // pred_fallthru
          _
        // Predicated region
        $region17: #{tpu_custom_call.1} parent=11 // pred_check
          %p257 = pneg %p87
        $region18: #{tpu_custom_call.1} parent=11 // pred_check_branch
          %259 = sbr.rel (%p257) target = $region20
        $region19: #{tpu_custom_call.1} parent=11 // pred_region
          _
        $region20: #{tpu_custom_call.1} parent=11 // pred_fallthru
          _
        // Predicated region
        $region21: #{tpu_custom_call.1} parent=11 // pred_check
          %p260 = pneg %p108
        $region22: #{tpu_custom_call.1} parent=11 // pred_check_branch
          %262 = sbr.rel (%p260) target = $region24
        $region23: #{tpu_custom_call.1} parent=11 // pred_region
          %s264 = ssub.s32 2048, 2048
          %265 = vsyncadd [#allocation3], %s264
          %s266 = sshll.u32 [#allocation2], 4
          %s267 = int_to_ptr.vmem [resolvable:$true] %s266
          %272 = dma.hbm_to_vmem [thread:$0]  %s3, 2048, %s267, [#allocation3], 128, 128, 8
        $region24: #{tpu_custom_call.1} parent=11 // pred_fallthru
          _
        // Predicated region
        $region25: #{tpu_custom_call.1} parent=11 // pred_check
          %p273 = pneg %p129
        $region26: #{tpu_custom_call.1} parent=11 // pred_check_branch
          %275 = sbr.rel (%p273) target = $region28
        $region27: #{tpu_custom_call.1} parent=11 // pred_region
          _
        $region28: #{tpu_custom_call.1} parent=11 // pred_fallthru
          _
        // Predicated region
        $region29: #{tpu_custom_call.1} parent=11 // pred_check
          %p276 = pneg %p150
        $region30: #{tpu_custom_call.1} parent=11 // pred_check_branch
          %278 = sbr.rel (%p276) target = $region32
        $region31: #{tpu_custom_call.1} parent=11 // pred_region
          _
        $region32: #{tpu_custom_call.1} parent=11 // pred_fallthru
          _
        // Predicated region
        $region33: #{tpu_custom_call.1} parent=11 // pred_check
          %p279 = pneg %p171
        $region34: #{tpu_custom_call.1} parent=11 // pred_check_branch
          %281 = sbr.rel (%p279) target = $region36
        $region35: #{tpu_custom_call.1} parent=11 // pred_region
          _
        $region36: #{tpu_custom_call.1} parent=11 // pred_fallthru
          _
        // Predicated region
        $region37: #{tpu_custom_call.1} parent=11 // pred_check
          %p282 = pneg %p192
        $region38: #{tpu_custom_call.1} parent=11 // pred_check_branch
          %284 = sbr.rel (%p282) target = $region40
        $region39: #{tpu_custom_call.1} parent=11 // pred_region
          _
        $region40: #{tpu_custom_call.1} parent=11 // pred_fallthru
          _
        // Predicated region
        $region41: #{tpu_custom_call.1} parent=11 // pred_check
          %p285 = pneg %p213
        $region42: #{tpu_custom_call.1} parent=11 // pred_check_branch
          %287 = sbr.rel (%p285) target = $region44
        $region43: #{tpu_custom_call.1} parent=11 // pred_region
          _
        $region44: #{tpu_custom_call.1} parent=11 // pred_fallthru
          _
      $region12: #{tpu_custom_call.1} parent=5 // pred_fallthru
        _
      %p288 = scmp.lt.s32.totalorder %s19, 2
      // Predicated region
      $region45: #{tpu_custom_call.1} parent=5 // pred_check
        %p289 = pneg %p288
      $region46: #{tpu_custom_call.1} parent=5 // pred_check_branch
        %291 = sbr.rel (%p289) target = $region48
      $region47: #{tpu_custom_call.1} parent=5 // pred_region
        // Predicated region
        $region49: #{tpu_custom_call.1} parent=47 // pred_check
          %p292 = pneg %p39
        $region50: #{tpu_custom_call.1} parent=47 // pred_check_branch
          %294 = sbr.rel (%p292) target = $region52
        $region51: #{tpu_custom_call.1} parent=47 // pred_region
          %p295 = scmp.lt.s32.totalorder %s19, 1
          %s296 = scalar_select %p295, %s19, 1
          %s297 = smul.addr %s296, 8
          %s298 = scalar_lea.vmem %s0, %s297
        $region52: #{tpu_custom_call.1} parent=47 // pred_fallthru
          _
      $region48: #{tpu_custom_call.1} parent=5 // pred_fallthru
        _
      %p299 = scmp.le.s32.totalorder 1, %s19
      %p300 = scmp.lt.s32.totalorder %s19, 3
      %p301 = pnand %p299, %p300
      %p302 = pneg %p301
      // Predicated region
      $region53: #{tpu_custom_call.1} parent=5 // pred_check
        _
      $region54: #{tpu_custom_call.1} parent=5 // pred_check_branch
        %304 = sbr.rel (%p301) target = $region56
      $region55: #{tpu_custom_call.1} parent=5 // pred_region
        %s305 = ssub.s32 %s19, 1
        // Predicated region
        $region57: #{tpu_custom_call.1} parent=55 // pred_check
          %p306 = pneg %p108
        $region58: #{tpu_custom_call.1} parent=55 // pred_check_branch
          %308 = sbr.rel (%p306) target = $region60
        $region59: #{tpu_custom_call.1} parent=55 // pred_region
          %309 = dma.done [#allocation3], 2048
        $region60: #{tpu_custom_call.1} parent=55 // pred_fallthru
          _
        %p310 = scmp.lt.s32.totalorder %s24, 1
        %s311 = scalar_select %p310, %s24, 1
        %s312 = smul.addr %s311, 8
        %s313 = scalar_lea.vmem %s0, %s312
        %p314 = pneg %p45
        %p315 = pneg %p42
        %p316 = pneg %p66
        %p317 = pneg %p63
        %p318 = pneg %p87
        %p319 = pneg %p84
        %p320 = pneg %p108
        %p321 = pneg %p105
        %p322 = pneg %p129
        %p323 = pneg %p126
        %p324 = pneg %p150
        %p325 = pneg %p147
        %p326 = pneg %p171
        %p327 = pneg %p168
        %p328 = pneg %p192
        %p329 = pneg %p189
        %p330 = pneg %p213
        %p331 = pneg %p210
        %p332 = pneg %p239
        %p333 = pneg %p236
        %s334 = sand.u32 %s226, 1
        %s335 = scalar_lea.sflag [#allocation4], %s334
        %s336 = sand.u32 %s226, 1
        %s337 = smul.addr %s336, 16
        %s338 = scalar_lea.vmem [#allocation5], %s337
        %p339 = scmp.lt.s32.totalorder %s24, 1
        %s340 = scalar_select %p339, %s24, 1
        %s341 = smul.addr %s340, 8
        %s342 = scalar_lea.vmem %s0, %s341
        %v343 = vlaneseq
        %v344 = vand.u32 %v343, 127
        %vm345 = vcmp.lt.s32.totalorder %v344, 0
        %v346 = vsub.s32 0, %v344
        %v347 = vsel %vm345, %v346, %v344
        %v348 = vshrl.u32 %v347, 4
        %v349 = vand.u32 %v347, 15
        %v350 = vsub.s32 0, %v349
        %v351 = vsel %vm345, %v350, %v349
        %vm352 = vcmp.ne.s32.totalorder %v351, 0
        %vm353 = vcmp.lt.s32.totalorder %v351, 0
        %vm354 = vmand %vm353, %vm352
        %v355 = vadd.s32 %v351, 16
        %v356 = vsel %vm354, %v355, %v351
        %vm357 = vcmp.ne.s32.totalorder %v356, 0
        %v358 = vsel %vm357, 1, 0
        %v359 = vcvt.s32.f32 %v358
        %vm360 = vcmp.ne.s32.totalorder %v356, 15
        %v361 = vsel %vm360, 1, 0
        %v362 = vcvt.s32.f32 %v361
        %v363 = vld [vmem:[%s342] sm:$0xff]
        %364 = vrot.lane.b32.xlu0 %v363, 1
        %v365 = vpop.permute.xlu0 %364
        %v366 = vmul.f32 %v365, %v359
        %367 = vrot.lane.b32.xlu0 %v363, 127
        %v368 = vpop.permute.xlu0 %367
        %v369 = vmul.f32 %v368, %v362
        %v370 = vld [vmem:[%s1] sm:$0xff]
        %v371 = vld [vmem:[%s1 + $0x8] sm:$0xff]
        %v372 = vld [vmem:[%s1 + $0x10] sm:$0xff]
        %v373 = vld [vmem:[%s1 + $0x18] sm:$0xff]
        %v374 = vld [vmem:[%s1 + $0x20] sm:$0xff]
        %v375 = vld [vmem:[%s1 + $0x28] sm:$0xff]
        %v376 = vld [vmem:[%s1 + $0x30] sm:$0xff]
        %v377 = vld [vmem:[%s1 + $0x38] sm:$0xff]
        %v378 = vld [vmem:[%s1 + $0x40] sm:$0xff]
        %v379 = vld [vmem:[%s1 + $0x48] sm:$0xff]
        %v380 = vld [vmem:[%s1 + $0x50] sm:$0xff]
        %v381 = vld [vmem:[%s1 + $0x58] sm:$0xff]
        %v382 = vld [vmem:[%s1 + $0x60] sm:$0xff]
        %v383 = vld [vmem:[%s1 + $0x68] sm:$0xff]
        %v384 = vld [vmem:[%s1 + $0x70] sm:$0xff]
        %v385 = vld [vmem:[%s1 + $0x78] sm:$0xff]
        %v386 = vld [vmem:[%s2] sm:$0xff]
        %v387 = vld [vmem:[%s2 + $0x8] sm:$0xff]
        %v388 = vld [vmem:[%s2 + $0x10] sm:$0xff]
        %v389 = vld [vmem:[%s2 + $0x18] sm:$0xff]
        %v390 = vld [vmem:[%s2 + $0x20] sm:$0xff]
        %v391 = vld [vmem:[%s2 + $0x28] sm:$0xff]
        %v392 = vld [vmem:[%s2 + $0x30] sm:$0xff]
        %v393 = vld [vmem:[%s2 + $0x38] sm:$0xff]
        %v394 = vld [vmem:[%s2 + $0x40] sm:$0xff]
        %v395 = vld [vmem:[%s2 + $0x48] sm:$0xff]
        %v396 = vld [vmem:[%s2 + $0x50] sm:$0xff]
        %v397 = vld [vmem:[%s2 + $0x58] sm:$0xff]
        %v398 = vld [vmem:[%s2 + $0x60] sm:$0xff]
        %v399 = vld [vmem:[%s2 + $0x68] sm:$0xff]
        %v400 = vld [vmem:[%s2 + $0x70] sm:$0xff]
        %v401 = vld [vmem:[%s2 + $0x78] sm:$0xff]
        %403 = vset.pattern.permute.xlu0 0
        %404 = vperm.xlu0 %403, %v386
        %v405 = vpop.permute.xlu0 %404
        %408 = vset.pattern.permute.xlu0 0
        %409 = vperm.xlu0 %408, %v387
        %v410 = vpop.permute.xlu0 %409
        %413 = vset.pattern.permute.xlu0 0
        %414 = vperm.xlu0 %413, %v388
        %v415 = vpop.permute.xlu0 %414
        %418 = vset.pattern.permute.xlu0 0
        %419 = vperm.xlu0 %418, %v389
        %v420 = vpop.permute.xlu0 %419
        %423 = vset.pattern.permute.xlu0 0
        %424 = vperm.xlu0 %423, %v390
        %v425 = vpop.permute.xlu0 %424
        %428 = vset.pattern.permute.xlu0 0
        %429 = vperm.xlu0 %428, %v391
        %v430 = vpop.permute.xlu0 %429
        %433 = vset.pattern.permute.xlu0 0
        %434 = vperm.xlu0 %433, %v392
        %v435 = vpop.permute.xlu0 %434
        %438 = vset.pattern.permute.xlu0 0
        %439 = vperm.xlu0 %438, %v393
        %v440 = vpop.permute.xlu0 %439
        %443 = vset.pattern.permute.xlu0 0
        %444 = vperm.xlu0 %443, %v394
        %v445 = vpop.permute.xlu0 %444
        %448 = vset.pattern.permute.xlu0 0
        %449 = vperm.xlu0 %448, %v395
        %v450 = vpop.permute.xlu0 %449
        %453 = vset.pattern.permute.xlu0 0
        %454 = vperm.xlu0 %453, %v396
        %v455 = vpop.permute.xlu0 %454
        %458 = vset.pattern.permute.xlu0 0
        %459 = vperm.xlu0 %458, %v397
        %v460 = vpop.permute.xlu0 %459
        %463 = vset.pattern.permute.xlu0 0
        %464 = vperm.xlu0 %463, %v398
        %v465 = vpop.permute.xlu0 %464
        %468 = vset.pattern.permute.xlu0 0
        %469 = vperm.xlu0 %468, %v399
        %v470 = vpop.permute.xlu0 %469
        %473 = vset.pattern.permute.xlu0 0
        %474 = vperm.xlu0 %473, %v400
        %v475 = vpop.permute.xlu0 %474
        %478 = vset.pattern.permute.xlu0 0
        %479 = vperm.xlu0 %478, %v401
        %v480 = vpop.permute.xlu0 %479
        %vm482 = vcmask 195584
        %v484 = vsel %vm482, %v370, 0
        %v487 = vsel %vm482, %v371, 0
        %v490 = vsel %vm482, %v372, 0
        %v493 = vsel %vm482, %v373, 0
        %v496 = vsel %vm482, %v374, 0
        %v499 = vsel %vm482, %v375, 0
        %v502 = vsel %vm482, %v376, 0
        %v505 = vsel %vm482, %v377, 0
        %v508 = vsel %vm482, %v378, 0
        %v511 = vsel %vm482, %v379, 0
        %v514 = vsel %vm482, %v380, 0
        %v517 = vsel %vm482, %v381, 0
        %v520 = vsel %vm482, %v382, 0
        %v523 = vsel %vm482, %v383, 0
        %v526 = vsel %vm482, %v384, 0
        %v529 = vsel %vm482, %v385, 0
        %531 = vmatprep.subr.mxu0 0.0
        %532 = vmatpush1.msra.mxu0 %v366
        %533 = vmatprep.subr.mxu0 0.0
        %534 = vmatpush1.msra.mxu0 %v363
        %535 = vmatprep.subr.mxu0 0.0
        %536 = vmatpush1.msra.mxu0 %v369
        %537 = vmatprep.subr.mxu0 0.0
        %538 = vmatpush1.msra.mxu0 0.0
        %539 = vmatprep.subr.mxu0 0.0
        %540 = vmatpush1.msra.mxu0 0.0
        %541 = vmatprep.subr.mxu0 0.0
        %542 = vmatpush1.msra.mxu0 0.0
        %543 = vmatprep.subr.mxu0 0.0
        %544 = vmatpush1.msra.mxu0 0.0
        %545 = vmatprep.subr.mxu0 0.0
        %546 = vmatpush1.msra.mxu0 0.0
        %547 = vmatprep.subr.mxu0 0.0
        %548 = vmatpush1.msra.mxu0 0.0
        %549 = vmatprep.subr.mxu0 0.0
        %550 = vmatpush1.msra.mxu0 0.0
        %551 = vmatprep.subr.mxu0 0.0
        %552 = vmatpush1.msra.mxu0 0.0
        %553 = vmatprep.subr.mxu0 0.0
        %554 = vmatpush1.msra.mxu0 0.0
        %555 = vmatprep.subr.mxu0 0.0
        %556 = vmatpush1.msra.mxu0 0.0
        %557 = vmatprep.subr.mxu0 0.0
        %558 = vmatpush1.msra.mxu0 0.0
        %559 = vmatprep.subr.mxu0 0.0
        %560 = vmatpush1.msra.mxu0 0.0
        %561 = vmatprep.subr.mxu0 0.0
        %562 = vmatpush1.msra.mxu0 0.0
        %563 = vmatprep.subr.mxu0 0.0
        %564 = vmatpush1.msra.mxu0 0.0
        %565 = vmatprep.subr.mxu0 0.0
        %566 = vmatpush1.msra.mxu0 0.0
        %567 = vmatprep.subr.mxu0 0.0
        %568 = vmatpush1.msra.mxu0 0.0
        %569 = vmatprep.subr.mxu0 0.0
        %570 = vmatpush1.msra.mxu0 0.0
        %571 = vmatprep.subr.mxu0 0.0
        %572 = vmatpush1.msra.mxu0 0.0
        %573 = vmatprep.subr.mxu0 0.0
        %574 = vmatpush1.msra.mxu0 0.0
        %575 = vmatprep.subr.mxu0 0.0
        %576 = vmatpush1.msra.mxu0 0.0
        %577 = vmatprep.subr.mxu0 0.0
        %578 = vmatpush1.msra.mxu0 0.0
        %579 = vmatprep.subr.mxu0 0.0
        %580 = vmatpush1.msra.mxu0 0.0
        %581 = vmatprep.subr.mxu0 0.0
        %582 = vmatpush1.msra.mxu0 0.0
        %583 = vmatprep.subr.mxu0 0.0
        %584 = vmatpush1.msra.mxu0 0.0
        %585 = vmatprep.subr.mxu0 0.0
        %586 = vmatpush1.msra.mxu0 0.0
        %587 = vmatprep.subr.mxu0 0.0
        %588 = vmatpush1.msra.mxu0 0.0
        %589 = vmatprep.subr.mxu0 0.0
        %590 = vmatpush1.msra.mxu0 0.0
        %591 = vmatprep.subr.mxu0 0.0
        %592 = vmatpush1.msra.mxu0 0.0
        %593 = vmatprep.subr.mxu0 0.0
        %594 = vmatpush1.msra.mxu0 0.0
        %595 = vmatprep.mubr.f32.mxu0 0.0
        %596 = vmatmul.mubr.f32.gmra.mrb[0].mxu0 %v484
        %v597 = vpop.f32.mrb[0].mxu0
        %v598 = vadd.f32 %v405, %v597
        %v599 = vpop.f32.mrb[0].mxu0
        %600 = vmatprep.mubr.f32.mxu0 0.0
        %601 = vmatmul.mubr.f32.gmra.mrb[0].mxu0 %v487
        %v602 = vpop.f32.mrb[0].mxu0
        %v603 = vadd.f32 %v410, %v602
        %v604 = vpop.f32.mrb[0].mxu0
        %605 = vmatprep.mubr.f32.mxu0 0.0
        %606 = vmatmul.mubr.f32.gmra.mrb[0].mxu0 %v490
        %v607 = vpop.f32.mrb[0].mxu0
        %v608 = vadd.f32 %v415, %v607
        %v609 = vpop.f32.mrb[0].mxu0
        %610 = vmatprep.mubr.f32.mxu0 0.0
        %611 = vmatmul.mubr.f32.gmra.mrb[0].mxu0 %v493
        %v612 = vpop.f32.mrb[0].mxu0
        %v613 = vadd.f32 %v420, %v612
        %v614 = vpop.f32.mrb[0].mxu0
        %615 = vmatprep.mubr.f32.mxu0 0.0
        %616 = vmatmul.mubr.f32.gmra.mrb[0].mxu0 %v496
        %v617 = vpop.f32.mrb[0].mxu0
        %v618 = vadd.f32 %v425, %v617
        %v619 = vpop.f32.mrb[0].mxu0
        %620 = vmatprep.mubr.f32.mxu0 0.0
        %621 = vmatmul.mubr.f32.gmra.mrb[0].mxu0 %v499
        %v622 = vpop.f32.mrb[0].mxu0
        %v623 = vadd.f32 %v430, %v622
        %v624 = vpop.f32.mrb[0].mxu0
        %625 = vmatprep.mubr.f32.mxu0 0.0
        %626 = vmatmul.mubr.f32.gmra.mrb[0].mxu0 %v502
        %v627 = vpop.f32.mrb[0].mxu0
        %v628 = vadd.f32 %v435, %v627
        %v629 = vpop.f32.mrb[0].mxu0
        %630 = vmatprep.mubr.f32.mxu0 0.0
        %631 = vmatmul.mubr.f32.gmra.mrb[0].mxu0 %v505
        %v632 = vpop.f32.mrb[0].mxu0
        %v633 = vadd.f32 %v440, %v632
        %v634 = vpop.f32.mrb[0].mxu0
        %635 = vmatprep.mubr.f32.mxu0 0.0
        %636 = vmatmul.mubr.f32.gmra.mrb[0].mxu0 %v508
        %v637 = vpop.f32.mrb[0].mxu0
        %v638 = vadd.f32 %v445, %v637
        %v639 = vpop.f32.mrb[0].mxu0
        %640 = vmatprep.mubr.f32.mxu0 0.0
        %641 = vmatmul.mubr.f32.gmra.mrb[0].mxu0 %v511
        %v642 = vpop.f32.mrb[0].mxu0
        %v643 = vadd.f32 %v450, %v642
        %v644 = vpop.f32.mrb[0].mxu0
        %645 = vmatprep.mubr.f32.mxu0 0.0
        %646 = vmatmul.mubr.f32.gmra.mrb[0].mxu0 %v514
        %v647 = vpop.f32.mrb[0].mxu0
        %v648 = vadd.f32 %v455, %v647
        %v649 = vpop.f32.mrb[0].mxu0
        %650 = vmatprep.mubr.f32.mxu0 0.0
        %651 = vmatmul.mubr.f32.gmra.mrb[0].mxu0 %v517
        %v652 = vpop.f32.mrb[0].mxu0
        %v653 = vadd.f32 %v460, %v652
        %v654 = vpop.f32.mrb[0].mxu0
        %655 = vmatprep.mubr.f32.mxu0 0.0
        %656 = vmatmul.mubr.f32.gmra.mrb[0].mxu0 %v520
        %v657 = vpop.f32.mrb[0].mxu0
        %v658 = vadd.f32 %v465, %v657
        %v659 = vpop.f32.mrb[0].mxu0
        %660 = vmatprep.mubr.f32.mxu0 0.0
        %661 = vmatmul.mubr.f32.gmra.mrb[0].mxu0 %v523
        %v662 = vpop.f32.mrb[0].mxu0
        %v663 = vadd.f32 %v470, %v662
        %v664 = vpop.f32.mrb[0].mxu0
        %665 = vmatprep.mubr.f32.mxu0 0.0
        %666 = vmatmul.mubr.f32.gmra.mrb[0].mxu0 %v526
        %v667 = vpop.f32.mrb[0].mxu0
        %v668 = vadd.f32 %v475, %v667
        %v669 = vpop.f32.mrb[0].mxu0
        %670 = vmatprep.mubr.f32.mxu0 0.0
        %671 = vmatmul.mubr.f32.gmra.mrb[0].mxu0 %v529
        %v672 = vpop.f32.mrb[0].mxu0
        %v673 = vadd.f32 %v480, %v672
        %v674 = vpop.f32.mrb[0].mxu0
        %675 = vdwg.mxu0
        %v676 = vld [vmem:[#allocation2] sm:$0xff]
        %v677 = vld [vmem:[#allocation2 + $0x8] sm:$0xff]
        %v678 = vld [vmem:[#allocation2 + $0x10] sm:$0xff]
        %v679 = vld [vmem:[#allocation2 + $0x18] sm:$0xff]
        %v680 = vld [vmem:[#allocation2 + $0x20] sm:$0xff]
        %v681 = vld [vmem:[#allocation2 + $0x28] sm:$0xff]
        %v682 = vld [vmem:[#allocation2 + $0x30] sm:$0xff]
        %v683 = vld [vmem:[#allocation2 + $0x38] sm:$0xff]
        %v684 = vld [vmem:[#allocation2 + $0x40] sm:$0xff]
        %v685 = vld [vmem:[#allocation2 + $0x48] sm:$0xff]
        %v686 = vld [vmem:[#allocation2 + $0x50] sm:$0xff]
        %v687 = vld [vmem:[#allocation2 + $0x58] sm:$0xff]
        %v688 = vld [vmem:[#allocation2 + $0x60] sm:$0xff]
        %v689 = vld [vmem:[#allocation2 + $0x68] sm:$0xff]
        %v690 = vld [vmem:[#allocation2 + $0x70] sm:$0xff]
        %v691 = vld [vmem:[#allocation2 + $0x78] sm:$0xff]
        %v692 = vld [vmem:[%s4] sm:$0x1]
        %v694 = vlaneseq
        %v695 = vshrl.u32 %v694, 7
        %v696 = vsub.s32 0, %v695
        %v697 = vrot.slane %v692, %v696
        %699 = vmatprep.subr.mxu0 0.0
        %700 = vmatpush1.msra.mxu0 %v676
        %701 = vmatprep.subr.mxu0 0.0
        %702 = vmatpush1.msra.mxu0 %v677
        %703 = vmatprep.subr.mxu0 0.0
        %704 = vmatpush1.msra.mxu0 %v678
        %705 = vmatprep.subr.mxu0 0.0
        %706 = vmatpush1.msra.mxu0 %v679
        %707 = vmatprep.subr.mxu0 0.0
        %708 = vmatpush1.msra.mxu0 %v680
        %709 = vmatprep.subr.mxu0 0.0
        %710 = vmatpush1.msra.mxu0 %v681
        %711 = vmatprep.subr.mxu0 0.0
        %712 = vmatpush1.msra.mxu0 %v682
        %713 = vmatprep.subr.mxu0 0.0
        %714 = vmatpush1.msra.mxu0 %v683
        %715 = vmatprep.subr.mxu0 0.0
        %716 = vmatpush1.msra.mxu0 %v684
        %717 = vmatprep.subr.mxu0 0.0
        %718 = vmatpush1.msra.mxu0 %v685
        %719 = vmatprep.subr.mxu0 0.0
        %720 = vmatpush1.msra.mxu0 %v686
        %721 = vmatprep.subr.mxu0 0.0
        %722 = vmatpush1.msra.mxu0 %v687
        %723 = vmatprep.subr.mxu0 0.0
        %724 = vmatpush1.msra.mxu0 %v688
        %725 = vmatprep.subr.mxu0 0.0
        %726 = vmatpush1.msra.mxu0 %v689
        %727 = vmatprep.subr.mxu0 0.0
        %728 = vmatpush1.msra.mxu0 %v690
        %729 = vmatprep.subr.mxu0 0.0
        %730 = vmatpush1.msra.mxu0 %v691
        %731 = vmatprep.subr.mxu0 0.0
        %732 = vmatpush1.msra.mxu0 0.0
        %733 = vmatprep.subr.mxu0 0.0
        %734 = vmatpush1.msra.mxu0 0.0
        %735 = vmatprep.subr.mxu0 0.0
        %736 = vmatpush1.msra.mxu0 0.0
        %737 = vmatprep.subr.mxu0 0.0
        %738 = vmatpush1.msra.mxu0 0.0
        %739 = vmatprep.subr.mxu0 0.0
        %740 = vmatpush1.msra.mxu0 0.0
        %741 = vmatprep.subr.mxu0 0.0
        %742 = vmatpush1.msra.mxu0 0.0
        %743 = vmatprep.subr.mxu0 0.0
        %744 = vmatpush1.msra.mxu0 0.0
        %745 = vmatprep.subr.mxu0 0.0
        %746 = vmatpush1.msra.mxu0 0.0
        %747 = vmatprep.subr.mxu0 0.0
        %748 = vmatpush1.msra.mxu0 0.0
        %749 = vmatprep.subr.mxu0 0.0
        %750 = vmatpush1.msra.mxu0 0.0
        %751 = vmatprep.subr.mxu0 0.0
        %752 = vmatpush1.msra.mxu0 0.0
        %753 = vmatprep.subr.mxu0 0.0
        %754 = vmatpush1.msra.mxu0 0.0
        %755 = vmatprep.subr.mxu0 0.0
        %756 = vmatpush1.msra.mxu0 0.0
        %757 = vmatprep.subr.mxu0 0.0
        %758 = vmatpush1.msra.mxu0 0.0
        %759 = vmatprep.subr.mxu0 0.0
        %760 = vmatpush1.msra.mxu0 0.0
        %761 = vmatprep.subr.mxu0 0.0
        %762 = vmatpush1.msra.mxu0 0.0
        %763 = vmatprep.mubr.f32.mxu0 0.0
        %764 = vmatmul.mubr.f32.gmra.mrb[0].mxu0 %v598
        %v765 = vpop.f32.mrb[0].mxu0
        %v766 = vadd.f32 %v697, %v765
        %v767 = vpop.f32.mrb[0].mxu0
        %768 = vmatprep.mubr.f32.mxu0 0.0
        %769 = vmatmul.mubr.f32.gmra.mrb[0].mxu0 %v603
        %v770 = vpop.f32.mrb[0].mxu0
        %v771 = vadd.f32 %v697, %v770
        %v772 = vpop.f32.mrb[0].mxu0
        %773 = vmatprep.mubr.f32.mxu0 0.0
        %774 = vmatmul.mubr.f32.gmra.mrb[0].mxu0 %v608
        %v775 = vpop.f32.mrb[0].mxu0
        %v776 = vadd.f32 %v697, %v775
        %v777 = vpop.f32.mrb[0].mxu0
        %778 = vmatprep.mubr.f32.mxu0 0.0
        %779 = vmatmul.mubr.f32.gmra.mrb[0].mxu0 %v613
        %v780 = vpop.f32.mrb[0].mxu0
        %v781 = vadd.f32 %v697, %v780
        %v782 = vpop.f32.mrb[0].mxu0
        %783 = vmatprep.mubr.f32.mxu0 0.0
        %784 = vmatmul.mubr.f32.gmra.mrb[0].mxu0 %v618
        %v785 = vpop.f32.mrb[0].mxu0
        %v786 = vadd.f32 %v697, %v785
        %v787 = vpop.f32.mrb[0].mxu0
        %788 = vmatprep.mubr.f32.mxu0 0.0
        %789 = vmatmul.mubr.f32.gmra.mrb[0].mxu0 %v623
        %v790 = vpop.f32.mrb[0].mxu0
        %v791 = vadd.f32 %v697, %v790
        %v792 = vpop.f32.mrb[0].mxu0
        %793 = vmatprep.mubr.f32.mxu0 0.0
        %794 = vmatmul.mubr.f32.gmra.mrb[0].mxu0 %v628
        %v795 = vpop.f32.mrb[0].mxu0
        %v796 = vadd.f32 %v697, %v795
        %v797 = vpop.f32.mrb[0].mxu0
        %798 = vmatprep.mubr.f32.mxu0 0.0
        %799 = vmatmul.mubr.f32.gmra.mrb[0].mxu0 %v633
        %v800 = vpop.f32.mrb[0].mxu0
        %v801 = vadd.f32 %v697, %v800
        %v802 = vpop.f32.mrb[0].mxu0
        %803 = vmatprep.mubr.f32.mxu0 0.0
        %804 = vmatmul.mubr.f32.gmra.mrb[0].mxu0 %v638
        %v805 = vpop.f32.mrb[0].mxu0
        %v806 = vadd.f32 %v697, %v805
        %v807 = vpop.f32.mrb[0].mxu0
        %808 = vmatprep.mubr.f32.mxu0 0.0
        %809 = vmatmul.mubr.f32.gmra.mrb[0].mxu0 %v643
        %v810 = vpop.f32.mrb[0].mxu0
        %v811 = vadd.f32 %v697, %v810
        %v812 = vpop.f32.mrb[0].mxu0
        %813 = vmatprep.mubr.f32.mxu0 0.0
        %814 = vmatmul.mubr.f32.gmra.mrb[0].mxu0 %v648
        %v815 = vpop.f32.mrb[0].mxu0
        %v816 = vadd.f32 %v697, %v815
        %v817 = vpop.f32.mrb[0].mxu0
        %818 = vmatprep.mubr.f32.mxu0 0.0
        %819 = vmatmul.mubr.f32.gmra.mrb[0].mxu0 %v653
        %v820 = vpop.f32.mrb[0].mxu0
        %v821 = vadd.f32 %v697, %v820
        %v822 = vpop.f32.mrb[0].mxu0
        %823 = vmatprep.mubr.f32.mxu0 0.0
        %824 = vmatmul.mubr.f32.gmra.mrb[0].mxu0 %v658
        %v825 = vpop.f32.mrb[0].mxu0
        %v826 = vadd.f32 %v697, %v825
        %v827 = vpop.f32.mrb[0].mxu0
        %828 = vmatprep.mubr.f32.mxu0 0.0
        %829 = vmatmul.mubr.f32.gmra.mrb[0].mxu0 %v663
        %v830 = vpop.f32.mrb[0].mxu0
        %v831 = vadd.f32 %v697, %v830
        %v832 = vpop.f32.mrb[0].mxu0
        %833 = vmatprep.mubr.f32.mxu0 0.0
        %834 = vmatmul.mubr.f32.gmra.mrb[0].mxu0 %v668
        %v835 = vpop.f32.mrb[0].mxu0
        %v836 = vadd.f32 %v697, %v835
        %v837 = vpop.f32.mrb[0].mxu0
        %838 = vmatprep.mubr.f32.mxu0 0.0
        %839 = vmatmul.mubr.f32.gmra.mrb[0].mxu0 %v673
        %v840 = vpop.f32.mrb[0].mxu0
        %v841 = vadd.f32 %v697, %v840
        %v842 = vpop.f32.mrb[0].mxu0
        %843 = vdwg.mxu0
        %844 = vrot.lane.b32.xlu0 %v766, 1
        %v845 = vpop.permute.xlu0 %844
        %846 = vrot.lane.b32.xlu0 %v771, 1
        %v847 = vpop.permute.xlu0 %846
        %848 = vrot.lane.b32.xlu0 %v776, 1
        %v849 = vpop.permute.xlu0 %848
        %850 = vrot.lane.b32.xlu0 %v781, 1
        %v851 = vpop.permute.xlu0 %850
        %852 = vrot.lane.b32.xlu0 %v786, 1
        %v853 = vpop.permute.xlu0 %852
        %854 = vrot.lane.b32.xlu0 %v791, 1
        %v855 = vpop.permute.xlu0 %854
        %856 = vrot.lane.b32.xlu0 %v796, 1
        %v857 = vpop.permute.xlu0 %856
        %858 = vrot.lane.b32.xlu0 %v801, 1
        %v859 = vpop.permute.xlu0 %858
        %860 = vrot.lane.b32.xlu0 %v806, 1
        %v861 = vpop.permute.xlu0 %860
        %862 = vrot.lane.b32.xlu0 %v811, 1
        %v863 = vpop.permute.xlu0 %862
        %864 = vrot.lane.b32.xlu0 %v816, 1
        %v865 = vpop.permute.xlu0 %864
        %866 = vrot.lane.b32.xlu0 %v821, 1
        %v867 = vpop.permute.xlu0 %866
        %868 = vrot.lane.b32.xlu0 %v826, 1
        %v869 = vpop.permute.xlu0 %868
        %870 = vrot.lane.b32.xlu0 %v831, 1
        %v871 = vpop.permute.xlu0 %870
        %872 = vrot.lane.b32.xlu0 %v836, 1
        %v873 = vpop.permute.xlu0 %872
        %874 = vrot.lane.b32.xlu0 %v841, 1
        %v875 = vpop.permute.xlu0 %874
        %v876 = vmul.f32 %v845, %v359
        %v877 = vmul.f32 %v847, %v359
        %v878 = vmul.f32 %v849, %v359
        %v879 = vmul.f32 %v851, %v359
        %v880 = vmul.f32 %v853, %v359
        %v881 = vmul.f32 %v855, %v359
        %v882 = vmul.f32 %v857, %v359
        %v883 = vmul.f32 %v859, %v359
        %v884 = vmul.f32 %v861, %v359
        %v885 = vmul.f32 %v863, %v359
        %v886 = vmul.f32 %v865, %v359
        %v887 = vmul.f32 %v867, %v359
        %v888 = vmul.f32 %v869, %v359
        %v889 = vmul.f32 %v871, %v359
        %v890 = vmul.f32 %v873, %v359
        %v891 = vmul.f32 %v875, %v359
        %892 = vrot.lane.b32.xlu0 %v766, 127
        %v893 = vpop.permute.xlu0 %892
        %894 = vrot.lane.b32.xlu0 %v771, 127
        %v895 = vpop.permute.xlu0 %894
        %896 = vrot.lane.b32.xlu0 %v776, 127
        %v897 = vpop.permute.xlu0 %896
        %898 = vrot.lane.b32.xlu0 %v781, 127
        %v899 = vpop.permute.xlu0 %898
        %900 = vrot.lane.b32.xlu0 %v786, 127
        %v901 = vpop.permute.xlu0 %900
        %902 = vrot.lane.b32.xlu0 %v791, 127
        %v903 = vpop.permute.xlu0 %902
        %904 = vrot.lane.b32.xlu0 %v796, 127
        %v905 = vpop.permute.xlu0 %904
        %906 = vrot.lane.b32.xlu0 %v801, 127
        %v907 = vpop.permute.xlu0 %906
        %908 = vrot.lane.b32.xlu0 %v806, 127
        %v909 = vpop.permute.xlu0 %908
        %910 = vrot.lane.b32.xlu0 %v811, 127
        %v911 = vpop.permute.xlu0 %910
        %912 = vrot.lane.b32.xlu0 %v816, 127
        %v913 = vpop.permute.xlu0 %912
        %914 = vrot.lane.b32.xlu0 %v821, 127
        %v915 = vpop.permute.xlu0 %914
        %916 = vrot.lane.b32.xlu0 %v826, 127
        %v917 = vpop.permute.xlu0 %916
        %918 = vrot.lane.b32.xlu0 %v831, 127
        %v919 = vpop.permute.xlu0 %918
        %920 = vrot.lane.b32.xlu0 %v836, 127
        %v921 = vpop.permute.xlu0 %920
        %922 = vrot.lane.b32.xlu0 %v841, 127
        %v923 = vpop.permute.xlu0 %922
        %v924 = vmul.f32 %v893, %v362
        %v925 = vmul.f32 %v895, %v362
        %v926 = vmul.f32 %v897, %v362
        %v927 = vmul.f32 %v899, %v362
        %v928 = vmul.f32 %v901, %v362
        %v929 = vmul.f32 %v903, %v362
        %v930 = vmul.f32 %v905, %v362
        %v931 = vmul.f32 %v907, %v362
        %v932 = vmul.f32 %v909, %v362
        %v933 = vmul.f32 %v911, %v362
        %v934 = vmul.f32 %v913, %v362
        %v935 = vmul.f32 %v915, %v362
        %v936 = vmul.f32 %v917, %v362
        %v937 = vmul.f32 %v919, %v362
        %v938 = vmul.f32 %v921, %v362
        %v939 = vmul.f32 %v923, %v362
        %v940 = vld [vmem:[%s5] sm:$0xff]
        %v941 = vld [vmem:[%s5 + $0x8] sm:$0xff]
        %v942 = vld [vmem:[%s5 + $0x10] sm:$0xff]
        %v943 = vld [vmem:[%s5 + $0x18] sm:$0xff]
        %v944 = vld [vmem:[%s5 + $0x20] sm:$0xff]
        %v945 = vld [vmem:[%s5 + $0x28] sm:$0xff]
        %v946 = vld [vmem:[%s5 + $0x30] sm:$0xff]
        %v947 = vld [vmem:[%s5 + $0x38] sm:$0xff]
        %v948 = vld [vmem:[%s5 + $0x40] sm:$0xff]
        %v949 = vld [vmem:[%s5 + $0x48] sm:$0xff]
        %v950 = vld [vmem:[%s5 + $0x50] sm:$0xff]
        %v951 = vld [vmem:[%s5 + $0x58] sm:$0xff]
        %v952 = vld [vmem:[%s5 + $0x60] sm:$0xff]
        %v953 = vld [vmem:[%s5 + $0x68] sm:$0xff]
        %v954 = vld [vmem:[%s5 + $0x70] sm:$0xff]
        %v955 = vld [vmem:[%s5 + $0x78] sm:$0xff]
        %s956 = scalar_lea.vmem %s5, 128
        %v957 = vld [vmem:[%s956] sm:$0xff]
        %v958 = vld [vmem:[%s956 + $0x8] sm:$0xff]
        %v959 = vld [vmem:[%s956 + $0x10] sm:$0xff]
        %v960 = vld [vmem:[%s956 + $0x18] sm:$0xff]
        %v961 = vld [vmem:[%s956 + $0x20] sm:$0xff]
        %v962 = vld [vmem:[%s956 + $0x28] sm:$0xff]
        %v963 = vld [vmem:[%s956 + $0x30] sm:$0xff]
        %v964 = vld [vmem:[%s956 + $0x38] sm:$0xff]
        %v965 = vld [vmem:[%s956 + $0x40] sm:$0xff]
        %v966 = vld [vmem:[%s956 + $0x48] sm:$0xff]
        %v967 = vld [vmem:[%s956 + $0x50] sm:$0xff]
        %v968 = vld [vmem:[%s956 + $0x58] sm:$0xff]
        %v969 = vld [vmem:[%s956 + $0x60] sm:$0xff]
        %v970 = vld [vmem:[%s956 + $0x68] sm:$0xff]
        %v971 = vld [vmem:[%s956 + $0x70] sm:$0xff]
        %v972 = vld [vmem:[%s956 + $0x78] sm:$0xff]
        %973 = vmatprep.subr.mxu0 0.0
        %974 = vmatpush1.msra.mxu0 %v766
        %975 = vmatprep.subr.mxu0 0.0
        %976 = vmatpush1.msra.mxu0 %v771
        %977 = vmatprep.subr.mxu0 0.0
        %978 = vmatpush1.msra.mxu0 %v776
        %979 = vmatprep.subr.mxu0 0.0
        %980 = vmatpush1.msra.mxu0 %v781
        %981 = vmatprep.subr.mxu0 0.0
        %982 = vmatpush1.msra.mxu0 %v786
        %983 = vmatprep.subr.mxu0 0.0
        %984 = vmatpush1.msra.mxu0 %v791
        %985 = vmatprep.subr.mxu0 0.0
        %986 = vmatpush1.msra.mxu0 %v796
        %987 = vmatprep.subr.mxu0 0.0
        %988 = vmatpush1.msra.mxu0 %v801
        %989 = vmatprep.subr.mxu0 0.0
        %990 = vmatpush1.msra.mxu0 %v806
        %991 = vmatprep.subr.mxu0 0.0
        %992 = vmatpush1.msra.mxu0 %v811
        %993 = vmatprep.subr.mxu0 0.0
        %994 = vmatpush1.msra.mxu0 %v816
        %995 = vmatprep.subr.mxu0 0.0
        %996 = vmatpush1.msra.mxu0 %v821
        %997 = vmatprep.subr.mxu0 0.0
        %998 = vmatpush1.msra.mxu0 %v826
        %999 = vmatprep.subr.mxu0 0.0
        %1000 = vmatpush1.msra.mxu0 %v831
        %1001 = vmatprep.subr.mxu0 0.0
        %1002 = vmatpush1.msra.mxu0 %v836
        %1003 = vmatprep.subr.mxu0 0.0
        %1004 = vmatpush1.msra.mxu0 %v841
        %1005 = vmatprep.subr.mxu0 0.0
        %1006 = vmatpush1.msra.mxu0 0.0
        %1007 = vmatprep.subr.mxu0 0.0
        %1008 = vmatpush1.msra.mxu0 0.0
        %1009 = vmatprep.subr.mxu0 0.0
        %1010 = vmatpush1.msra.mxu0 0.0
        %1011 = vmatprep.subr.mxu0 0.0
        %1012 = vmatpush1.msra.mxu0 0.0
        %1013 = vmatprep.subr.mxu0 0.0
        %1014 = vmatpush1.msra.mxu0 0.0
        %1015 = vmatprep.subr.mxu0 0.0
        %1016 = vmatpush1.msra.mxu0 0.0
        %1017 = vmatprep.subr.mxu0 0.0
        %1018 = vmatpush1.msra.mxu0 0.0
        %1019 = vmatprep.subr.mxu0 0.0
        %1020 = vmatpush1.msra.mxu0 0.0
        %1021 = vmatprep.subr.mxu0 0.0
        %1022 = vmatpush1.msra.mxu0 0.0
        %1023 = vmatprep.subr.mxu0 0.0
        %1024 = vmatpush1.msra.mxu0 0.0
        %1025 = vmatprep.subr.mxu0 0.0
        %1026 = vmatpush1.msra.mxu0 0.0
        %1027 = vmatprep.subr.mxu0 0.0
        %1028 = vmatpush1.msra.mxu0 0.0
        %1029 = vmatprep.subr.mxu0 0.0
        %1030 = vmatpush1.msra.mxu0 0.0
        %1031 = vmatprep.subr.mxu0 0.0
        %1032 = vmatpush1.msra.mxu0 0.0
        %1033 = vmatprep.subr.mxu0 0.0
        %1034 = vmatpush1.msra.mxu0 0.0
        %1035 = vmatprep.subr.mxu0 0.0
        %1036 = vmatpush1.msra.mxu0 0.0
        %1037 = vmatprep.mubr.f32.mxu0 0.0
        %1038 = vmatmul.mubr.f32.gmra.mrb[0].mxu0 %v957
        %v1039 = vpop.f32.mrb[0].mxu0
        %v1040 = vadd.f32 0.0, %v1039
        %v1041 = vpop.f32.mrb[0].mxu0
        %1042 = vmatprep.mubr.f32.mxu0 0.0
        %1043 = vmatmul.mubr.f32.gmra.mrb[0].mxu0 %v958
        %v1044 = vpop.f32.mrb[0].mxu0
        %v1045 = vadd.f32 0.0, %v1044
        %v1046 = vpop.f32.mrb[0].mxu0
        %1047 = vmatprep.mubr.f32.mxu0 0.0
        %1048 = vmatmul.mubr.f32.gmra.mrb[0].mxu0 %v959
        %v1049 = vpop.f32.mrb[0].mxu0
        %v1050 = vadd.f32 0.0, %v1049
        %v1051 = vpop.f32.mrb[0].mxu0
        %1052 = vmatprep.mubr.f32.mxu0 0.0
        %1053 = vmatmul.mubr.f32.gmra.mrb[0].mxu0 %v960
        %v1054 = vpop.f32.mrb[0].mxu0
        %v1055 = vadd.f32 0.0, %v1054
        %v1056 = vpop.f32.mrb[0].mxu0
        %1057 = vmatprep.mubr.f32.mxu0 0.0
        %1058 = vmatmul.mubr.f32.gmra.mrb[0].mxu0 %v961
        %v1059 = vpop.f32.mrb[0].mxu0
        %v1060 = vadd.f32 0.0, %v1059
        %v1061 = vpop.f32.mrb[0].mxu0
        %1062 = vmatprep.mubr.f32.mxu0 0.0
        %1063 = vmatmul.mubr.f32.gmra.mrb[0].mxu0 %v962
        %v1064 = vpop.f32.mrb[0].mxu0
        %v1065 = vadd.f32 0.0, %v1064
        %v1066 = vpop.f32.mrb[0].mxu0
        %1067 = vmatprep.mubr.f32.mxu0 0.0
        %1068 = vmatmul.mubr.f32.gmra.mrb[0].mxu0 %v963
        %v1069 = vpop.f32.mrb[0].mxu0
        %v1070 = vadd.f32 0.0, %v1069
        %v1071 = vpop.f32.mrb[0].mxu0
        %1072 = vmatprep.mubr.f32.mxu0 0.0
        %1073 = vmatmul.mubr.f32.gmra.mrb[0].mxu0 %v964
        %v1074 = vpop.f32.mrb[0].mxu0
        %v1075 = vadd.f32 0.0, %v1074
        %v1076 = vpop.f32.mrb[0].mxu0
        %1077 = vmatprep.mubr.f32.mxu0 0.0
        %1078 = vmatmul.mubr.f32.gmra.mrb[0].mxu0 %v965
        %v1079 = vpop.f32.mrb[0].mxu0
        %v1080 = vadd.f32 0.0, %v1079
        %v1081 = vpop.f32.mrb[0].mxu0
        %1082 = vmatprep.mubr.f32.mxu0 0.0
        %1083 = vmatmul.mubr.f32.gmra.mrb[0].mxu0 %v966
        %v1084 = vpop.f32.mrb[0].mxu0
        %v1085 = vadd.f32 0.0, %v1084
        %v1086 = vpop.f32.mrb[0].mxu0
        %1087 = vmatprep.mubr.f32.mxu0 0.0
        %1088 = vmatmul.mubr.f32.gmra.mrb[0].mxu0 %v967
        %v1089 = vpop.f32.mrb[0].mxu0
        %v1090 = vadd.f32 0.0, %v1089
        %v1091 = vpop.f32.mrb[0].mxu0
        %1092 = vmatprep.mubr.f32.mxu0 0.0
        %1093 = vmatmul.mubr.f32.gmra.mrb[0].mxu0 %v968
        %v1094 = vpop.f32.mrb[0].mxu0
        %v1095 = vadd.f32 0.0, %v1094
        %v1096 = vpop.f32.mrb[0].mxu0
        %1097 = vmatprep.mubr.f32.mxu0 0.0
        %1098 = vmatmul.mubr.f32.gmra.mrb[0].mxu0 %v969
        %v1099 = vpop.f32.mrb[0].mxu0
        %v1100 = vadd.f32 0.0, %v1099
        %v1101 = vpop.f32.mrb[0].mxu0
        %1102 = vmatprep.mubr.f32.mxu0 0.0
        %1103 = vmatmul.mubr.f32.gmra.mrb[0].mxu0 %v970
        %v1104 = vpop.f32.mrb[0].mxu0
        %v1105 = vadd.f32 0.0, %v1104
        %v1106 = vpop.f32.mrb[0].mxu0
        %1107 = vmatprep.mubr.f32.mxu0 0.0
        %1108 = vmatmul.mubr.f32.gmra.mrb[0].mxu0 %v971
        %v1109 = vpop.f32.mrb[0].mxu0
        %v1110 = vadd.f32 0.0, %v1109
        %v1111 = vpop.f32.mrb[0].mxu0
        %1112 = vmatprep.mubr.f32.mxu0 0.0
        %1113 = vmatmul.mubr.f32.gmra.mrb[0].mxu0 %v972
        %v1114 = vpop.f32.mrb[0].mxu0
        %v1115 = vadd.f32 0.0, %v1114
        %v1116 = vpop.f32.mrb[0].mxu0
        %1117 = vdwg.mxu0
        %1118 = vmatprep.subr.mxu0 0.0
        %1119 = vmatpush1.msra.mxu0 %v876
        %1120 = vmatprep.subr.mxu0 0.0
        %1121 = vmatpush1.msra.mxu0 %v877
        %1122 = vmatprep.subr.mxu0 0.0
        %1123 = vmatpush1.msra.mxu0 %v878
        %1124 = vmatprep.subr.mxu0 0.0
        %1125 = vmatpush1.msra.mxu0 %v879
        %1126 = vmatprep.subr.mxu0 0.0
        %1127 = vmatpush1.msra.mxu0 %v880
        %1128 = vmatprep.subr.mxu0 0.0
        %1129 = vmatpush1.msra.mxu0 %v881
        %1130 = vmatprep.subr.mxu0 0.0
        %1131 = vmatpush1.msra.mxu0 %v882
        %1132 = vmatprep.subr.mxu0 0.0
        %1133 = vmatpush1.msra.mxu0 %v883
        %1134 = vmatprep.subr.mxu0 0.0
        %1135 = vmatpush1.msra.mxu0 %v884
        %1136 = vmatprep.subr.mxu0 0.0
        %1137 = vmatpush1.msra.mxu0 %v885
        %1138 = vmatprep.subr.mxu0 0.0
        %1139 = vmatpush1.msra.mxu0 %v886
        %1140 = vmatprep.subr.mxu0 0.0
        %1141 = vmatpush1.msra.mxu0 %v887
        %1142 = vmatprep.subr.mxu0 0.0
        %1143 = vmatpush1.msra.mxu0 %v888
        %1144 = vmatprep.subr.mxu0 0.0
        %1145 = vmatpush1.msra.mxu0 %v889
        %1146 = vmatprep.subr.mxu0 0.0
        %1147 = vmatpush1.msra.mxu0 %v890
        %1148 = vmatprep.subr.mxu0 0.0
        %1149 = vmatpush1.msra.mxu0 %v891
        %1150 = vmatprep.subr.mxu0 0.0
        %1151 = vmatpush1.msra.mxu0 0.0
        %1152 = vmatprep.subr.mxu0 0.0
        %1153 = vmatpush1.msra.mxu0 0.0
        %1154 = vmatprep.subr.mxu0 0.0
        %1155 = vmatpush1.msra.mxu0 0.0
        %1156 = vmatprep.subr.mxu0 0.0
        %1157 = vmatpush1.msra.mxu0 0.0
        %1158 = vmatprep.subr.mxu0 0.0
        %1159 = vmatpush1.msra.mxu0 0.0
        %1160 = vmatprep.subr.mxu0 0.0
        %1161 = vmatpush1.msra.mxu0 0.0
        %1162 = vmatprep.subr.mxu0 0.0
        %1163 = vmatpush1.msra.mxu0 0.0
        %1164 = vmatprep.subr.mxu0 0.0
        %1165 = vmatpush1.msra.mxu0 0.0
        %1166 = vmatprep.subr.mxu0 0.0
        %1167 = vmatpush1.msra.mxu0 0.0
        %1168 = vmatprep.subr.mxu0 0.0
        %1169 = vmatpush1.msra.mxu0 0.0
        %1170 = vmatprep.subr.mxu0 0.0
        %1171 = vmatpush1.msra.mxu0 0.0
        %1172 = vmatprep.subr.mxu0 0.0
        %1173 = vmatpush1.msra.mxu0 0.0
        %1174 = vmatprep.subr.mxu0 0.0
        %1175 = vmatpush1.msra.mxu0 0.0
        %1176 = vmatprep.subr.mxu0 0.0
        %1177 = vmatpush1.msra.mxu0 0.0
        %1178 = vmatprep.subr.mxu0 0.0
        %1179 = vmatpush1.msra.mxu0 0.0
        %1180 = vmatprep.subr.mxu0 0.0
        %1181 = vmatpush1.msra.mxu0 0.0
        %1182 = vmatprep.mubr.f32.mxu0 0.0
        %1183 = vmatmul.mubr.f32.gmra.mrb[0].mxu0 %v940
        %v1184 = vpop.f32.mrb[0].mxu0
        %v1185 = vadd.f32 %v1040, %v1184
        %v1186 = vpop.f32.mrb[0].mxu0
        %1187 = vmatprep.mubr.f32.mxu0 0.0
        %1188 = vmatmul.mubr.f32.gmra.mrb[0].mxu0 %v941
        %v1189 = vpop.f32.mrb[0].mxu0
        %v1190 = vadd.f32 %v1045, %v1189
        %v1191 = vpop.f32.mrb[0].mxu0
        %1192 = vmatprep.mubr.f32.mxu0 0.0
        %1193 = vmatmul.mubr.f32.gmra.mrb[0].mxu0 %v942
        %v1194 = vpop.f32.mrb[0].mxu0
        %v1195 = vadd.f32 %v1050, %v1194
        %v1196 = vpop.f32.mrb[0].mxu0
        %1197 = vmatprep.mubr.f32.mxu0 0.0
        %1198 = vmatmul.mubr.f32.gmra.mrb[0].mxu0 %v943
        %v1199 = vpop.f32.mrb[0].mxu0
        %v1200 = vadd.f32 %v1055, %v1199
        %v1201 = vpop.f32.mrb[0].mxu0
        %1202 = vmatprep.mubr.f32.mxu0 0.0
        %1203 = vmatmul.mubr.f32.gmra.mrb[0].mxu0 %v944
        %v1204 = vpop.f32.mrb[0].mxu0
        %v1205 = vadd.f32 %v1060, %v1204
        %v1206 = vpop.f32.mrb[0].mxu0
        %1207 = vmatprep.mubr.f32.mxu0 0.0
        %1208 = vmatmul.mubr.f32.gmra.mrb[0].mxu0 %v945
        %v1209 = vpop.f32.mrb[0].mxu0
        %v1210 = vadd.f32 %v1065, %v1209
        %v1211 = vpop.f32.mrb[0].mxu0
        %1212 = vmatprep.mubr.f32.mxu0 0.0
        %1213 = vmatmul.mubr.f32.gmra.mrb[0].mxu0 %v946
        %v1214 = vpop.f32.mrb[0].mxu0
        %v1215 = vadd.f32 %v1070, %v1214
        %v1216 = vpop.f32.mrb[0].mxu0
        %1217 = vmatprep.mubr.f32.mxu0 0.0
        %1218 = vmatmul.mubr.f32.gmra.mrb[0].mxu0 %v947
        %v1219 = vpop.f32.mrb[0].mxu0
        %v1220 = vadd.f32 %v1075, %v1219
        %v1221 = vpop.f32.mrb[0].mxu0
        %1222 = vmatprep.mubr.f32.mxu0 0.0
        %1223 = vmatmul.mubr.f32.gmra.mrb[0].mxu0 %v948
        %v1224 = vpop.f32.mrb[0].mxu0
        %v1225 = vadd.f32 %v1080, %v1224
        %v1226 = vpop.f32.mrb[0].mxu0
        %1227 = vmatprep.mubr.f32.mxu0 0.0
        %1228 = vmatmul.mubr.f32.gmra.mrb[0].mxu0 %v949
        %v1229 = vpop.f32.mrb[0].mxu0
        %v1230 = vadd.f32 %v1085, %v1229
        %v1231 = vpop.f32.mrb[0].mxu0
        %1232 = vmatprep.mubr.f32.mxu0 0.0
        %1233 = vmatmul.mubr.f32.gmra.mrb[0].mxu0 %v950
        %v1234 = vpop.f32.mrb[0].mxu0
        %v1235 = vadd.f32 %v1090, %v1234
        %v1236 = vpop.f32.mrb[0].mxu0
        %1237 = vmatprep.mubr.f32.mxu0 0.0
        %1238 = vmatmul.mubr.f32.gmra.mrb[0].mxu0 %v951
        %v1239 = vpop.f32.mrb[0].mxu0
        %v1240 = vadd.f32 %v1095, %v1239
        %v1241 = vpop.f32.mrb[0].mxu0
        %1242 = vmatprep.mubr.f32.mxu0 0.0
        %1243 = vmatmul.mubr.f32.gmra.mrb[0].mxu0 %v952
        %v1244 = vpop.f32.mrb[0].mxu0
        %v1245 = vadd.f32 %v1100, %v1244
        %v1246 = vpop.f32.mrb[0].mxu0
        %1247 = vmatprep.mubr.f32.mxu0 0.0
        %1248 = vmatmul.mubr.f32.gmra.mrb[0].mxu0 %v953
        %v1249 = vpop.f32.mrb[0].mxu0
        %v1250 = vadd.f32 %v1105, %v1249
        %v1251 = vpop.f32.mrb[0].mxu0
        %1252 = vmatprep.mubr.f32.mxu0 0.0
        %1253 = vmatmul.mubr.f32.gmra.mrb[0].mxu0 %v954
        %v1254 = vpop.f32.mrb[0].mxu0
        %v1255 = vadd.f32 %v1110, %v1254
        %v1256 = vpop.f32.mrb[0].mxu0
        %1257 = vmatprep.mubr.f32.mxu0 0.0
        %1258 = vmatmul.mubr.f32.gmra.mrb[0].mxu0 %v955
        %v1259 = vpop.f32.mrb[0].mxu0
        %v1260 = vadd.f32 %v1115, %v1259
        %v1261 = vpop.f32.mrb[0].mxu0
        %1262 = vdwg.mxu0
        %s1263 = scalar_lea.vmem %s5, 256
        %v1264 = vld [vmem:[%s1263] sm:$0xff]
        %v1265 = vld [vmem:[%s1263 + $0x8] sm:$0xff]
        %v1266 = vld [vmem:[%s1263 + $0x10] sm:$0xff]
        %v1267 = vld [vmem:[%s1263 + $0x18] sm:$0xff]
        %v1268 = vld [vmem:[%s1263 + $0x20] sm:$0xff]
        %v1269 = vld [vmem:[%s1263 + $0x28] sm:$0xff]
        %v1270 = vld [vmem:[%s1263 + $0x30] sm:$0xff]
        %v1271 = vld [vmem:[%s1263 + $0x38] sm:$0xff]
        %v1272 = vld [vmem:[%s1263 + $0x40] sm:$0xff]
        %v1273 = vld [vmem:[%s1263 + $0x48] sm:$0xff]
        %v1274 = vld [vmem:[%s1263 + $0x50] sm:$0xff]
        %v1275 = vld [vmem:[%s1263 + $0x58] sm:$0xff]
        %v1276 = vld [vmem:[%s1263 + $0x60] sm:$0xff]
        %v1277 = vld [vmem:[%s1263 + $0x68] sm:$0xff]
        %v1278 = vld [vmem:[%s1263 + $0x70] sm:$0xff]
        %v1279 = vld [vmem:[%s1263 + $0x78] sm:$0xff]
        %1280 = vmatprep.subr.mxu0 0.0
        %1281 = vmatpush1.msra.mxu0 %v924
        %1282 = vmatprep.subr.mxu0 0.0
        %1283 = vmatpush1.msra.mxu0 %v925
        %1284 = vmatprep.subr.mxu0 0.0
        %1285 = vmatpush1.msra.mxu0 %v926
        %1286 = vmatprep.subr.mxu0 0.0
        %1287 = vmatpush1.msra.mxu0 %v927
        %1288 = vmatprep.subr.mxu0 0.0
        %1289 = vmatpush1.msra.mxu0 %v928
        %1290 = vmatprep.subr.mxu0 0.0
        %1291 = vmatpush1.msra.mxu0 %v929
        %1292 = vmatprep.subr.mxu0 0.0
        %1293 = vmatpush1.msra.mxu0 %v930
        %1294 = vmatprep.subr.mxu0 0.0
        %1295 = vmatpush1.msra.mxu0 %v931
        %1296 = vmatprep.subr.mxu0 0.0
        %1297 = vmatpush1.msra.mxu0 %v932
        %1298 = vmatprep.subr.mxu0 0.0
        %1299 = vmatpush1.msra.mxu0 %v933
        %1300 = vmatprep.subr.mxu0 0.0
        %1301 = vmatpush1.msra.mxu0 %v934
        %1302 = vmatprep.subr.mxu0 0.0
        %1303 = vmatpush1.msra.mxu0 %v935
        %1304 = vmatprep.subr.mxu0 0.0
        %1305 = vmatpush1.msra.mxu0 %v936
        %1306 = vmatprep.subr.mxu0 0.0
        %1307 = vmatpush1.msra.mxu0 %v937
        %1308 = vmatprep.subr.mxu0 0.0
        %1309 = vmatpush1.msra.mxu0 %v938
        %1310 = vmatprep.subr.mxu0 0.0
        %1311 = vmatpush1.msra.mxu0 %v939
        %1312 = vmatprep.subr.mxu0 0.0
        %1313 = vmatpush1.msra.mxu0 0.0
        %1314 = vmatprep.subr.mxu0 0.0
        %1315 = vmatpush1.msra.mxu0 0.0
        %1316 = vmatprep.subr.mxu0 0.0
        %1317 = vmatpush1.msra.mxu0 0.0
        %1318 = vmatprep.subr.mxu0 0.0
        %1319 = vmatpush1.msra.mxu0 0.0
        %1320 = vmatprep.subr.mxu0 0.0
        %1321 = vmatpush1.msra.mxu0 0.0
        %1322 = vmatprep.subr.mxu0 0.0
        %1323 = vmatpush1.msra.mxu0 0.0
        %1324 = vmatprep.subr.mxu0 0.0
        %1325 = vmatpush1.msra.mxu0 0.0
        %1326 = vmatprep.subr.mxu0 0.0
        %1327 = vmatpush1.msra.mxu0 0.0
        %1328 = vmatprep.subr.mxu0 0.0
        %1329 = vmatpush1.msra.mxu0 0.0
        %1330 = vmatprep.subr.mxu0 0.0
        %1331 = vmatpush1.msra.mxu0 0.0
        %1332 = vmatprep.subr.mxu0 0.0
        %1333 = vmatpush1.msra.mxu0 0.0
        %1334 = vmatprep.subr.mxu0 0.0
        %1335 = vmatpush1.msra.mxu0 0.0
        %1336 = vmatprep.subr.mxu0 0.0
        %1337 = vmatpush1.msra.mxu0 0.0
        %1338 = vmatprep.subr.mxu0 0.0
        %1339 = vmatpush1.msra.mxu0 0.0
        %1340 = vmatprep.subr.mxu0 0.0
        %1341 = vmatpush1.msra.mxu0 0.0
        %1342 = vmatprep.subr.mxu0 0.0
        %1343 = vmatpush1.msra.mxu0 0.0
        %1344 = vmatprep.mubr.f32.mxu0 0.0
        %1345 = vmatmul.mubr.f32.gmra.mrb[0].mxu0 %v1264
        %v1346 = vpop.f32.mrb[0].mxu0
        %v1347 = vadd.f32 0.0, %v1346
        %v1348 = vpop.f32.mrb[0].mxu0
        %1349 = vmatprep.mubr.f32.mxu0 0.0
        %1350 = vmatmul.mubr.f32.gmra.mrb[0].mxu0 %v1265
        %v1351 = vpop.f32.mrb[0].mxu0
        %v1352 = vadd.f32 0.0, %v1351
        %v1353 = vpop.f32.mrb[0].mxu0
        %1354 = vmatprep.mubr.f32.mxu0 0.0
        %1355 = vmatmul.mubr.f32.gmra.mrb[0].mxu0 %v1266
        %v1356 = vpop.f32.mrb[0].mxu0
        %v1357 = vadd.f32 0.0, %v1356
        %v1358 = vpop.f32.mrb[0].mxu0
        %1359 = vmatprep.mubr.f32.mxu0 0.0
        %1360 = vmatmul.mubr.f32.gmra.mrb[0].mxu0 %v1267
        %v1361 = vpop.f32.mrb[0].mxu0
        %v1362 = vadd.f32 0.0, %v1361
        %v1363 = vpop.f32.mrb[0].mxu0
        %1364 = vmatprep.mubr.f32.mxu0 0.0
        %1365 = vmatmul.mubr.f32.gmra.mrb[0].mxu0 %v1268
        %v1366 = vpop.f32.mrb[0].mxu0
        %v1367 = vadd.f32 0.0, %v1366
        %v1368 = vpop.f32.mrb[0].mxu0
        %1369 = vmatprep.mubr.f32.mxu0 0.0
        %1370 = vmatmul.mubr.f32.gmra.mrb[0].mxu0 %v1269
        %v1371 = vpop.f32.mrb[0].mxu0
        %v1372 = vadd.f32 0.0, %v1371
        %v1373 = vpop.f32.mrb[0].mxu0
        %1374 = vmatprep.mubr.f32.mxu0 0.0
        %1375 = vmatmul.mubr.f32.gmra.mrb[0].mxu0 %v1270
        %v1376 = vpop.f32.mrb[0].mxu0
        %v1377 = vadd.f32 0.0, %v1376
        %v1378 = vpop.f32.mrb[0].mxu0
        %1379 = vmatprep.mubr.f32.mxu0 0.0
        %1380 = vmatmul.mubr.f32.gmra.mrb[0].mxu0 %v1271
        %v1381 = vpop.f32.mrb[0].mxu0
        %v1382 = vadd.f32 0.0, %v1381
        %v1383 = vpop.f32.mrb[0].mxu0
        %1384 = vmatprep.mubr.f32.mxu0 0.0
        %1385 = vmatmul.mubr.f32.gmra.mrb[0].mxu0 %v1272
        %v1386 = vpop.f32.mrb[0].mxu0
        %v1387 = vadd.f32 0.0, %v1386
        %v1388 = vpop.f32.mrb[0].mxu0
        %1389 = vmatprep.mubr.f32.mxu0 0.0
        %1390 = vmatmul.mubr.f32.gmra.mrb[0].mxu0 %v1273
        %v1391 = vpop.f32.mrb[0].mxu0
        %v1392 = vadd.f32 0.0, %v1391
        %v1393 = vpop.f32.mrb[0].mxu0
        %1394 = vmatprep.mubr.f32.mxu0 0.0
        %1395 = vmatmul.mubr.f32.gmra.mrb[0].mxu0 %v1274
        %v1396 = vpop.f32.mrb[0].mxu0
        %v1397 = vadd.f32 0.0, %v1396
        %v1398 = vpop.f32.mrb[0].mxu0
        %1399 = vmatprep.mubr.f32.mxu0 0.0
        %1400 = vmatmul.mubr.f32.gmra.mrb[0].mxu0 %v1275
        %v1401 = vpop.f32.mrb[0].mxu0
        %v1402 = vadd.f32 0.0, %v1401
        %v1403 = vpop.f32.mrb[0].mxu0
        %1404 = vmatprep.mubr.f32.mxu0 0.0
        %1405 = vmatmul.mubr.f32.gmra.mrb[0].mxu0 %v1276
        %v1406 = vpop.f32.mrb[0].mxu0
        %v1407 = vadd.f32 0.0, %v1406
        %v1408 = vpop.f32.mrb[0].mxu0
        %1409 = vmatprep.mubr.f32.mxu0 0.0
        %1410 = vmatmul.mubr.f32.gmra.mrb[0].mxu0 %v1277
        %v1411 = vpop.f32.mrb[0].mxu0
        %v1412 = vadd.f32 0.0, %v1411
        %v1413 = vpop.f32.mrb[0].mxu0
        %1414 = vmatprep.mubr.f32.mxu0 0.0
        %1415 = vmatmul.mubr.f32.gmra.mrb[0].mxu0 %v1278
        %v1416 = vpop.f32.mrb[0].mxu0
        %v1417 = vadd.f32 0.0, %v1416
        %v1418 = vpop.f32.mrb[0].mxu0
        %1419 = vmatprep.mubr.f32.mxu0 0.0
        %1420 = vmatmul.mubr.f32.gmra.mrb[0].mxu0 %v1279
        %v1421 = vpop.f32.mrb[0].mxu0
        %v1422 = vadd.f32 0.0, %v1421
        %v1423 = vpop.f32.mrb[0].mxu0
        %1424 = vdwg.mxu0
        %v1425 = vadd.f32 %v1185, %v1347
        %v1426 = vadd.f32 %v1190, %v1352
        %v1427 = vadd.f32 %v1195, %v1357
        %v1428 = vadd.f32 %v1200, %v1362
        %v1429 = vadd.f32 %v1205, %v1367
        %v1430 = vadd.f32 %v1210, %v1372
        %v1431 = vadd.f32 %v1215, %v1377
        %v1432 = vadd.f32 %v1220, %v1382
        %v1433 = vadd.f32 %v1225, %v1387
        %v1434 = vadd.f32 %v1230, %v1392
        %v1435 = vadd.f32 %v1235, %v1397
        %v1436 = vadd.f32 %v1240, %v1402
        %v1437 = vadd.f32 %v1245, %v1407
        %v1438 = vadd.f32 %v1250, %v1412
        %v1439 = vadd.f32 %v1255, %v1417
        %v1440 = vadd.f32 %v1260, %v1422
        %v1441 = vld [vmem:[%s6] sm:$0xff]
        %v1442 = vld [vmem:[%s6 + $0x8] sm:$0xff]
        %v1443 = vld [vmem:[%s6 + $0x10] sm:$0xff]
        %v1444 = vld [vmem:[%s6 + $0x18] sm:$0xff]
        %v1445 = vld [vmem:[%s6 + $0x20] sm:$0xff]
        %v1446 = vld [vmem:[%s6 + $0x28] sm:$0xff]
        %v1447 = vld [vmem:[%s6 + $0x30] sm:$0xff]
        %v1448 = vld [vmem:[%s6 + $0x38] sm:$0xff]
        %v1449 = vld [vmem:[%s6 + $0x40] sm:$0xff]
        %v1450 = vld [vmem:[%s6 + $0x48] sm:$0xff]
        %v1451 = vld [vmem:[%s6 + $0x50] sm:$0xff]
        %v1452 = vld [vmem:[%s6 + $0x58] sm:$0xff]
        %v1453 = vld [vmem:[%s6 + $0x60] sm:$0xff]
        %v1454 = vld [vmem:[%s6 + $0x68] sm:$0xff]
        %v1455 = vld [vmem:[%s6 + $0x70] sm:$0xff]
        %v1456 = vld [vmem:[%s6 + $0x78] sm:$0xff]
        %1458 = vset.pattern.permute.xlu0 0
        %1459 = vperm.xlu0 %1458, %v1441
        %v1460 = vpop.permute.xlu0 %1459
        %1463 = vset.pattern.permute.xlu0 0
        %1464 = vperm.xlu0 %1463, %v1442
        %v1465 = vpop.permute.xlu0 %1464
        %1468 = vset.pattern.permute.xlu0 0
        %1469 = vperm.xlu0 %1468, %v1443
        %v1470 = vpop.permute.xlu0 %1469
        %1473 = vset.pattern.permute.xlu0 0
        %1474 = vperm.xlu0 %1473, %v1444
        %v1475 = vpop.permute.xlu0 %1474
        %1478 = vset.pattern.permute.xlu0 0
        %1479 = vperm.xlu0 %1478, %v1445
        %v1480 = vpop.permute.xlu0 %1479
        %1483 = vset.pattern.permute.xlu0 0
        %1484 = vperm.xlu0 %1483, %v1446
        %v1485 = vpop.permute.xlu0 %1484
        %1488 = vset.pattern.permute.xlu0 0
        %1489 = vperm.xlu0 %1488, %v1447
        %v1490 = vpop.permute.xlu0 %1489
        %1493 = vset.pattern.permute.xlu0 0
        %1494 = vperm.xlu0 %1493, %v1448
        %v1495 = vpop.permute.xlu0 %1494
        %1498 = vset.pattern.permute.xlu0 0
        %1499 = vperm.xlu0 %1498, %v1449
        %v1500 = vpop.permute.xlu0 %1499
        %1503 = vset.pattern.permute.xlu0 0
        %1504 = vperm.xlu0 %1503, %v1450
        %v1505 = vpop.permute.xlu0 %1504
        %1508 = vset.pattern.permute.xlu0 0
        %1509 = vperm.xlu0 %1508, %v1451
        %v1510 = vpop.permute.xlu0 %1509
        %1513 = vset.pattern.permute.xlu0 0
        %1514 = vperm.xlu0 %1513, %v1452
        %v1515 = vpop.permute.xlu0 %1514
        %1518 = vset.pattern.permute.xlu0 0
        %1519 = vperm.xlu0 %1518, %v1453
        %v1520 = vpop.permute.xlu0 %1519
        %1523 = vset.pattern.permute.xlu0 0
        %1524 = vperm.xlu0 %1523, %v1454
        %v1525 = vpop.permute.xlu0 %1524
        %1528 = vset.pattern.permute.xlu0 0
        %1529 = vperm.xlu0 %1528, %v1455
        %v1530 = vpop.permute.xlu0 %1529
        %1533 = vset.pattern.permute.xlu0 0
        %1534 = vperm.xlu0 %1533, %v1456
        %v1535 = vpop.permute.xlu0 %1534
        %v1537 = vadd.f32 %v1425, %v1460
        %v1538 = vadd.f32 %v1426, %v1465
        %v1539 = vadd.f32 %v1427, %v1470
        %v1540 = vadd.f32 %v1428, %v1475
        %v1541 = vadd.f32 %v1429, %v1480
        %v1542 = vadd.f32 %v1430, %v1485
        %v1543 = vadd.f32 %v1431, %v1490
        %v1544 = vadd.f32 %v1432, %v1495
        %v1545 = vadd.f32 %v1433, %v1500
        %v1546 = vadd.f32 %v1434, %v1505
        %v1547 = vadd.f32 %v1435, %v1510
        %v1548 = vadd.f32 %v1436, %v1515
        %v1549 = vadd.f32 %v1437, %v1520
        %v1550 = vadd.f32 %v1438, %v1525
        %v1551 = vadd.f32 %v1439, %v1530
        %v1552 = vadd.f32 %v1440, %v1535
        %v1553 = vmax.f32 %v1537, 0.0
        %v1554 = vmax.f32 %v1538, 0.0
        %v1555 = vmax.f32 %v1539, 0.0
        %v1556 = vmax.f32 %v1540, 0.0
        %v1557 = vmax.f32 %v1541, 0.0
        %v1558 = vmax.f32 %v1542, 0.0
        %v1559 = vmax.f32 %v1543, 0.0
        %v1560 = vmax.f32 %v1544, 0.0
        %v1561 = vmax.f32 %v1545, 0.0
        %v1562 = vmax.f32 %v1546, 0.0
        %v1563 = vmax.f32 %v1547, 0.0
        %v1564 = vmax.f32 %v1548, 0.0
        %v1565 = vmax.f32 %v1549, 0.0
        %v1566 = vmax.f32 %v1550, 0.0
        %v1567 = vmax.f32 %v1551, 0.0
        %v1568 = vmax.f32 %v1552, 0.0
        %v1569 = vld [vmem:[%s7] sm:$0xff]
        %v1570 = vld [vmem:[%s7 + $0x8] sm:$0xff]
        %v1571 = vld [vmem:[%s8] sm:$0xff]
        %v1572 = vld [vmem:[%s8 + $0x8] sm:$0xff]
        %1574 = vset.pattern.permute.xlu0 0
        %1575 = vperm.xlu0 %1574, %v1571
        %v1576 = vpop.permute.xlu0 %1575
        %1579 = vset.pattern.permute.xlu0 0
        %1580 = vperm.xlu0 %1579, %v1572
        %v1581 = vpop.permute.xlu0 %1580
        %1583 = vmatprep.subr.mxu0 0.0
        %1584 = vmatpush1.msra.mxu0 %v1553
        %1585 = vmatprep.subr.mxu0 0.0
        %1586 = vmatpush1.msra.mxu0 %v1554
        %1587 = vmatprep.subr.mxu0 0.0
        %1588 = vmatpush1.msra.mxu0 %v1555
        %1589 = vmatprep.subr.mxu0 0.0
        %1590 = vmatpush1.msra.mxu0 %v1556
        %1591 = vmatprep.subr.mxu0 0.0
        %1592 = vmatpush1.msra.mxu0 %v1557
        %1593 = vmatprep.subr.mxu0 0.0
        %1594 = vmatpush1.msra.mxu0 %v1558
        %1595 = vmatprep.subr.mxu0 0.0
        %1596 = vmatpush1.msra.mxu0 %v1559
        %1597 = vmatprep.subr.mxu0 0.0
        %1598 = vmatpush1.msra.mxu0 %v1560
        %1599 = vmatprep.subr.mxu0 0.0
        %1600 = vmatpush1.msra.mxu0 %v1561
        %1601 = vmatprep.subr.mxu0 0.0
        %1602 = vmatpush1.msra.mxu0 %v1562
        %1603 = vmatprep.subr.mxu0 0.0
        %1604 = vmatpush1.msra.mxu0 %v1563
        %1605 = vmatprep.subr.mxu0 0.0
        %1606 = vmatpush1.msra.mxu0 %v1564
        %1607 = vmatprep.subr.mxu0 0.0
        %1608 = vmatpush1.msra.mxu0 %v1565
        %1609 = vmatprep.subr.mxu0 0.0
        %1610 = vmatpush1.msra.mxu0 %v1566
        %1611 = vmatprep.subr.mxu0 0.0
        %1612 = vmatpush1.msra.mxu0 %v1567
        %1613 = vmatprep.subr.mxu0 0.0
        %1614 = vmatpush1.msra.mxu0 %v1568
        %1615 = vmatprep.subr.mxu0 0.0
        %1616 = vmatpush1.msra.mxu0 0.0
        %1617 = vmatprep.subr.mxu0 0.0
        %1618 = vmatpush1.msra.mxu0 0.0
        %1619 = vmatprep.subr.mxu0 0.0
        %1620 = vmatpush1.msra.mxu0 0.0
        %1621 = vmatprep.subr.mxu0 0.0
        %1622 = vmatpush1.msra.mxu0 0.0
        %1623 = vmatprep.subr.mxu0 0.0
        %1624 = vmatpush1.msra.mxu0 0.0
        %1625 = vmatprep.subr.mxu0 0.0
        %1626 = vmatpush1.msra.mxu0 0.0
        %1627 = vmatprep.subr.mxu0 0.0
        %1628 = vmatpush1.msra.mxu0 0.0
        %1629 = vmatprep.subr.mxu0 0.0
        %1630 = vmatpush1.msra.mxu0 0.0
        %1631 = vmatprep.subr.mxu0 0.0
        %1632 = vmatpush1.msra.mxu0 0.0
        %1633 = vmatprep.subr.mxu0 0.0
        %1634 = vmatpush1.msra.mxu0 0.0
        %1635 = vmatprep.subr.mxu0 0.0
        %1636 = vmatpush1.msra.mxu0 0.0
        %1637 = vmatprep.subr.mxu0 0.0
        %1638 = vmatpush1.msra.mxu0 0.0
        %1639 = vmatprep.subr.mxu0 0.0
        %1640 = vmatpush1.msra.mxu0 0.0
        %1641 = vmatprep.subr.mxu0 0.0
        %1642 = vmatpush1.msra.mxu0 0.0
        %1643 = vmatprep.subr.mxu0 0.0
        %1644 = vmatpush1.msra.mxu0 0.0
        %1645 = vmatprep.subr.mxu0 0.0
        %1646 = vmatpush1.msra.mxu0 0.0
        %1647 = vmatprep.mubr.f32.mxu0 0.0
        %1648 = vmatmul.mubr.f32.gmra.mrb[0].mxu0 %v1569
        %v1649 = vpop.f32.mrb[0].mxu0
        %v1650 = vadd.f32 %v1576, %v1649
        %v1651 = vpop.f32.mrb[0].mxu0
        %1652 = vmatprep.mubr.f32.mxu0 0.0
        %1653 = vmatmul.mubr.f32.gmra.mrb[0].mxu0 %v1570
        %v1654 = vpop.f32.mrb[0].mxu0
        %v1655 = vadd.f32 %v1581, %v1654
        %v1656 = vpop.f32.mrb[0].mxu0
        %1657 = vdwg.mxu0
        %v1658 = vmax.f32 %v1650, %v1655
        %v1659 = vrot.slane %v1658, 4
        %v1660 = vmax.f32 %v1658, %v1659
        %v1661 = vrot.slane %v1660, 2
        %v1662 = vmax.f32 %v1660, %v1661
        %v1663 = vrot.slane %v1662, 1
        %v1664 = vmax.f32 %v1662, %v1663
        %v1665 = vsub.f32 %v1650, %v1664
        %v1666 = vsub.f32 %v1655, %v1664
        %v1667 = vmul.f32 %v1665, 1.442695
        %v1668 = vpow.pop %v1667
        %v1669 = vmul.f32 %v1666, 1.442695
        %v1670 = vpow.pop %v1669
        %v1671 = vadd.f32 %v1668, %v1670
        %v1672 = vrot.slane %v1671, 4
        %v1673 = vadd.f32 %v1671, %v1672
        %v1674 = vrot.slane %v1673, 2
        %v1675 = vadd.f32 %v1673, %v1674
        %v1676 = vrot.slane %v1675, 1
        %v1677 = vadd.f32 %v1675, %v1676
        %v1678 = vrcp.pop %v1677
        %v1679 = vmul.f32 %v1668, %v1678
        %v1680 = vmul.f32 %v1670, %v1678
        %1681 = vst [vmem:[%s338] sm:$0xff] %v1679
        %1682 = vst [vmem:[%s338 + $0x8] sm:$0xff] %v1680
        %s1683 = sand.u32 %s226, 1
        %s1684 = scalar_lea.sflag [#allocation4], %s1683
        %s1685 = sand.u32 %s226, 1
        %s1686 = smul.addr %s1685, 16
        %s1687 = scalar_lea.vmem [#allocation5], %s1686
        // Predicated region
        $region61: #{tpu_custom_call.1} parent=55 // pred_check
          %p1688 = pneg %p236
        $region62: #{tpu_custom_call.1} parent=55 // pred_check_branch
          %1690 = sbr.rel (%p1688) target = $region64
        $region63: #{tpu_custom_call.1} parent=55 // pred_region
          %s1692 = ssub.s32 256, 256
          %1693 = vsyncadd %s1684, %s1692
          %s1694 = smul.addr %s24, 2
          %s1695 = smul.addr %s1694, 128
          %s1696 = scalar_lea.hbm %s9, %s1695
          %s1697 = sshll.u32 %s1687, 4
          %s1698 = int_to_ptr.vmem [resolvable:$true] %s1697
          %1703 = dma.vmem_to_hbm [thread:$0]  %s1698, 256, %s1696, %s1684, 128, 128, 8
        $region64: #{tpu_custom_call.1} parent=55 // pred_fallthru
          _
      $region56: #{tpu_custom_call.1} parent=5 // pred_fallthru
        _
      %p1704 = scmp.le.s32.totalorder 2, %s19
      // Predicated region
      $region65: #{tpu_custom_call.1} parent=5 // pred_check
        %p1705 = pneg %p1704
      $region66: #{tpu_custom_call.1} parent=5 // pred_check_branch
        %1707 = sbr.rel (%p1705) target = $region68
      $region67: #{tpu_custom_call.1} parent=5 // pred_region
        %s1708 = ssub.s32 %s19, 2
        // Predicated region
        $region69: #{tpu_custom_call.1} parent=67 // pred_check
          %p1709 = pneg %p242
        $region70: #{tpu_custom_call.1} parent=67 // pred_check_branch
          %1711 = sbr.rel (%p1709) target = $region72
        $region71: #{tpu_custom_call.1} parent=67 // pred_region
          %s1712 = sand.u32 %s227, 1
          %s1713 = scalar_lea.sflag [#allocation4], %s1712
          %s1714 = sand.u32 %s227, 1
          %s1715 = smul.addr %s1714, 16
          %s1716 = scalar_lea.vmem [#allocation5], %s1715
          %1717 = dma.done %s1713, 256
        $region72: #{tpu_custom_call.1} parent=67 // pred_fallthru
          _
      $region68: #{tpu_custom_call.1} parent=5 // pred_fallthru
        _
    $region6: #{tpu_custom_call.1} parent=1 // loop_footer
      %s23 = sadd.s32 1, %s19
    $region7: #{tpu_custom_call.1} parent=1 // loop_footer_branch
      %18 = sbr.rel target = $region3
    $region8: #{tpu_custom_call.1} parent=1 // loop_exit
      _
    %1718 = vsyncpa [#allocation3], 1
    %s1719 = scalar_lea.sflag [#allocation3], 1
    %1720 = vsyncpa %s1719, 1
    %1721 = vsyncpa [#allocation4], 1
    %s1722 = scalar_lea.sflag [#allocation4], 1
    %1723 = vsyncpa %s1722, 1

// kernel: tpu_custom_call.1
$region0: #{tpu_custom_call.1}
  #allocation0 [shape = 'u32[]', space=smem, size = 0x4, offset = 0x4, fixed_abs, tag = 'smem constant byte address 0x4 - core index']
  #allocation1 [shape = 'u32[144,128]{1,0:T(1,128)}', space=vmem, size = 0x12000, scoped, tag = 'internal scratch']
  %s0 = inlined_call_operand.vmem [shape: f32[2,8,128], index: 0, kind: input, shape index: {}]
  %s1 = inlined_call_operand.vmem [shape: f32[128,24], index: 1, kind: input, shape index: {}]
  %s2 = inlined_call_operand.vmem [shape: f32[128,1], index: 2, kind: input, shape index: {}]
  %s3 = inlined_call_operand.hbm [shape: f32[128,128], index: 3, kind: input, shape index: {}]
  %s4 = inlined_call_operand.vmem [shape: f32[1,128], index: 4, kind: input, shape index: {}]
  %s5 = inlined_call_operand.vmem [shape: f32[3,128,128], index: 5, kind: input, shape index: {}]
  %s6 = inlined_call_operand.vmem [shape: f32[128,1], index: 6, kind: input, shape index: {}]
  %s7 = inlined_call_operand.vmem [shape: f32[16,128], index: 7, kind: input, shape index: {}]
  %s8 = inlined_call_operand.vmem [shape: f32[16,1], index: 8, kind: input, shape index: {}]
  %s9 = inlined_call_operand.hbm [shape: f32[2,16,128], index: 9, kind: output, shape index: {}]
  %s10 = sld [smem:[#allocation0]]
  $region73: #{tpu_custom_call.1} parent=0
    _
  %s12 = ssub.s32 1, %s10
  %s13 = scalar_select 0, %s12, %s10
  $region1: #{tpu_custom_call.1} parent=0
    #allocation2 [shape = 'u8[65536]{0}', space=vmem, size = 0x10000, scoped, tag = 'input window, operand 3, single buffered']
    #allocation3 [shape = 's32[2]{0}', space=sflag, size = 0x8, scoped, tag = 'scoped memory for tpu_custom_call.1']
    #allocation4 [shape = 's32[2]{0}', space=sflag, size = 0x8, scoped, tag = 'scoped memory for tpu_custom_call.1']
    #allocation5 [shape = 'u8[16384]{0}', space=vmem, size = 0x4000, scoped, tag = 'output window, operand 0']
    %14 = vsyncpa [#allocation3], 0
    %15 = vsyncpa [#allocation4], 0
    %s16 = scalar_lea.sflag [#allocation4], 1
    %17 = vsyncpa %s16, 0
    loop: start=0, step=1, limit=4
    $region2: #{tpu_custom_call.1} parent=1 // loop_pre_header
      _
    $region3: #{tpu_custom_call.1} parent=1 // loop_header
      %s19 = sphi 0, %s23
      %p20 = scmp.ge.s32.totalorder %s19, 4
      %s29 = sphi 0, %s31
      %s32 = sphi 0, %s29
      %s33 = sphi 0, %s32
      %s49 = sphi 0, %s33
      %s53 = sphi 0, %s53
      %s55 = sphi 0, %s53
      %s56 = sphi 0, %s55
      %s70 = sphi 0, %s56
      %s74 = sphi 0, %s74
      %s76 = sphi 0, %s74
      %s77 = sphi 0, %s76
      %s91 = sphi 0, %s77
      %s95 = sphi 0, %s95
      %s97 = sphi 0, %s95
      %s98 = sphi 0, %s97
      %s112 = sphi 0, %s98
      %s116 = sphi 0, %s116
      %s118 = sphi 0, %s116
      %s119 = sphi 0, %s118
      %s133 = sphi 0, %s119
      %s137 = sphi 0, %s137
      %s139 = sphi 0, %s137
      %s140 = sphi 0, %s139
      %s154 = sphi 0, %s140
      %s158 = sphi 0, %s158
      %s160 = sphi 0, %s158
      %s161 = sphi 0, %s160
      %s175 = sphi 0, %s161
      %s179 = sphi 0, %s179
      %s181 = sphi 0, %s179
      %s182 = sphi 0, %s181
      %s196 = sphi 0, %s182
      %s200 = sphi 0, %s200
      %s202 = sphi 0, %s200
      %s203 = sphi 0, %s202
      %s217 = sphi 0, %s203
      %s223 = sphi 0, %s225
      %s226 = sphi 0, %s223
      %s227 = sphi 0, %s226
      %s243 = sphi 0, %s227
    $region4: #{tpu_custom_call.1} parent=1 // loop_header_branch
      %22 = sbr.rel (%p20) target = $region8
    $region5: #{tpu_custom_call.1} parent=1 // loop_body
      %s24 = ssub.s32 %s19, 1
      %s25 = ssub.s32 %s19, 2
      %s26 = sadd.s32 %s19, 1
      %s27 = ssub.s32 %s19, %s26
      %p28 = scmp.eq.s32.totalorder %s27, 0
      %s30 = sadd.s32 %s29, 1
      %s31 = scalar_select %p28, %s29, %s30
      %p34 = pneg %p28
      %p35 = scmp.eq.s32.totalorder %s19, 1
      %p36 = por %p34, %p35
      %p37 = scmp.ne.s32.totalorder %s29, %s32
      %p38 = scmp.eq.s32.totalorder %s19, 0
      %p39 = por %p37, %p38
      %p40 = scmp.ne.s32.totalorder %s29, %s32
      %p41 = scmp.eq.s32.totalorder %s24, 1
      %p42 = por %p40, %p41
      %p43 = scmp.ne.s32.totalorder %s32, %s33
      %p44 = scmp.eq.s32.totalorder %s24, 0
      %p45 = por %p43, %p44
      %p46 = scmp.ne.s32.totalorder %s32, %s33
      %p47 = scmp.eq.s32.totalorder %s25, 1
      %p48 = por %p46, %p47
      %p50 = scmp.ne.s32.totalorder %s33, %s49
      %p51 = scmp.eq.s32.totalorder %s25, 0
      %p52 = por %p50, %p51
      %s54 = sadd.s32 %s53, 1
      %p57 = scmp.eq.s32.totalorder %s19, 1
      %p58 = scmp.ne.s32.totalorder %s53, %s55
      %p59 = scmp.eq.s32.totalorder %s19, 0
      %p60 = por %p58, %p59
      %p61 = scmp.ne.s32.totalorder %s53, %s55
      %p62 = scmp.eq.s32.totalorder %s24, 1
      %p63 = por %p61, %p62
      %p64 = scmp.ne.s32.totalorder %s55, %s56
      %p65 = scmp.eq.s32.totalorder %s24, 0
      %p66 = por %p64, %p65
      %p67 = scmp.ne.s32.totalorder %s55, %s56
      %p68 = scmp.eq.s32.totalorder %s25, 1
      %p69 = por %p67, %p68
      %p71 = scmp.ne.s32.totalorder %s56, %s70
      %p72 = scmp.eq.s32.totalorder %s25, 0
      %p73 = por %p71, %p72
      %s75 = sadd.s32 %s74, 1
      %p78 = scmp.eq.s32.totalorder %s19, 1
      %p79 = scmp.ne.s32.totalorder %s74, %s76
      %p80 = scmp.eq.s32.totalorder %s19, 0
      %p81 = por %p79, %p80
      %p82 = scmp.ne.s32.totalorder %s74, %s76
      %p83 = scmp.eq.s32.totalorder %s24, 1
      %p84 = por %p82, %p83
      %p85 = scmp.ne.s32.totalorder %s76, %s77
      %p86 = scmp.eq.s32.totalorder %s24, 0
      %p87 = por %p85, %p86
      %p88 = scmp.ne.s32.totalorder %s76, %s77
      %p89 = scmp.eq.s32.totalorder %s25, 1
      %p90 = por %p88, %p89
      %p92 = scmp.ne.s32.totalorder %s77, %s91
      %p93 = scmp.eq.s32.totalorder %s25, 0
      %p94 = por %p92, %p93
      %s96 = sadd.s32 %s95, 1
      %p99 = scmp.eq.s32.totalorder %s19, 1
      %p100 = scmp.ne.s32.totalorder %s95, %s97
      %p101 = scmp.eq.s32.totalorder %s19, 0
      %p102 = por %p100, %p101
      %p103 = scmp.ne.s32.totalorder %s95, %s97
      %p104 = scmp.eq.s32.totalorder %s24, 1
      %p105 = por %p103, %p104
      %p106 = scmp.ne.s32.totalorder %s97, %s98
      %p107 = scmp.eq.s32.totalorder %s24, 0
      %p108 = por %p106, %p107
      %p109 = scmp.ne.s32.totalorder %s97, %s98
      %p110 = scmp.eq.s32.totalorder %s25, 1
      %p111 = por %p109, %p110
      %p113 = scmp.ne.s32.totalorder %s98, %s112
      %p114 = scmp.eq.s32.totalorder %s25, 0
      %p115 = por %p113, %p114
      %s117 = sadd.s32 %s116, 1
      %p120 = scmp.eq.s32.totalorder %s19, 1
      %p121 = scmp.ne.s32.totalorder %s116, %s118
      %p122 = scmp.eq.s32.totalorder %s19, 0
      %p123 = por %p121, %p122
      %p124 = scmp.ne.s32.totalorder %s116, %s118
      %p125 = scmp.eq.s32.totalorder %s24, 1
      %p126 = por %p124, %p125
      %p127 = scmp.ne.s32.totalorder %s118, %s119
      %p128 = scmp.eq.s32.totalorder %s24, 0
      %p129 = por %p127, %p128
      %p130 = scmp.ne.s32.totalorder %s118, %s119
      %p131 = scmp.eq.s32.totalorder %s25, 1
      %p132 = por %p130, %p131
      %p134 = scmp.ne.s32.totalorder %s119, %s133
      %p135 = scmp.eq.s32.totalorder %s25, 0
      %p136 = por %p134, %p135
      %s138 = sadd.s32 %s137, 1
      %p141 = scmp.eq.s32.totalorder %s19, 1
      %p142 = scmp.ne.s32.totalorder %s137, %s139
      %p143 = scmp.eq.s32.totalorder %s19, 0
      %p144 = por %p142, %p143
      %p145 = scmp.ne.s32.totalorder %s137, %s139
      %p146 = scmp.eq.s32.totalorder %s24, 1
      %p147 = por %p145, %p146
      %p148 = scmp.ne.s32.totalorder %s139, %s140
      %p149 = scmp.eq.s32.totalorder %s24, 0
      %p150 = por %p148, %p149
      %p151 = scmp.ne.s32.totalorder %s139, %s140
      %p152 = scmp.eq.s32.totalorder %s25, 1
      %p153 = por %p151, %p152
      %p155 = scmp.ne.s32.totalorder %s140, %s154
      %p156 = scmp.eq.s32.totalorder %s25, 0
      %p157 = por %p155, %p156
      %s159 = sadd.s32 %s158, 1
      %p162 = scmp.eq.s32.totalorder %s19, 1
      %p163 = scmp.ne.s32.totalorder %s158, %s160
      %p164 = scmp.eq.s32.totalorder %s19, 0
      %p165 = por %p163, %p164
      %p166 = scmp.ne.s32.totalorder %s158, %s160
      %p167 = scmp.eq.s32.totalorder %s24, 1
      %p168 = por %p166, %p167
      %p169 = scmp.ne.s32.totalorder %s160, %s161
      %p170 = scmp.eq.s32.totalorder %s24, 0
      %p171 = por %p169, %p170
      %p172 = scmp.ne.s32.totalorder %s160, %s161
      %p173 = scmp.eq.s32.totalorder %s25, 1
      %p174 = por %p172, %p173
      %p176 = scmp.ne.s32.totalorder %s161, %s175
      %p177 = scmp.eq.s32.totalorder %s25, 0
      %p178 = por %p176, %p177
      %s180 = sadd.s32 %s179, 1
      %p183 = scmp.eq.s32.totalorder %s19, 1
      %p184 = scmp.ne.s32.totalorder %s179, %s181
      %p185 = scmp.eq.s32.totalorder %s19, 0
      %p186 = por %p184, %p185
      %p187 = scmp.ne.s32.totalorder %s179, %s181
      %p188 = scmp.eq.s32.totalorder %s24, 1
      %p189 = por %p187, %p188
      %p190 = scmp.ne.s32.totalorder %s181, %s182
      %p191 = scmp.eq.s32.totalorder %s24, 0
      %p192 = por %p190, %p191
      %p193 = scmp.ne.s32.totalorder %s181, %s182
      %p194 = scmp.eq.s32.totalorder %s25, 1
      %p195 = por %p193, %p194
      %p197 = scmp.ne.s32.totalorder %s182, %s196
      %p198 = scmp.eq.s32.totalorder %s25, 0
      %p199 = por %p197, %p198
      %s201 = sadd.s32 %s200, 1
      %p204 = scmp.eq.s32.totalorder %s19, 1
      %p205 = scmp.ne.s32.totalorder %s200, %s202
      %p206 = scmp.eq.s32.totalorder %s19, 0
      %p207 = por %p205, %p206
      %p208 = scmp.ne.s32.totalorder %s200, %s202
      %p209 = scmp.eq.s32.totalorder %s24, 1
      %p210 = por %p208, %p209
      %p211 = scmp.ne.s32.totalorder %s202, %s203
      %p212 = scmp.eq.s32.totalorder %s24, 0
      %p213 = por %p211, %p212
      %p214 = scmp.ne.s32.totalorder %s202, %s203
      %p215 = scmp.eq.s32.totalorder %s25, 1
      %p216 = por %p214, %p215
      %p218 = scmp.ne.s32.totalorder %s203, %s217
      %p219 = scmp.eq.s32.totalorder %s25, 0
      %p220 = por %p218, %p219
      %s221 = ssub.s32 %s19, %s26
      %p222 = scmp.eq.s32.totalorder %s221, 0
      %s224 = sadd.s32 %s223, 1
      %s225 = scalar_select %p222, %s223, %s224
      %p228 = pneg %p222
      %p229 = scmp.eq.s32.totalorder %s19, 1
      %p230 = por %p228, %p229
      %p231 = scmp.ne.s32.totalorder %s223, %s226
      %p232 = scmp.eq.s32.totalorder %s19, 0
      %p233 = por %p231, %p232
      %p234 = scmp.ne.s32.totalorder %s223, %s226
      %p235 = scmp.eq.s32.totalorder %s24, 1
      %p236 = por %p234, %p235
      %p237 = scmp.ne.s32.totalorder %s226, %s227
      %p238 = scmp.eq.s32.totalorder %s24, 0
      %p239 = por %p237, %p238
      %p240 = scmp.ne.s32.totalorder %s226, %s227
      %p241 = scmp.eq.s32.totalorder %s25, 1
      %p242 = por %p240, %p241
      %p244 = scmp.ne.s32.totalorder %s227, %s243
      %p245 = scmp.eq.s32.totalorder %s25, 0
      %p246 = por %p244, %p245
      %p247 = scmp.le.s32.totalorder 1, %s19
      %p248 = scmp.lt.s32.totalorder %s19, 3
      %p249 = pnand %p247, %p248
      %p250 = pneg %p249
      // Predicated region
      $region9: #{tpu_custom_call.1} parent=5 // pred_check
        _
      $region10: #{tpu_custom_call.1} parent=5 // pred_check_branch
        %252 = sbr.rel (%p249) target = $region12
      $region11: #{tpu_custom_call.1} parent=5 // pred_region
        %s253 = ssub.s32 %s19, 1
        // Predicated region
        $region13: #{tpu_custom_call.1} parent=11 // pred_check
          %p254 = pneg %p66
        $region14: #{tpu_custom_call.1} parent=11 // pred_check_branch
          %256 = sbr.rel (%p254) target = $region16
        $region15: #{tpu_custom_call.1} parent=11 // pred_region
          _
        $region16: #{tpu_custom_call.1} parent=11 // pred_fallthru
          _
        // Predicated region
        $region17: #{tpu_custom_call.1} parent=11 // pred_check
          %p257 = pneg %p87
        $region18: #{tpu_custom_call.1} parent=11 // pred_check_branch
          %259 = sbr.rel (%p257) target = $region20
        $region19: #{tpu_custom_call.1} parent=11 // pred_region
          _
        $region20: #{tpu_custom_call.1} parent=11 // pred_fallthru
          _
        // Predicated region
        $region21: #{tpu_custom_call.1} parent=11 // pred_check
          %p260 = pneg %p108
        $region22: #{tpu_custom_call.1} parent=11 // pred_check_branch
          %262 = sbr.rel (%p260) target = $region24
        $region23: #{tpu_custom_call.1} parent=11 // pred_region
          %s264 = ssub.s32 2048, 2048
          %265 = vsyncadd [#allocation3], %s264
          %s266 = sshll.u32 [#allocation2], 4
          %s267 = int_to_ptr.vmem [resolvable:$true] %s266
          %272 = dma.hbm_to_vmem [thread:$0]  %s3, 2048, %s267, [#allocation3], 128, 128, 8
        $region24: #{tpu_custom_call.1} parent=11 // pred_fallthru
          _
        // Predicated region
        $region25: #{tpu_custom_call.1} parent=11 // pred_check
          %p273 = pneg %p129
        $region26: #{tpu_custom_call.1} parent=11 // pred_check_branch
          %275 = sbr.rel (%p273) target = $region28
        $region27: #{tpu_custom_call.1} parent=11 // pred_region
          _
        $region28: #{tpu_custom_call.1} parent=11 // pred_fallthru
          _
        // Predicated region
        $region29: #{tpu_custom_call.1} parent=11 // pred_check
          %p276 = pneg %p150
        $region30: #{tpu_custom_call.1} parent=11 // pred_check_branch
          %278 = sbr.rel (%p276) target = $region32
        $region31: #{tpu_custom_call.1} parent=11 // pred_region
          _
        $region32: #{tpu_custom_call.1} parent=11 // pred_fallthru
          _
        // Predicated region
        $region33: #{tpu_custom_call.1} parent=11 // pred_check
          %p279 = pneg %p171
        $region34: #{tpu_custom_call.1} parent=11 // pred_check_branch
          %281 = sbr.rel (%p279) target = $region36
        $region35: #{tpu_custom_call.1} parent=11 // pred_region
          _
        $region36: #{tpu_custom_call.1} parent=11 // pred_fallthru
          _
        // Predicated region
        $region37: #{tpu_custom_call.1} parent=11 // pred_check
          %p282 = pneg %p192
        $region38: #{tpu_custom_call.1} parent=11 // pred_check_branch
          %284 = sbr.rel (%p282) target = $region40
        $region39: #{tpu_custom_call.1} parent=11 // pred_region
          _
        $region40: #{tpu_custom_call.1} parent=11 // pred_fallthru
          _
        // Predicated region
        $region41: #{tpu_custom_call.1} parent=11 // pred_check
          %p285 = pneg %p213
        $region42: #{tpu_custom_call.1} parent=11 // pred_check_branch
          %287 = sbr.rel (%p285) target = $region44
        $region43: #{tpu_custom_call.1} parent=11 // pred_region
          _
        $region44: #{tpu_custom_call.1} parent=11 // pred_fallthru
          _
      $region12: #{tpu_custom_call.1} parent=5 // pred_fallthru
        _
      %p288 = scmp.lt.s32.totalorder %s19, 2
      // Predicated region
      $region45: #{tpu_custom_call.1} parent=5 // pred_check
        %p289 = pneg %p288
      $region46: #{tpu_custom_call.1} parent=5 // pred_check_branch
        %291 = sbr.rel (%p289) target = $region48
      $region47: #{tpu_custom_call.1} parent=5 // pred_region
        // Predicated region
        $region49: #{tpu_custom_call.1} parent=47 // pred_check
          %p292 = pneg %p39
        $region50: #{tpu_custom_call.1} parent=47 // pred_check_branch
          %294 = sbr.rel (%p292) target = $region52
        $region51: #{tpu_custom_call.1} parent=47 // pred_region
          %p295 = scmp.lt.s32.totalorder %s19, 1
          %s296 = scalar_select %p295, %s19, 1
          %s297 = smul.addr %s296, 8
          %s298 = scalar_lea.vmem %s0, %s297
        $region52: #{tpu_custom_call.1} parent=47 // pred_fallthru
          _
      $region48: #{tpu_custom_call.1} parent=5 // pred_fallthru
        _
      %p299 = scmp.le.s32.totalorder 1, %s19
      %p300 = scmp.lt.s32.totalorder %s19, 3
      %p301 = pnand %p299, %p300
      %p302 = pneg %p301
      // Predicated region
      $region53: #{tpu_custom_call.1} parent=5 // pred_check
        _
      $region54: #{tpu_custom_call.1} parent=5 // pred_check_branch
        %304 = sbr.rel (%p301) target = $region56
      $region55: #{tpu_custom_call.1} parent=5 // pred_region
        %s305 = ssub.s32 %s19, 1
        // Predicated region
        $region57: #{tpu_custom_call.1} parent=55 // pred_check
          %p306 = pneg %p108
        $region58: #{tpu_custom_call.1} parent=55 // pred_check_branch
          %308 = sbr.rel (%p306) target = $region60
        $region59: #{tpu_custom_call.1} parent=55 // pred_region
          %309 = dma.done [#allocation3], 2048
        $region60: #{tpu_custom_call.1} parent=55 // pred_fallthru
          _
        %p310 = scmp.lt.s32.totalorder %s24, 1
        %s311 = scalar_select %p310, %s24, 1
        %s312 = smul.addr %s311, 8
        %s313 = scalar_lea.vmem %s0, %s312
        %p314 = pneg %p45
        %p315 = pneg %p42
        %p316 = pneg %p66
        %p317 = pneg %p63
        %p318 = pneg %p87
        %p319 = pneg %p84
        %p320 = pneg %p108
        %p321 = pneg %p105
        %p322 = pneg %p129
        %p323 = pneg %p126
        %p324 = pneg %p150
        %p325 = pneg %p147
        %p326 = pneg %p171
        %p327 = pneg %p168
        %p328 = pneg %p192
        %p329 = pneg %p189
        %p330 = pneg %p213
        %p331 = pneg %p210
        %p332 = pneg %p239
        %p333 = pneg %p236
        %s334 = sand.u32 %s226, 1
        %s335 = scalar_lea.sflag [#allocation4], %s334
        %s336 = sand.u32 %s226, 1
        %s337 = smul.addr %s336, 16
        %s338 = scalar_lea.vmem [#allocation5], %s337
        %p339 = scmp.lt.s32.totalorder %s24, 1
        %s340 = scalar_select %p339, %s24, 1
        %s341 = smul.addr %s340, 8
        %s342 = scalar_lea.vmem %s0, %s341
        %v343 = vlaneseq
        %v344 = vand.u32 %v343, 127
        %vm345 = vcmp.lt.s32.totalorder %v344, 0
        %v346 = vsub.s32 0, %v344
        %v347 = vsel %vm345, %v346, %v344
        %v348 = vshrl.u32 %v347, 4
        %v349 = vand.u32 %v347, 15
        %v350 = vsub.s32 0, %v349
        %v351 = vsel %vm345, %v350, %v349
        %vm352 = vcmp.ne.s32.totalorder %v351, 0
        %vm353 = vcmp.lt.s32.totalorder %v351, 0
        %vm354 = vmand %vm353, %vm352
        %v355 = vadd.s32 %v351, 16
        %v356 = vsel %vm354, %v355, %v351
        %vm357 = vcmp.ne.s32.totalorder %v356, 0
        %v358 = vsel %vm357, 1, 0
        %v359 = vcvt.s32.f32 %v358
        %vm360 = vcmp.ne.s32.totalorder %v356, 15
        %v361 = vsel %vm360, 1, 0
        %v362 = vcvt.s32.f32 %v361
        %v363 = vld [vmem:[%s342] sm:$0xff]
        %364 = vrot.lane.b32.xlu0 %v363, 1
        %v365 = vpop.permute.xlu0 %364
        %v366 = vmul.f32 %v365, %v359
        %367 = vrot.lane.b32.xlu0 %v363, 127
        %v368 = vpop.permute.xlu0 %367
        %v369 = vmul.f32 %v368, %v362
        %v370 = vld [vmem:[%s1] sm:$0xff]
        %v371 = vld [vmem:[%s1 + $0x8] sm:$0xff]
        %v372 = vld [vmem:[%s1 + $0x10] sm:$0xff]
        %v373 = vld [vmem:[%s1 + $0x18] sm:$0xff]
        %v374 = vld [vmem:[%s1 + $0x20] sm:$0xff]
        %v375 = vld [vmem:[%s1 + $0x28] sm:$0xff]
        %v376 = vld [vmem:[%s1 + $0x30] sm:$0xff]
        %v377 = vld [vmem:[%s1 + $0x38] sm:$0xff]
        %v378 = vld [vmem:[%s1 + $0x40] sm:$0xff]
        %v379 = vld [vmem:[%s1 + $0x48] sm:$0xff]
        %v380 = vld [vmem:[%s1 + $0x50] sm:$0xff]
        %v381 = vld [vmem:[%s1 + $0x58] sm:$0xff]
        %v382 = vld [vmem:[%s1 + $0x60] sm:$0xff]
        %v383 = vld [vmem:[%s1 + $0x68] sm:$0xff]
        %v384 = vld [vmem:[%s1 + $0x70] sm:$0xff]
        %v385 = vld [vmem:[%s1 + $0x78] sm:$0xff]
        %v386 = vld [vmem:[%s2] sm:$0xff]
        %v387 = vld [vmem:[%s2 + $0x8] sm:$0xff]
        %v388 = vld [vmem:[%s2 + $0x10] sm:$0xff]
        %v389 = vld [vmem:[%s2 + $0x18] sm:$0xff]
        %v390 = vld [vmem:[%s2 + $0x20] sm:$0xff]
        %v391 = vld [vmem:[%s2 + $0x28] sm:$0xff]
        %v392 = vld [vmem:[%s2 + $0x30] sm:$0xff]
        %v393 = vld [vmem:[%s2 + $0x38] sm:$0xff]
        %v394 = vld [vmem:[%s2 + $0x40] sm:$0xff]
        %v395 = vld [vmem:[%s2 + $0x48] sm:$0xff]
        %v396 = vld [vmem:[%s2 + $0x50] sm:$0xff]
        %v397 = vld [vmem:[%s2 + $0x58] sm:$0xff]
        %v398 = vld [vmem:[%s2 + $0x60] sm:$0xff]
        %v399 = vld [vmem:[%s2 + $0x68] sm:$0xff]
        %v400 = vld [vmem:[%s2 + $0x70] sm:$0xff]
        %v401 = vld [vmem:[%s2 + $0x78] sm:$0xff]
        %403 = vset.pattern.permute.xlu0 0
        %404 = vperm.xlu0 %403, %v386
        %v405 = vpop.permute.xlu0 %404
        %408 = vset.pattern.permute.xlu0 0
        %409 = vperm.xlu0 %408, %v387
        %v410 = vpop.permute.xlu0 %409
        %413 = vset.pattern.permute.xlu0 0
        %414 = vperm.xlu0 %413, %v388
        %v415 = vpop.permute.xlu0 %414
        %418 = vset.pattern.permute.xlu0 0
        %419 = vperm.xlu0 %418, %v389
        %v420 = vpop.permute.xlu0 %419
        %423 = vset.pattern.permute.xlu0 0
        %424 = vperm.xlu0 %423, %v390
        %v425 = vpop.permute.xlu0 %424
        %428 = vset.pattern.permute.xlu0 0
        %429 = vperm.xlu0 %428, %v391
        %v430 = vpop.permute.xlu0 %429
        %433 = vset.pattern.permute.xlu0 0
        %434 = vperm.xlu0 %433, %v392
        %v435 = vpop.permute.xlu0 %434
        %438 = vset.pattern.permute.xlu0 0
        %439 = vperm.xlu0 %438, %v393
        %v440 = vpop.permute.xlu0 %439
        %443 = vset.pattern.permute.xlu0 0
        %444 = vperm.xlu0 %443, %v394
        %v445 = vpop.permute.xlu0 %444
        %448 = vset.pattern.permute.xlu0 0
        %449 = vperm.xlu0 %448, %v395
        %v450 = vpop.permute.xlu0 %449
        %453 = vset.pattern.permute.xlu0 0
        %454 = vperm.xlu0 %453, %v396
        %v455 = vpop.permute.xlu0 %454
        %458 = vset.pattern.permute.xlu0 0
        %459 = vperm.xlu0 %458, %v397
        %v460 = vpop.permute.xlu0 %459
        %463 = vset.pattern.permute.xlu0 0
        %464 = vperm.xlu0 %463, %v398
        %v465 = vpop.permute.xlu0 %464
        %468 = vset.pattern.permute.xlu0 0
        %469 = vperm.xlu0 %468, %v399
        %v470 = vpop.permute.xlu0 %469
        %473 = vset.pattern.permute.xlu0 0
        %474 = vperm.xlu0 %473, %v400
        %v475 = vpop.permute.xlu0 %474
        %478 = vset.pattern.permute.xlu0 0
        %479 = vperm.xlu0 %478, %v401
        %v480 = vpop.permute.xlu0 %479
        %vm482 = vcmask 195584
        %v484 = vsel %vm482, %v370, 0
        %v487 = vsel %vm482, %v371, 0
        %v490 = vsel %vm482, %v372, 0
        %v493 = vsel %vm482, %v373, 0
        %v496 = vsel %vm482, %v374, 0
        %v499 = vsel %vm482, %v375, 0
        %v502 = vsel %vm482, %v376, 0
        %v505 = vsel %vm482, %v377, 0
        %v508 = vsel %vm482, %v378, 0
        %v511 = vsel %vm482, %v379, 0
        %v514 = vsel %vm482, %v380, 0
        %v517 = vsel %vm482, %v381, 0
        %v520 = vsel %vm482, %v382, 0
        %v523 = vsel %vm482, %v383, 0
        %v526 = vsel %vm482, %v384, 0
        %v529 = vsel %vm482, %v385, 0
        %531 = vmatprep.subr.mxu0 0.0
        %532 = vmatpush1.msra.mxu0 %v366
        %533 = vmatprep.subr.mxu0 0.0
        %534 = vmatpush1.msra.mxu0 %v363
        %535 = vmatprep.subr.mxu0 0.0
        %536 = vmatpush1.msra.mxu0 %v369
        %537 = vmatprep.subr.mxu0 0.0
        %538 = vmatpush1.msra.mxu0 0.0
        %539 = vmatprep.subr.mxu0 0.0
        %540 = vmatpush1.msra.mxu0 0.0
        %541 = vmatprep.subr.mxu0 0.0
        %542 = vmatpush1.msra.mxu0 0.0
        %543 = vmatprep.subr.mxu0 0.0
        %544 = vmatpush1.msra.mxu0 0.0
        %545 = vmatprep.subr.mxu0 0.0
        %546 = vmatpush1.msra.mxu0 0.0
        %547 = vmatprep.subr.mxu0 0.0
        %548 = vmatpush1.msra.mxu0 0.0
        %549 = vmatprep.subr.mxu0 0.0
        %550 = vmatpush1.msra.mxu0 0.0
        %551 = vmatprep.subr.mxu0 0.0
        %552 = vmatpush1.msra.mxu0 0.0
        %553 = vmatprep.subr.mxu0 0.0
        %554 = vmatpush1.msra.mxu0 0.0
        %555 = vmatprep.subr.mxu0 0.0
        %556 = vmatpush1.msra.mxu0 0.0
        %557 = vmatprep.subr.mxu0 0.0
        %558 = vmatpush1.msra.mxu0 0.0
        %559 = vmatprep.subr.mxu0 0.0
        %560 = vmatpush1.msra.mxu0 0.0
        %561 = vmatprep.subr.mxu0 0.0
        %562 = vmatpush1.msra.mxu0 0.0
        %563 = vmatprep.subr.mxu0 0.0
        %564 = vmatpush1.msra.mxu0 0.0
        %565 = vmatprep.subr.mxu0 0.0
        %566 = vmatpush1.msra.mxu0 0.0
        %567 = vmatprep.subr.mxu0 0.0
        %568 = vmatpush1.msra.mxu0 0.0
        %569 = vmatprep.subr.mxu0 0.0
        %570 = vmatpush1.msra.mxu0 0.0
        %571 = vmatprep.subr.mxu0 0.0
        %572 = vmatpush1.msra.mxu0 0.0
        %573 = vmatprep.subr.mxu0 0.0
        %574 = vmatpush1.msra.mxu0 0.0
        %575 = vmatprep.subr.mxu0 0.0
        %576 = vmatpush1.msra.mxu0 0.0
        %577 = vmatprep.subr.mxu0 0.0
        %578 = vmatpush1.msra.mxu0 0.0
        %579 = vmatprep.subr.mxu0 0.0
        %580 = vmatpush1.msra.mxu0 0.0
        %581 = vmatprep.subr.mxu0 0.0
        %582 = vmatpush1.msra.mxu0 0.0
        %583 = vmatprep.subr.mxu0 0.0
        %584 = vmatpush1.msra.mxu0 0.0
        %585 = vmatprep.subr.mxu0 0.0
        %586 = vmatpush1.msra.mxu0 0.0
        %587 = vmatprep.subr.mxu0 0.0
        %588 = vmatpush1.msra.mxu0 0.0
        %589 = vmatprep.subr.mxu0 0.0
        %590 = vmatpush1.msra.mxu0 0.0
        %591 = vmatprep.subr.mxu0 0.0
        %592 = vmatpush1.msra.mxu0 0.0
        %593 = vmatprep.subr.mxu0 0.0
        %594 = vmatpush1.msra.mxu0 0.0
        %595 = vmatprep.mubr.f32.mxu0 0.0
        %596 = vmatmul.mubr.f32.gmra.mrb[0].mxu0 %v484
        %v597 = vpop.f32.mrb[0].mxu0
        %v598 = vadd.f32 %v405, %v597
        %v599 = vpop.f32.mrb[0].mxu0
        %600 = vmatprep.mubr.f32.mxu0 0.0
        %601 = vmatmul.mubr.f32.gmra.mrb[0].mxu0 %v487
        %v602 = vpop.f32.mrb[0].mxu0
        %v603 = vadd.f32 %v410, %v602
        %v604 = vpop.f32.mrb[0].mxu0
        %605 = vmatprep.mubr.f32.mxu0 0.0
        %606 = vmatmul.mubr.f32.gmra.mrb[0].mxu0 %v490
        %v607 = vpop.f32.mrb[0].mxu0
        %v608 = vadd.f32 %v415, %v607
        %v609 = vpop.f32.mrb[0].mxu0
        %610 = vmatprep.mubr.f32.mxu0 0.0
        %611 = vmatmul.mubr.f32.gmra.mrb[0].mxu0 %v493
        %v612 = vpop.f32.mrb[0].mxu0
        %v613 = vadd.f32 %v420, %v612
        %v614 = vpop.f32.mrb[0].mxu0
        %615 = vmatprep.mubr.f32.mxu0 0.0
        %616 = vmatmul.mubr.f32.gmra.mrb[0].mxu0 %v496
        %v617 = vpop.f32.mrb[0].mxu0
        %v618 = vadd.f32 %v425, %v617
        %v619 = vpop.f32.mrb[0].mxu0
        %620 = vmatprep.mubr.f32.mxu0 0.0
        %621 = vmatmul.mubr.f32.gmra.mrb[0].mxu0 %v499
        %v622 = vpop.f32.mrb[0].mxu0
        %v623 = vadd.f32 %v430, %v622
        %v624 = vpop.f32.mrb[0].mxu0
        %625 = vmatprep.mubr.f32.mxu0 0.0
        %626 = vmatmul.mubr.f32.gmra.mrb[0].mxu0 %v502
        %v627 = vpop.f32.mrb[0].mxu0
        %v628 = vadd.f32 %v435, %v627
        %v629 = vpop.f32.mrb[0].mxu0
        %630 = vmatprep.mubr.f32.mxu0 0.0
        %631 = vmatmul.mubr.f32.gmra.mrb[0].mxu0 %v505
        %v632 = vpop.f32.mrb[0].mxu0
        %v633 = vadd.f32 %v440, %v632
        %v634 = vpop.f32.mrb[0].mxu0
        %635 = vmatprep.mubr.f32.mxu0 0.0
        %636 = vmatmul.mubr.f32.gmra.mrb[0].mxu0 %v508
        %v637 = vpop.f32.mrb[0].mxu0
        %v638 = vadd.f32 %v445, %v637
        %v639 = vpop.f32.mrb[0].mxu0
        %640 = vmatprep.mubr.f32.mxu0 0.0
        %641 = vmatmul.mubr.f32.gmra.mrb[0].mxu0 %v511
        %v642 = vpop.f32.mrb[0].mxu0
        %v643 = vadd.f32 %v450, %v642
        %v644 = vpop.f32.mrb[0].mxu0
        %645 = vmatprep.mubr.f32.mxu0 0.0
        %646 = vmatmul.mubr.f32.gmra.mrb[0].mxu0 %v514
        %v647 = vpop.f32.mrb[0].mxu0
        %v648 = vadd.f32 %v455, %v647
        %v649 = vpop.f32.mrb[0].mxu0
        %650 = vmatprep.mubr.f32.mxu0 0.0
        %651 = vmatmul.mubr.f32.gmra.mrb[0].mxu0 %v517
        %v652 = vpop.f32.mrb[0].mxu0
        %v653 = vadd.f32 %v460, %v652
        %v654 = vpop.f32.mrb[0].mxu0
        %655 = vmatprep.mubr.f32.mxu0 0.0
        %656 = vmatmul.mubr.f32.gmra.mrb[0].mxu0 %v520
        %v657 = vpop.f32.mrb[0].mxu0
        %v658 = vadd.f32 %v465, %v657
        %v659 = vpop.f32.mrb[0].mxu0
        %660 = vmatprep.mubr.f32.mxu0 0.0
        %661 = vmatmul.mubr.f32.gmra.mrb[0].mxu0 %v523
        %v662 = vpop.f32.mrb[0].mxu0
        %v663 = vadd.f32 %v470, %v662
        %v664 = vpop.f32.mrb[0].mxu0
        %665 = vmatprep.mubr.f32.mxu0 0.0
        %666 = vmatmul.mubr.f32.gmra.mrb[0].mxu0 %v526
        %v667 = vpop.f32.mrb[0].mxu0
        %v668 = vadd.f32 %v475, %v667
        %v669 = vpop.f32.mrb[0].mxu0
        %670 = vmatprep.mubr.f32.mxu0 0.0
        %671 = vmatmul.mubr.f32.gmra.mrb[0].mxu0 %v529
        %v672 = vpop.f32.mrb[0].mxu0
        %v673 = vadd.f32 %v480, %v672
        %v674 = vpop.f32.mrb[0].mxu0
        %675 = vdwg.mxu0
        %v676 = vld [vmem:[#allocation2] sm:$0xff]
        %v677 = vld [vmem:[#allocation2 + $0x8] sm:$0xff]
        %v678 = vld [vmem:[#allocation2 + $0x10] sm:$0xff]
        %v679 = vld [vmem:[#allocation2 + $0x18] sm:$0xff]
        %v680 = vld [vmem:[#allocation2 + $0x20] sm:$0xff]
        %v681 = vld [vmem:[#allocation2 + $0x28] sm:$0xff]
        %v682 = vld [vmem:[#allocation2 + $0x30] sm:$0xff]
        %v683 = vld [vmem:[#allocation2 + $0x38] sm:$0xff]
        %v684 = vld [vmem:[#allocation2 + $0x40] sm:$0xff]
        %v685 = vld [vmem:[#allocation2 + $0x48] sm:$0xff]
        %v686 = vld [vmem:[#allocation2 + $0x50] sm:$0xff]
        %v687 = vld [vmem:[#allocation2 + $0x58] sm:$0xff]
        %v688 = vld [vmem:[#allocation2 + $0x60] sm:$0xff]
        %v689 = vld [vmem:[#allocation2 + $0x68] sm:$0xff]
        %v690 = vld [vmem:[#allocation2 + $0x70] sm:$0xff]
        %v691 = vld [vmem:[#allocation2 + $0x78] sm:$0xff]
        %v692 = vld [vmem:[%s4] sm:$0x1]
        %v694 = vlaneseq
        %v695 = vshrl.u32 %v694, 7
        %v696 = vsub.s32 0, %v695
        %v697 = vrot.slane %v692, %v696
        %699 = vmatprep.subr.mxu0 0.0
        %700 = vmatpush1.msra.mxu0 %v676
        %701 = vmatprep.subr.mxu0 0.0
        %702 = vmatpush1.msra.mxu0 %v677
        %703 = vmatprep.subr.mxu0 0.0
        %704 = vmatpush1.msra.mxu0 %v678
        %705 = vmatprep.subr.mxu0 0.0
        %706 = vmatpush1.msra.mxu0 %v679
        %707 = vmatprep.subr.mxu0 0.0
        %708 = vmatpush1.msra.mxu0 %v680
        %709 = vmatprep.subr.mxu0 0.0
        %710 = vmatpush1.msra.mxu0 %v681
        %711 = vmatprep.subr.mxu0 0.0
        %712 = vmatpush1.msra.mxu0 %v682
        %713 = vmatprep.subr.mxu0 0.0
        %714 = vmatpush1.msra.mxu0 %v683
        %715 = vmatprep.subr.mxu0 0.0
        %716 = vmatpush1.msra.mxu0 %v684
        %717 = vmatprep.subr.mxu0 0.0
        %718 = vmatpush1.msra.mxu0 %v685
        %719 = vmatprep.subr.mxu0 0.0
        %720 = vmatpush1.msra.mxu0 %v686
        %721 = vmatprep.subr.mxu0 0.0
        %722 = vmatpush1.msra.mxu0 %v687
        %723 = vmatprep.subr.mxu0 0.0
        %724 = vmatpush1.msra.mxu0 %v688
        %725 = vmatprep.subr.mxu0 0.0
        %726 = vmatpush1.msra.mxu0 %v689
        %727 = vmatprep.subr.mxu0 0.0
        %728 = vmatpush1.msra.mxu0 %v690
        %729 = vmatprep.subr.mxu0 0.0
        %730 = vmatpush1.msra.mxu0 %v691
        %731 = vmatprep.subr.mxu0 0.0
        %732 = vmatpush1.msra.mxu0 0.0
        %733 = vmatprep.subr.mxu0 0.0
        %734 = vmatpush1.msra.mxu0 0.0
        %735 = vmatprep.subr.mxu0 0.0
        %736 = vmatpush1.msra.mxu0 0.0
        %737 = vmatprep.subr.mxu0 0.0
        %738 = vmatpush1.msra.mxu0 0.0
        %739 = vmatprep.subr.mxu0 0.0
        %740 = vmatpush1.msra.mxu0 0.0
        %741 = vmatprep.subr.mxu0 0.0
        %742 = vmatpush1.msra.mxu0 0.0
        %743 = vmatprep.subr.mxu0 0.0
        %744 = vmatpush1.msra.mxu0 0.0
        %745 = vmatprep.subr.mxu0 0.0
        %746 = vmatpush1.msra.mxu0 0.0
        %747 = vmatprep.subr.mxu0 0.0
        %748 = vmatpush1.msra.mxu0 0.0
        %749 = vmatprep.subr.mxu0 0.0
        %750 = vmatpush1.msra.mxu0 0.0
        %751 = vmatprep.subr.mxu0 0.0
        %752 = vmatpush1.msra.mxu0 0.0
        %753 = vmatprep.subr.mxu0 0.0
        %754 = vmatpush1.msra.mxu0 0.0
        %755 = vmatprep.subr.mxu0 0.0
        %756 = vmatpush1.msra.mxu0 0.0
        %757 = vmatprep.subr.mxu0 0.0
        %758 = vmatpush1.msra.mxu0 0.0
        %759 = vmatprep.subr.mxu0 0.0
        %760 = vmatpush1.msra.mxu0 0.0
        %761 = vmatprep.subr.mxu0 0.0
        %762 = vmatpush1.msra.mxu0 0.0
        %763 = vmatprep.mubr.f32.mxu0 0.0
        %764 = vmatmul.mubr.f32.gmra.mrb[0].mxu0 %v598
        %v765 = vpop.f32.mrb[0].mxu0
        %v766 = vadd.f32 %v697, %v765
        %v767 = vpop.f32.mrb[0].mxu0
        %768 = vmatprep.mubr.f32.mxu0 0.0
        %769 = vmatmul.mubr.f32.gmra.mrb[0].mxu0 %v603
        %v770 = vpop.f32.mrb[0].mxu0
        %v771 = vadd.f32 %v697, %v770
        %v772 = vpop.f32.mrb[0].mxu0
        %773 = vmatprep.mubr.f32.mxu0 0.0
        %774 = vmatmul.mubr.f32.gmra.mrb[0].mxu0 %v608
        %v775 = vpop.f32.mrb[0].mxu0
        %v776 = vadd.f32 %v697, %v775
        %v777 = vpop.f32.mrb[0].mxu0
        %778 = vmatprep.mubr.f32.mxu0 0.0
        %779 = vmatmul.mubr.f32.gmra.mrb[0].mxu0 %v613
        %v780 = vpop.f32.mrb[0].mxu0
        %v781 = vadd.f32 %v697, %v780
        %v782 = vpop.f32.mrb[0].mxu0
        %783 = vmatprep.mubr.f32.mxu0 0.0
        %784 = vmatmul.mubr.f32.gmra.mrb[0].mxu0 %v618
        %v785 = vpop.f32.mrb[0].mxu0
        %v786 = vadd.f32 %v697, %v785
        %v787 = vpop.f32.mrb[0].mxu0
        %788 = vmatprep.mubr.f32.mxu0 0.0
        %789 = vmatmul.mubr.f32.gmra.mrb[0].mxu0 %v623
        %v790 = vpop.f32.mrb[0].mxu0
        %v791 = vadd.f32 %v697, %v790
        %v792 = vpop.f32.mrb[0].mxu0
        %793 = vmatprep.mubr.f32.mxu0 0.0
        %794 = vmatmul.mubr.f32.gmra.mrb[0].mxu0 %v628
        %v795 = vpop.f32.mrb[0].mxu0
        %v796 = vadd.f32 %v697, %v795
        %v797 = vpop.f32.mrb[0].mxu0
        %798 = vmatprep.mubr.f32.mxu0 0.0
        %799 = vmatmul.mubr.f32.gmra.mrb[0].mxu0 %v633
        %v800 = vpop.f32.mrb[0].mxu0
        %v801 = vadd.f32 %v697, %v800
        %v802 = vpop.f32.mrb[0].mxu0
        %803 = vmatprep.mubr.f32.mxu0 0.0
        %804 = vmatmul.mubr.f32.gmra.mrb[0].mxu0 %v638
        %v805 = vpop.f32.mrb[0].mxu0
        %v806 = vadd.f32 %v697, %v805
        %v807 = vpop.f32.mrb[0].mxu0
        %808 = vmatprep.mubr.f32.mxu0 0.0
        %809 = vmatmul.mubr.f32.gmra.mrb[0].mxu0 %v643
        %v810 = vpop.f32.mrb[0].mxu0
        %v811 = vadd.f32 %v697, %v810
        %v812 = vpop.f32.mrb[0].mxu0
        %813 = vmatprep.mubr.f32.mxu0 0.0
        %814 = vmatmul.mubr.f32.gmra.mrb[0].mxu0 %v648
        %v815 = vpop.f32.mrb[0].mxu0
        %v816 = vadd.f32 %v697, %v815
        %v817 = vpop.f32.mrb[0].mxu0
        %818 = vmatprep.mubr.f32.mxu0 0.0
        %819 = vmatmul.mubr.f32.gmra.mrb[0].mxu0 %v653
        %v820 = vpop.f32.mrb[0].mxu0
        %v821 = vadd.f32 %v697, %v820
        %v822 = vpop.f32.mrb[0].mxu0
        %823 = vmatprep.mubr.f32.mxu0 0.0
        %824 = vmatmul.mubr.f32.gmra.mrb[0].mxu0 %v658
        %v825 = vpop.f32.mrb[0].mxu0
        %v826 = vadd.f32 %v697, %v825
        %v827 = vpop.f32.mrb[0].mxu0
        %828 = vmatprep.mubr.f32.mxu0 0.0
        %829 = vmatmul.mubr.f32.gmra.mrb[0].mxu0 %v663
        %v830 = vpop.f32.mrb[0].mxu0
        %v831 = vadd.f32 %v697, %v830
        %v832 = vpop.f32.mrb[0].mxu0
        %833 = vmatprep.mubr.f32.mxu0 0.0
        %834 = vmatmul.mubr.f32.gmra.mrb[0].mxu0 %v668
        %v835 = vpop.f32.mrb[0].mxu0
        %v836 = vadd.f32 %v697, %v835
        %v837 = vpop.f32.mrb[0].mxu0
        %838 = vmatprep.mubr.f32.mxu0 0.0
        %839 = vmatmul.mubr.f32.gmra.mrb[0].mxu0 %v673
        %v840 = vpop.f32.mrb[0].mxu0
        %v841 = vadd.f32 %v697, %v840
        %v842 = vpop.f32.mrb[0].mxu0
        %843 = vdwg.mxu0
        %844 = vrot.lane.b32.xlu0 %v766, 1
        %v845 = vpop.permute.xlu0 %844
        %846 = vrot.lane.b32.xlu0 %v771, 1
        %v847 = vpop.permute.xlu0 %846
        %848 = vrot.lane.b32.xlu0 %v776, 1
        %v849 = vpop.permute.xlu0 %848
        %850 = vrot.lane.b32.xlu0 %v781, 1
        %v851 = vpop.permute.xlu0 %850
        %852 = vrot.lane.b32.xlu0 %v786, 1
        %v853 = vpop.permute.xlu0 %852
        %854 = vrot.lane.b32.xlu0 %v791, 1
        %v855 = vpop.permute.xlu0 %854
        %856 = vrot.lane.b32.xlu0 %v796, 1
        %v857 = vpop.permute.xlu0 %856
        %858 = vrot.lane.b32.xlu0 %v801, 1
        %v859 = vpop.permute.xlu0 %858
        %860 = vrot.lane.b32.xlu0 %v806, 1
        %v861 = vpop.permute.xlu0 %860
        %862 = vrot.lane.b32.xlu0 %v811, 1
        %v863 = vpop.permute.xlu0 %862
        %864 = vrot.lane.b32.xlu0 %v816, 1
        %v865 = vpop.permute.xlu0 %864
        %866 = vrot.lane.b32.xlu0 %v821, 1
        %v867 = vpop.permute.xlu0 %866
        %868 = vrot.lane.b32.xlu0 %v826, 1
        %v869 = vpop.permute.xlu0 %868
        %870 = vrot.lane.b32.xlu0 %v831, 1
        %v871 = vpop.permute.xlu0 %870
        %872 = vrot.lane.b32.xlu0 %v836, 1
        %v873 = vpop.permute.xlu0 %872
        %874 = vrot.lane.b32.xlu0 %v841, 1
        %v875 = vpop.permute.xlu0 %874
        %v876 = vmul.f32 %v845, %v359
        %v877 = vmul.f32 %v847, %v359
        %v878 = vmul.f32 %v849, %v359
        %v879 = vmul.f32 %v851, %v359
        %v880 = vmul.f32 %v853, %v359
        %v881 = vmul.f32 %v855, %v359
        %v882 = vmul.f32 %v857, %v359
        %v883 = vmul.f32 %v859, %v359
        %v884 = vmul.f32 %v861, %v359
        %v885 = vmul.f32 %v863, %v359
        %v886 = vmul.f32 %v865, %v359
        %v887 = vmul.f32 %v867, %v359
        %v888 = vmul.f32 %v869, %v359
        %v889 = vmul.f32 %v871, %v359
        %v890 = vmul.f32 %v873, %v359
        %v891 = vmul.f32 %v875, %v359
        %892 = vrot.lane.b32.xlu0 %v766, 127
        %v893 = vpop.permute.xlu0 %892
        %894 = vrot.lane.b32.xlu0 %v771, 127
        %v895 = vpop.permute.xlu0 %894
        %896 = vrot.lane.b32.xlu0 %v776, 127
        %v897 = vpop.permute.xlu0 %896
        %898 = vrot.lane.b32.xlu0 %v781, 127
        %v899 = vpop.permute.xlu0 %898
        %900 = vrot.lane.b32.xlu0 %v786, 127
        %v901 = vpop.permute.xlu0 %900
        %902 = vrot.lane.b32.xlu0 %v791, 127
        %v903 = vpop.permute.xlu0 %902
        %904 = vrot.lane.b32.xlu0 %v796, 127
        %v905 = vpop.permute.xlu0 %904
        %906 = vrot.lane.b32.xlu0 %v801, 127
        %v907 = vpop.permute.xlu0 %906
        %908 = vrot.lane.b32.xlu0 %v806, 127
        %v909 = vpop.permute.xlu0 %908
        %910 = vrot.lane.b32.xlu0 %v811, 127
        %v911 = vpop.permute.xlu0 %910
        %912 = vrot.lane.b32.xlu0 %v816, 127
        %v913 = vpop.permute.xlu0 %912
        %914 = vrot.lane.b32.xlu0 %v821, 127
        %v915 = vpop.permute.xlu0 %914
        %916 = vrot.lane.b32.xlu0 %v826, 127
        %v917 = vpop.permute.xlu0 %916
        %918 = vrot.lane.b32.xlu0 %v831, 127
        %v919 = vpop.permute.xlu0 %918
        %920 = vrot.lane.b32.xlu0 %v836, 127
        %v921 = vpop.permute.xlu0 %920
        %922 = vrot.lane.b32.xlu0 %v841, 127
        %v923 = vpop.permute.xlu0 %922
        %v924 = vmul.f32 %v893, %v362
        %v925 = vmul.f32 %v895, %v362
        %v926 = vmul.f32 %v897, %v362
        %v927 = vmul.f32 %v899, %v362
        %v928 = vmul.f32 %v901, %v362
        %v929 = vmul.f32 %v903, %v362
        %v930 = vmul.f32 %v905, %v362
        %v931 = vmul.f32 %v907, %v362
        %v932 = vmul.f32 %v909, %v362
        %v933 = vmul.f32 %v911, %v362
        %v934 = vmul.f32 %v913, %v362
        %v935 = vmul.f32 %v915, %v362
        %v936 = vmul.f32 %v917, %v362
        %v937 = vmul.f32 %v919, %v362
        %v938 = vmul.f32 %v921, %v362
        %v939 = vmul.f32 %v923, %v362
        %v940 = vld [vmem:[%s5] sm:$0xff]
        %v941 = vld [vmem:[%s5 + $0x8] sm:$0xff]
        %v942 = vld [vmem:[%s5 + $0x10] sm:$0xff]
        %v943 = vld [vmem:[%s5 + $0x18] sm:$0xff]
        %v944 = vld [vmem:[%s5 + $0x20] sm:$0xff]
        %v945 = vld [vmem:[%s5 + $0x28] sm:$0xff]
        %v946 = vld [vmem:[%s5 + $0x30] sm:$0xff]
        %v947 = vld [vmem:[%s5 + $0x38] sm:$0xff]
        %v948 = vld [vmem:[%s5 + $0x40] sm:$0xff]
        %v949 = vld [vmem:[%s5 + $0x48] sm:$0xff]
        %v950 = vld [vmem:[%s5 + $0x50] sm:$0xff]
        %v951 = vld [vmem:[%s5 + $0x58] sm:$0xff]
        %v952 = vld [vmem:[%s5 + $0x60] sm:$0xff]
        %v953 = vld [vmem:[%s5 + $0x68] sm:$0xff]
        %v954 = vld [vmem:[%s5 + $0x70] sm:$0xff]
        %v955 = vld [vmem:[%s5 + $0x78] sm:$0xff]
        %s956 = scalar_lea.vmem %s5, 128
        %v957 = vld [vmem:[%s956] sm:$0xff]
        %v958 = vld [vmem:[%s956 + $0x8] sm:$0xff]
        %v959 = vld [vmem:[%s956 + $0x10] sm:$0xff]
        %v960 = vld [vmem:[%s956 + $0x18] sm:$0xff]
        %v961 = vld [vmem:[%s956 + $0x20] sm:$0xff]
        %v962 = vld [vmem:[%s956 + $0x28] sm:$0xff]
        %v963 = vld [vmem:[%s956 + $0x30] sm:$0xff]
        %v964 = vld [vmem:[%s956 + $0x38] sm:$0xff]
        %v965 = vld [vmem:[%s956 + $0x40] sm:$0xff]
        %v966 = vld [vmem:[%s956 + $0x48] sm:$0xff]
        %v967 = vld [vmem:[%s956 + $0x50] sm:$0xff]
        %v968 = vld [vmem:[%s956 + $0x58] sm:$0xff]
        %v969 = vld [vmem:[%s956 + $0x60] sm:$0xff]
        %v970 = vld [vmem:[%s956 + $0x68] sm:$0xff]
        %v971 = vld [vmem:[%s956 + $0x70] sm:$0xff]
        %v972 = vld [vmem:[%s956 + $0x78] sm:$0xff]
        %973 = vmatprep.subr.mxu0 0.0
        %974 = vmatpush1.msra.mxu0 %v766
        %975 = vmatprep.subr.mxu0 0.0
        %976 = vmatpush1.msra.mxu0 %v771
        %977 = vmatprep.subr.mxu0 0.0
        %978 = vmatpush1.msra.mxu0 %v776
        %979 = vmatprep.subr.mxu0 0.0
        %980 = vmatpush1.msra.mxu0 %v781
        %981 = vmatprep.subr.mxu0 0.0
        %982 = vmatpush1.msra.mxu0 %v786
        %983 = vmatprep.subr.mxu0 0.0
        %984 = vmatpush1.msra.mxu0 %v791
        %985 = vmatprep.subr.mxu0 0.0
        %986 = vmatpush1.msra.mxu0 %v796
        %987 = vmatprep.subr.mxu0 0.0
        %988 = vmatpush1.msra.mxu0 %v801
        %989 = vmatprep.subr.mxu0 0.0
        %990 = vmatpush1.msra.mxu0 %v806
        %991 = vmatprep.subr.mxu0 0.0
        %992 = vmatpush1.msra.mxu0 %v811
        %993 = vmatprep.subr.mxu0 0.0
        %994 = vmatpush1.msra.mxu0 %v816
        %995 = vmatprep.subr.mxu0 0.0
        %996 = vmatpush1.msra.mxu0 %v821
        %997 = vmatprep.subr.mxu0 0.0
        %998 = vmatpush1.msra.mxu0 %v826
        %999 = vmatprep.subr.mxu0 0.0
        %1000 = vmatpush1.msra.mxu0 %v831
        %1001 = vmatprep.subr.mxu0 0.0
        %1002 = vmatpush1.msra.mxu0 %v836
        %1003 = vmatprep.subr.mxu0 0.0
        %1004 = vmatpush1.msra.mxu0 %v841
        %1005 = vmatprep.subr.mxu0 0.0
        %1006 = vmatpush1.msra.mxu0 0.0
        %1007 = vmatprep.subr.mxu0 0.0
        %1008 = vmatpush1.msra.mxu0 0.0
        %1009 = vmatprep.subr.mxu0 0.0
        %1010 = vmatpush1.msra.mxu0 0.0
        %1011 = vmatprep.subr.mxu0 0.0
        %1012 = vmatpush1.msra.mxu0 0.0
        %1013 = vmatprep.subr.mxu0 0.0
        %1014 = vmatpush1.msra.mxu0 0.0
        %1015 = vmatprep.subr.mxu0 0.0
        %1016 = vmatpush1.msra.mxu0 0.0
        %1017 = vmatprep.subr.mxu0 0.0
        %1018 = vmatpush1.msra.mxu0 0.0
        %1019 = vmatprep.subr.mxu0 0.0
        %1020 = vmatpush1.msra.mxu0 0.0
        %1021 = vmatprep.subr.mxu0 0.0
        %1022 = vmatpush1.msra.mxu0 0.0
        %1023 = vmatprep.subr.mxu0 0.0
        %1024 = vmatpush1.msra.mxu0 0.0
        %1025 = vmatprep.subr.mxu0 0.0
        %1026 = vmatpush1.msra.mxu0 0.0
        %1027 = vmatprep.subr.mxu0 0.0
        %1028 = vmatpush1.msra.mxu0 0.0
        %1029 = vmatprep.subr.mxu0 0.0
        %1030 = vmatpush1.msra.mxu0 0.0
        %1031 = vmatprep.subr.mxu0 0.0
        %1032 = vmatpush1.msra.mxu0 0.0
        %1033 = vmatprep.subr.mxu0 0.0
        %1034 = vmatpush1.msra.mxu0 0.0
        %1035 = vmatprep.subr.mxu0 0.0
        %1036 = vmatpush1.msra.mxu0 0.0
        %1037 = vmatprep.mubr.f32.mxu0 0.0
        %1038 = vmatmul.mubr.f32.gmra.mrb[0].mxu0 %v957
        %v1039 = vpop.f32.mrb[0].mxu0
        %v1040 = vadd.f32 0.0, %v1039
        %v1041 = vpop.f32.mrb[0].mxu0
        %1042 = vmatprep.mubr.f32.mxu0 0.0
        %1043 = vmatmul.mubr.f32.gmra.mrb[0].mxu0 %v958
        %v1044 = vpop.f32.mrb[0].mxu0
        %v1045 = vadd.f32 0.0, %v1044
        %v1046 = vpop.f32.mrb[0].mxu0
        %1047 = vmatprep.mubr.f32.mxu0 0.0
        %1048 = vmatmul.mubr.f32.gmra.mrb[0].mxu0 %v959
        %v1049 = vpop.f32.mrb[0].mxu0
        %v1050 = vadd.f32 0.0, %v1049
        %v1051 = vpop.f32.mrb[0].mxu0
        %1052 = vmatprep.mubr.f32.mxu0 0.0
        %1053 = vmatmul.mubr.f32.gmra.mrb[0].mxu0 %v960
        %v1054 = vpop.f32.mrb[0].mxu0
        %v1055 = vadd.f32 0.0, %v1054
        %v1056 = vpop.f32.mrb[0].mxu0
        %1057 = vmatprep.mubr.f32.mxu0 0.0
        %1058 = vmatmul.mubr.f32.gmra.mrb[0].mxu0 %v961
        %v1059 = vpop.f32.mrb[0].mxu0
        %v1060 = vadd.f32 0.0, %v1059
        %v1061 = vpop.f32.mrb[0].mxu0
        %1062 = vmatprep.mubr.f32.mxu0 0.0
        %1063 = vmatmul.mubr.f32.gmra.mrb[0].mxu0 %v962
        %v1064 = vpop.f32.mrb[0].mxu0
        %v1065 = vadd.f32 0.0, %v1064
        %v1066 = vpop.f32.mrb[0].mxu0
        %1067 = vmatprep.mubr.f32.mxu0 0.0
        %1068 = vmatmul.mubr.f32.gmra.mrb[0].mxu0 %v963
        %v1069 = vpop.f32.mrb[0].mxu0
        %v1070 = vadd.f32 0.0, %v1069
        %v1071 = vpop.f32.mrb[0].mxu0
        %1072 = vmatprep.mubr.f32.mxu0 0.0
        %1073 = vmatmul.mubr.f32.gmra.mrb[0].mxu0 %v964
        %v1074 = vpop.f32.mrb[0].mxu0
        %v1075 = vadd.f32 0.0, %v1074
        %v1076 = vpop.f32.mrb[0].mxu0
        %1077 = vmatprep.mubr.f32.mxu0 0.0
        %1078 = vmatmul.mubr.f32.gmra.mrb[0].mxu0 %v965
        %v1079 = vpop.f32.mrb[0].mxu0
        %v1080 = vadd.f32 0.0, %v1079
        %v1081 = vpop.f32.mrb[0].mxu0
        %1082 = vmatprep.mubr.f32.mxu0 0.0
        %1083 = vmatmul.mubr.f32.gmra.mrb[0].mxu0 %v966
        %v1084 = vpop.f32.mrb[0].mxu0
        %v1085 = vadd.f32 0.0, %v1084
        %v1086 = vpop.f32.mrb[0].mxu0
        %1087 = vmatprep.mubr.f32.mxu0 0.0
        %1088 = vmatmul.mubr.f32.gmra.mrb[0].mxu0 %v967
        %v1089 = vpop.f32.mrb[0].mxu0
        %v1090 = vadd.f32 0.0, %v1089
        %v1091 = vpop.f32.mrb[0].mxu0
        %1092 = vmatprep.mubr.f32.mxu0 0.0
        %1093 = vmatmul.mubr.f32.gmra.mrb[0].mxu0 %v968
        %v1094 = vpop.f32.mrb[0].mxu0
        %v1095 = vadd.f32 0.0, %v1094
        %v1096 = vpop.f32.mrb[0].mxu0
        %1097 = vmatprep.mubr.f32.mxu0 0.0
        %1098 = vmatmul.mubr.f32.gmra.mrb[0].mxu0 %v969
        %v1099 = vpop.f32.mrb[0].mxu0
        %v1100 = vadd.f32 0.0, %v1099
        %v1101 = vpop.f32.mrb[0].mxu0
        %1102 = vmatprep.mubr.f32.mxu0 0.0
        %1103 = vmatmul.mubr.f32.gmra.mrb[0].mxu0 %v970
        %v1104 = vpop.f32.mrb[0].mxu0
        %v1105 = vadd.f32 0.0, %v1104
        %v1106 = vpop.f32.mrb[0].mxu0
        %1107 = vmatprep.mubr.f32.mxu0 0.0
        %1108 = vmatmul.mubr.f32.gmra.mrb[0].mxu0 %v971
        %v1109 = vpop.f32.mrb[0].mxu0
        %v1110 = vadd.f32 0.0, %v1109
        %v1111 = vpop.f32.mrb[0].mxu0
        %1112 = vmatprep.mubr.f32.mxu0 0.0
        %1113 = vmatmul.mubr.f32.gmra.mrb[0].mxu0 %v972
        %v1114 = vpop.f32.mrb[0].mxu0
        %v1115 = vadd.f32 0.0, %v1114
        %v1116 = vpop.f32.mrb[0].mxu0
        %1117 = vdwg.mxu0
        %1118 = vmatprep.subr.mxu0 0.0
        %1119 = vmatpush1.msra.mxu0 %v876
        %1120 = vmatprep.subr.mxu0 0.0
        %1121 = vmatpush1.msra.mxu0 %v877
        %1122 = vmatprep.subr.mxu0 0.0
        %1123 = vmatpush1.msra.mxu0 %v878
        %1124 = vmatprep.subr.mxu0 0.0
        %1125 = vmatpush1.msra.mxu0 %v879
        %1126 = vmatprep.subr.mxu0 0.0
        %1127 = vmatpush1.msra.mxu0 %v880
        %1128 = vmatprep.subr.mxu0 0.0
        %1129 = vmatpush1.msra.mxu0 %v881
        %1130 = vmatprep.subr.mxu0 0.0
        %1131 = vmatpush1.msra.mxu0 %v882
        %1132 = vmatprep.subr.mxu0 0.0
        %1133 = vmatpush1.msra.mxu0 %v883
        %1134 = vmatprep.subr.mxu0 0.0
        %1135 = vmatpush1.msra.mxu0 %v884
        %1136 = vmatprep.subr.mxu0 0.0
        %1137 = vmatpush1.msra.mxu0 %v885
        %1138 = vmatprep.subr.mxu0 0.0
        %1139 = vmatpush1.msra.mxu0 %v886
        %1140 = vmatprep.subr.mxu0 0.0
        %1141 = vmatpush1.msra.mxu0 %v887
        %1142 = vmatprep.subr.mxu0 0.0
        %1143 = vmatpush1.msra.mxu0 %v888
        %1144 = vmatprep.subr.mxu0 0.0
        %1145 = vmatpush1.msra.mxu0 %v889
        %1146 = vmatprep.subr.mxu0 0.0
        %1147 = vmatpush1.msra.mxu0 %v890
        %1148 = vmatprep.subr.mxu0 0.0
        %1149 = vmatpush1.msra.mxu0 %v891
        %1150 = vmatprep.subr.mxu0 0.0
        %1151 = vmatpush1.msra.mxu0 0.0
        %1152 = vmatprep.subr.mxu0 0.0
        %1153 = vmatpush1.msra.mxu0 0.0
        %1154 = vmatprep.subr.mxu0 0.0
        %1155 = vmatpush1.msra.mxu0 0.0
        %1156 = vmatprep.subr.mxu0 0.0
        %1157 = vmatpush1.msra.mxu0 0.0
        %1158 = vmatprep.subr.mxu0 0.0
        %1159 = vmatpush1.msra.mxu0 0.0
        %1160 = vmatprep.subr.mxu0 0.0
        %1161 = vmatpush1.msra.mxu0 0.0
        %1162 = vmatprep.subr.mxu0 0.0
        %1163 = vmatpush1.msra.mxu0 0.0
        %1164 = vmatprep.subr.mxu0 0.0
        %1165 = vmatpush1.msra.mxu0 0.0
        %1166 = vmatprep.subr.mxu0 0.0
        %1167 = vmatpush1.msra.mxu0 0.0
        %1168 = vmatprep.subr.mxu0 0.0
        %1169 = vmatpush1.msra.mxu0 0.0
        %1170 = vmatprep.subr.mxu0 0.0
        %1171 = vmatpush1.msra.mxu0 0.0
        %1172 = vmatprep.subr.mxu0 0.0
        %1173 = vmatpush1.msra.mxu0 0.0
        %1174 = vmatprep.subr.mxu0 0.0
        %1175 = vmatpush1.msra.mxu0 0.0
        %1176 = vmatprep.subr.mxu0 0.0
        %1177 = vmatpush1.msra.mxu0 0.0
        %1178 = vmatprep.subr.mxu0 0.0
        %1179 = vmatpush1.msra.mxu0 0.0
        %1180 = vmatprep.subr.mxu0 0.0
        %1181 = vmatpush1.msra.mxu0 0.0
        %1182 = vmatprep.mubr.f32.mxu0 0.0
        %1183 = vmatmul.mubr.f32.gmra.mrb[0].mxu0 %v940
        %v1184 = vpop.f32.mrb[0].mxu0
        %v1185 = vadd.f32 %v1040, %v1184
        %v1186 = vpop.f32.mrb[0].mxu0
        %1187 = vmatprep.mubr.f32.mxu0 0.0
        %1188 = vmatmul.mubr.f32.gmra.mrb[0].mxu0 %v941
        %v1189 = vpop.f32.mrb[0].mxu0
        %v1190 = vadd.f32 %v1045, %v1189
        %v1191 = vpop.f32.mrb[0].mxu0
        %1192 = vmatprep.mubr.f32.mxu0 0.0
        %1193 = vmatmul.mubr.f32.gmra.mrb[0].mxu0 %v942
        %v1194 = vpop.f32.mrb[0].mxu0
        %v1195 = vadd.f32 %v1050, %v1194
        %v1196 = vpop.f32.mrb[0].mxu0
        %1197 = vmatprep.mubr.f32.mxu0 0.0
        %1198 = vmatmul.mubr.f32.gmra.mrb[0].mxu0 %v943
        %v1199 = vpop.f32.mrb[0].mxu0
        %v1200 = vadd.f32 %v1055, %v1199
        %v1201 = vpop.f32.mrb[0].mxu0
        %1202 = vmatprep.mubr.f32.mxu0 0.0
        %1203 = vmatmul.mubr.f32.gmra.mrb[0].mxu0 %v944
        %v1204 = vpop.f32.mrb[0].mxu0
        %v1205 = vadd.f32 %v1060, %v1204
        %v1206 = vpop.f32.mrb[0].mxu0
        %1207 = vmatprep.mubr.f32.mxu0 0.0
        %1208 = vmatmul.mubr.f32.gmra.mrb[0].mxu0 %v945
        %v1209 = vpop.f32.mrb[0].mxu0
        %v1210 = vadd.f32 %v1065, %v1209
        %v1211 = vpop.f32.mrb[0].mxu0
        %1212 = vmatprep.mubr.f32.mxu0 0.0
        %1213 = vmatmul.mubr.f32.gmra.mrb[0].mxu0 %v946
        %v1214 = vpop.f32.mrb[0].mxu0
        %v1215 = vadd.f32 %v1070, %v1214
        %v1216 = vpop.f32.mrb[0].mxu0
        %1217 = vmatprep.mubr.f32.mxu0 0.0
        %1218 = vmatmul.mubr.f32.gmra.mrb[0].mxu0 %v947
        %v1219 = vpop.f32.mrb[0].mxu0
        %v1220 = vadd.f32 %v1075, %v1219
        %v1221 = vpop.f32.mrb[0].mxu0
        %1222 = vmatprep.mubr.f32.mxu0 0.0
        %1223 = vmatmul.mubr.f32.gmra.mrb[0].mxu0 %v948
        %v1224 = vpop.f32.mrb[0].mxu0
        %v1225 = vadd.f32 %v1080, %v1224
        %v1226 = vpop.f32.mrb[0].mxu0
        %1227 = vmatprep.mubr.f32.mxu0 0.0
        %1228 = vmatmul.mubr.f32.gmra.mrb[0].mxu0 %v949
        %v1229 = vpop.f32.mrb[0].mxu0
        %v1230 = vadd.f32 %v1085, %v1229
        %v1231 = vpop.f32.mrb[0].mxu0
        %1232 = vmatprep.mubr.f32.mxu0 0.0
        %1233 = vmatmul.mubr.f32.gmra.mrb[0].mxu0 %v950
        %v1234 = vpop.f32.mrb[0].mxu0
        %v1235 = vadd.f32 %v1090, %v1234
        %v1236 = vpop.f32.mrb[0].mxu0
        %1237 = vmatprep.mubr.f32.mxu0 0.0
        %1238 = vmatmul.mubr.f32.gmra.mrb[0].mxu0 %v951
        %v1239 = vpop.f32.mrb[0].mxu0
        %v1240 = vadd.f32 %v1095, %v1239
        %v1241 = vpop.f32.mrb[0].mxu0
        %1242 = vmatprep.mubr.f32.mxu0 0.0
        %1243 = vmatmul.mubr.f32.gmra.mrb[0].mxu0 %v952
        %v1244 = vpop.f32.mrb[0].mxu0
        %v1245 = vadd.f32 %v1100, %v1244
        %v1246 = vpop.f32.mrb[0].mxu0
        %1247 = vmatprep.mubr.f32.mxu0 0.0
        %1248 = vmatmul.mubr.f32.gmra.mrb[0].mxu0 %v953
        %v1249 = vpop.f32.mrb[0].mxu0
        %v1250 = vadd.f32 %v1105, %v1249
        %v1251 = vpop.f32.mrb[0].mxu0
        %1252 = vmatprep.mubr.f32.mxu0 0.0
        %1253 = vmatmul.mubr.f32.gmra.mrb[0].mxu0 %v954
        %v1254 = vpop.f32.mrb[0].mxu0
        %v1255 = vadd.f32 %v1110, %v1254
        %v1256 = vpop.f32.mrb[0].mxu0
        %1257 = vmatprep.mubr.f32.mxu0 0.0
        %1258 = vmatmul.mubr.f32.gmra.mrb[0].mxu0 %v955
        %v1259 = vpop.f32.mrb[0].mxu0
        %v1260 = vadd.f32 %v1115, %v1259
        %v1261 = vpop.f32.mrb[0].mxu0
        %1262 = vdwg.mxu0
        %s1263 = scalar_lea.vmem %s5, 256
        %v1264 = vld [vmem:[%s1263] sm:$0xff]
        %v1265 = vld [vmem:[%s1263 + $0x8] sm:$0xff]
        %v1266 = vld [vmem:[%s1263 + $0x10] sm:$0xff]
        %v1267 = vld [vmem:[%s1263 + $0x18] sm:$0xff]
        %v1268 = vld [vmem:[%s1263 + $0x20] sm:$0xff]
        %v1269 = vld [vmem:[%s1263 + $0x28] sm:$0xff]
        %v1270 = vld [vmem:[%s1263 + $0x30] sm:$0xff]
        %v1271 = vld [vmem:[%s1263 + $0x38] sm:$0xff]
        %v1272 = vld [vmem:[%s1263 + $0x40] sm:$0xff]
        %v1273 = vld [vmem:[%s1263 + $0x48] sm:$0xff]
        %v1274 = vld [vmem:[%s1263 + $0x50] sm:$0xff]
        %v1275 = vld [vmem:[%s1263 + $0x58] sm:$0xff]
        %v1276 = vld [vmem:[%s1263 + $0x60] sm:$0xff]
        %v1277 = vld [vmem:[%s1263 + $0x68] sm:$0xff]
        %v1278 = vld [vmem:[%s1263 + $0x70] sm:$0xff]
        %v1279 = vld [vmem:[%s1263 + $0x78] sm:$0xff]
        %1280 = vmatprep.subr.mxu0 0.0
        %1281 = vmatpush1.msra.mxu0 %v924
        %1282 = vmatprep.subr.mxu0 0.0
        %1283 = vmatpush1.msra.mxu0 %v925
        %1284 = vmatprep.subr.mxu0 0.0
        %1285 = vmatpush1.msra.mxu0 %v926
        %1286 = vmatprep.subr.mxu0 0.0
        %1287 = vmatpush1.msra.mxu0 %v927
        %1288 = vmatprep.subr.mxu0 0.0
        %1289 = vmatpush1.msra.mxu0 %v928
        %1290 = vmatprep.subr.mxu0 0.0
        %1291 = vmatpush1.msra.mxu0 %v929
        %1292 = vmatprep.subr.mxu0 0.0
        %1293 = vmatpush1.msra.mxu0 %v930
        %1294 = vmatprep.subr.mxu0 0.0
        %1295 = vmatpush1.msra.mxu0 %v931
        %1296 = vmatprep.subr.mxu0 0.0
        %1297 = vmatpush1.msra.mxu0 %v932
        %1298 = vmatprep.subr.mxu0 0.0
        %1299 = vmatpush1.msra.mxu0 %v933
        %1300 = vmatprep.subr.mxu0 0.0
        %1301 = vmatpush1.msra.mxu0 %v934
        %1302 = vmatprep.subr.mxu0 0.0
        %1303 = vmatpush1.msra.mxu0 %v935
        %1304 = vmatprep.subr.mxu0 0.0
        %1305 = vmatpush1.msra.mxu0 %v936
        %1306 = vmatprep.subr.mxu0 0.0
        %1307 = vmatpush1.msra.mxu0 %v937
        %1308 = vmatprep.subr.mxu0 0.0
        %1309 = vmatpush1.msra.mxu0 %v938
        %1310 = vmatprep.subr.mxu0 0.0
        %1311 = vmatpush1.msra.mxu0 %v939
        %1312 = vmatprep.subr.mxu0 0.0
        %1313 = vmatpush1.msra.mxu0 0.0
        %1314 = vmatprep.subr.mxu0 0.0
        %1315 = vmatpush1.msra.mxu0 0.0
        %1316 = vmatprep.subr.mxu0 0.0
        %1317 = vmatpush1.msra.mxu0 0.0
        %1318 = vmatprep.subr.mxu0 0.0
        %1319 = vmatpush1.msra.mxu0 0.0
        %1320 = vmatprep.subr.mxu0 0.0
        %1321 = vmatpush1.msra.mxu0 0.0
        %1322 = vmatprep.subr.mxu0 0.0
        %1323 = vmatpush1.msra.mxu0 0.0
        %1324 = vmatprep.subr.mxu0 0.0
        %1325 = vmatpush1.msra.mxu0 0.0
        %1326 = vmatprep.subr.mxu0 0.0
        %1327 = vmatpush1.msra.mxu0 0.0
        %1328 = vmatprep.subr.mxu0 0.0
        %1329 = vmatpush1.msra.mxu0 0.0
        %1330 = vmatprep.subr.mxu0 0.0
        %1331 = vmatpush1.msra.mxu0 0.0
        %1332 = vmatprep.subr.mxu0 0.0
        %1333 = vmatpush1.msra.mxu0 0.0
        %1334 = vmatprep.subr.mxu0 0.0
        %1335 = vmatpush1.msra.mxu0 0.0
        %1336 = vmatprep.subr.mxu0 0.0
        %1337 = vmatpush1.msra.mxu0 0.0
        %1338 = vmatprep.subr.mxu0 0.0
        %1339 = vmatpush1.msra.mxu0 0.0
        %1340 = vmatprep.subr.mxu0 0.0
        %1341 = vmatpush1.msra.mxu0 0.0
        %1342 = vmatprep.subr.mxu0 0.0
        %1343 = vmatpush1.msra.mxu0 0.0
        %1344 = vmatprep.mubr.f32.mxu0 0.0
        %1345 = vmatmul.mubr.f32.gmra.mrb[0].mxu0 %v1264
        %v1346 = vpop.f32.mrb[0].mxu0
        %v1347 = vadd.f32 0.0, %v1346
        %v1348 = vpop.f32.mrb[0].mxu0
        %1349 = vmatprep.mubr.f32.mxu0 0.0
        %1350 = vmatmul.mubr.f32.gmra.mrb[0].mxu0 %v1265
        %v1351 = vpop.f32.mrb[0].mxu0
        %v1352 = vadd.f32 0.0, %v1351
        %v1353 = vpop.f32.mrb[0].mxu0
        %1354 = vmatprep.mubr.f32.mxu0 0.0
        %1355 = vmatmul.mubr.f32.gmra.mrb[0].mxu0 %v1266
        %v1356 = vpop.f32.mrb[0].mxu0
        %v1357 = vadd.f32 0.0, %v1356
        %v1358 = vpop.f32.mrb[0].mxu0
        %1359 = vmatprep.mubr.f32.mxu0 0.0
        %1360 = vmatmul.mubr.f32.gmra.mrb[0].mxu0 %v1267
        %v1361 = vpop.f32.mrb[0].mxu0
        %v1362 = vadd.f32 0.0, %v1361
        %v1363 = vpop.f32.mrb[0].mxu0
        %1364 = vmatprep.mubr.f32.mxu0 0.0
        %1365 = vmatmul.mubr.f32.gmra.mrb[0].mxu0 %v1268
        %v1366 = vpop.f32.mrb[0].mxu0
        %v1367 = vadd.f32 0.0, %v1366
        %v1368 = vpop.f32.mrb[0].mxu0
        %1369 = vmatprep.mubr.f32.mxu0 0.0
        %1370 = vmatmul.mubr.f32.gmra.mrb[0].mxu0 %v1269
        %v1371 = vpop.f32.mrb[0].mxu0
        %v1372 = vadd.f32 0.0, %v1371
        %v1373 = vpop.f32.mrb[0].mxu0
        %1374 = vmatprep.mubr.f32.mxu0 0.0
        %1375 = vmatmul.mubr.f32.gmra.mrb[0].mxu0 %v1270
        %v1376 = vpop.f32.mrb[0].mxu0
        %v1377 = vadd.f32 0.0, %v1376
        %v1378 = vpop.f32.mrb[0].mxu0
        %1379 = vmatprep.mubr.f32.mxu0 0.0
        %1380 = vmatmul.mubr.f32.gmra.mrb[0].mxu0 %v1271
        %v1381 = vpop.f32.mrb[0].mxu0
        %v1382 = vadd.f32 0.0, %v1381
        %v1383 = vpop.f32.mrb[0].mxu0
        %1384 = vmatprep.mubr.f32.mxu0 0.0
        %1385 = vmatmul.mubr.f32.gmra.mrb[0].mxu0 %v1272
        %v1386 = vpop.f32.mrb[0].mxu0
        %v1387 = vadd.f32 0.0, %v1386
        %v1388 = vpop.f32.mrb[0].mxu0
        %1389 = vmatprep.mubr.f32.mxu0 0.0
        %1390 = vmatmul.mubr.f32.gmra.mrb[0].mxu0 %v1273
        %v1391 = vpop.f32.mrb[0].mxu0
        %v1392 = vadd.f32 0.0, %v1391
        %v1393 = vpop.f32.mrb[0].mxu0
        %1394 = vmatprep.mubr.f32.mxu0 0.0
        %1395 = vmatmul.mubr.f32.gmra.mrb[0].mxu0 %v1274
        %v1396 = vpop.f32.mrb[0].mxu0
        %v1397 = vadd.f32 0.0, %v1396
        %v1398 = vpop.f32.mrb[0].mxu0
        %1399 = vmatprep.mubr.f32.mxu0 0.0
        %1400 = vmatmul.mubr.f32.gmra.mrb[0].mxu0 %v1275
        %v1401 = vpop.f32.mrb[0].mxu0
        %v1402 = vadd.f32 0.0, %v1401
        %v1403 = vpop.f32.mrb[0].mxu0
        %1404 = vmatprep.mubr.f32.mxu0 0.0
        %1405 = vmatmul.mubr.f32.gmra.mrb[0].mxu0 %v1276
        %v1406 = vpop.f32.mrb[0].mxu0
        %v1407 = vadd.f32 0.0, %v1406
        %v1408 = vpop.f32.mrb[0].mxu0
        %1409 = vmatprep.mubr.f32.mxu0 0.0
        %1410 = vmatmul.mubr.f32.gmra.mrb[0].mxu0 %v1277
        %v1411 = vpop.f32.mrb[0].mxu0
        %v1412 = vadd.f32 0.0, %v1411
        %v1413 = vpop.f32.mrb[0].mxu0
        %1414 = vmatprep.mubr.f32.mxu0 0.0
        %1415 = vmatmul.mubr.f32.gmra.mrb[0].mxu0 %v1278
        %v1416 = vpop.f32.mrb[0].mxu0
        %v1417 = vadd.f32 0.0, %v1416
        %v1418 = vpop.f32.mrb[0].mxu0
        %1419 = vmatprep.mubr.f32.mxu0 0.0
        %1420 = vmatmul.mubr.f32.gmra.mrb[0].mxu0 %v1279
        %v1421 = vpop.f32.mrb[0].mxu0
        %v1422 = vadd.f32 0.0, %v1421
        %v1423 = vpop.f32.mrb[0].mxu0
        %1424 = vdwg.mxu0
        %v1425 = vadd.f32 %v1185, %v1347
        %v1426 = vadd.f32 %v1190, %v1352
        %v1427 = vadd.f32 %v1195, %v1357
        %v1428 = vadd.f32 %v1200, %v1362
        %v1429 = vadd.f32 %v1205, %v1367
        %v1430 = vadd.f32 %v1210, %v1372
        %v1431 = vadd.f32 %v1215, %v1377
        %v1432 = vadd.f32 %v1220, %v1382
        %v1433 = vadd.f32 %v1225, %v1387
        %v1434 = vadd.f32 %v1230, %v1392
        %v1435 = vadd.f32 %v1235, %v1397
        %v1436 = vadd.f32 %v1240, %v1402
        %v1437 = vadd.f32 %v1245, %v1407
        %v1438 = vadd.f32 %v1250, %v1412
        %v1439 = vadd.f32 %v1255, %v1417
        %v1440 = vadd.f32 %v1260, %v1422
        %v1441 = vld [vmem:[%s6] sm:$0xff]
        %v1442 = vld [vmem:[%s6 + $0x8] sm:$0xff]
        %v1443 = vld [vmem:[%s6 + $0x10] sm:$0xff]
        %v1444 = vld [vmem:[%s6 + $0x18] sm:$0xff]
        %v1445 = vld [vmem:[%s6 + $0x20] sm:$0xff]
        %v1446 = vld [vmem:[%s6 + $0x28] sm:$0xff]
        %v1447 = vld [vmem:[%s6 + $0x30] sm:$0xff]
        %v1448 = vld [vmem:[%s6 + $0x38] sm:$0xff]
        %v1449 = vld [vmem:[%s6 + $0x40] sm:$0xff]
        %v1450 = vld [vmem:[%s6 + $0x48] sm:$0xff]
        %v1451 = vld [vmem:[%s6 + $0x50] sm:$0xff]
        %v1452 = vld [vmem:[%s6 + $0x58] sm:$0xff]
        %v1453 = vld [vmem:[%s6 + $0x60] sm:$0xff]
        %v1454 = vld [vmem:[%s6 + $0x68] sm:$0xff]
        %v1455 = vld [vmem:[%s6 + $0x70] sm:$0xff]
        %v1456 = vld [vmem:[%s6 + $0x78] sm:$0xff]
        %1458 = vset.pattern.permute.xlu0 0
        %1459 = vperm.xlu0 %1458, %v1441
        %v1460 = vpop.permute.xlu0 %1459
        %1463 = vset.pattern.permute.xlu0 0
        %1464 = vperm.xlu0 %1463, %v1442
        %v1465 = vpop.permute.xlu0 %1464
        %1468 = vset.pattern.permute.xlu0 0
        %1469 = vperm.xlu0 %1468, %v1443
        %v1470 = vpop.permute.xlu0 %1469
        %1473 = vset.pattern.permute.xlu0 0
        %1474 = vperm.xlu0 %1473, %v1444
        %v1475 = vpop.permute.xlu0 %1474
        %1478 = vset.pattern.permute.xlu0 0
        %1479 = vperm.xlu0 %1478, %v1445
        %v1480 = vpop.permute.xlu0 %1479
        %1483 = vset.pattern.permute.xlu0 0
        %1484 = vperm.xlu0 %1483, %v1446
        %v1485 = vpop.permute.xlu0 %1484
        %1488 = vset.pattern.permute.xlu0 0
        %1489 = vperm.xlu0 %1488, %v1447
        %v1490 = vpop.permute.xlu0 %1489
        %1493 = vset.pattern.permute.xlu0 0
        %1494 = vperm.xlu0 %1493, %v1448
        %v1495 = vpop.permute.xlu0 %1494
        %1498 = vset.pattern.permute.xlu0 0
        %1499 = vperm.xlu0 %1498, %v1449
        %v1500 = vpop.permute.xlu0 %1499
        %1503 = vset.pattern.permute.xlu0 0
        %1504 = vperm.xlu0 %1503, %v1450
        %v1505 = vpop.permute.xlu0 %1504
        %1508 = vset.pattern.permute.xlu0 0
        %1509 = vperm.xlu0 %1508, %v1451
        %v1510 = vpop.permute.xlu0 %1509
        %1513 = vset.pattern.permute.xlu0 0
        %1514 = vperm.xlu0 %1513, %v1452
        %v1515 = vpop.permute.xlu0 %1514
        %1518 = vset.pattern.permute.xlu0 0
        %1519 = vperm.xlu0 %1518, %v1453
        %v1520 = vpop.permute.xlu0 %1519
        %1523 = vset.pattern.permute.xlu0 0
        %1524 = vperm.xlu0 %1523, %v1454
        %v1525 = vpop.permute.xlu0 %1524
        %1528 = vset.pattern.permute.xlu0 0
        %1529 = vperm.xlu0 %1528, %v1455
        %v1530 = vpop.permute.xlu0 %1529
        %1533 = vset.pattern.permute.xlu0 0
        %1534 = vperm.xlu0 %1533, %v1456
        %v1535 = vpop.permute.xlu0 %1534
        %v1537 = vadd.f32 %v1425, %v1460
        %v1538 = vadd.f32 %v1426, %v1465
        %v1539 = vadd.f32 %v1427, %v1470
        %v1540 = vadd.f32 %v1428, %v1475
        %v1541 = vadd.f32 %v1429, %v1480
        %v1542 = vadd.f32 %v1430, %v1485
        %v1543 = vadd.f32 %v1431, %v1490
        %v1544 = vadd.f32 %v1432, %v1495
        %v1545 = vadd.f32 %v1433, %v1500
        %v1546 = vadd.f32 %v1434, %v1505
        %v1547 = vadd.f32 %v1435, %v1510
        %v1548 = vadd.f32 %v1436, %v1515
        %v1549 = vadd.f32 %v1437, %v1520
        %v1550 = vadd.f32 %v1438, %v1525
        %v1551 = vadd.f32 %v1439, %v1530
        %v1552 = vadd.f32 %v1440, %v1535
        %v1553 = vmax.f32 %v1537, 0.0
        %v1554 = vmax.f32 %v1538, 0.0
        %v1555 = vmax.f32 %v1539, 0.0
        %v1556 = vmax.f32 %v1540, 0.0
        %v1557 = vmax.f32 %v1541, 0.0
        %v1558 = vmax.f32 %v1542, 0.0
        %v1559 = vmax.f32 %v1543, 0.0
        %v1560 = vmax.f32 %v1544, 0.0
        %v1561 = vmax.f32 %v1545, 0.0
        %v1562 = vmax.f32 %v1546, 0.0
        %v1563 = vmax.f32 %v1547, 0.0
        %v1564 = vmax.f32 %v1548, 0.0
        %v1565 = vmax.f32 %v1549, 0.0
        %v1566 = vmax.f32 %v1550, 0.0
        %v1567 = vmax.f32 %v1551, 0.0
        %v1568 = vmax.f32 %v1552, 0.0
        %v1569 = vld [vmem:[%s7] sm:$0xff]
        %v1570 = vld [vmem:[%s7 + $0x8] sm:$0xff]
        %v1571 = vld [vmem:[%s8] sm:$0xff]
        %v1572 = vld [vmem:[%s8 + $0x8] sm:$0xff]
        %1574 = vset.pattern.permute.xlu0 0
        %1575 = vperm.xlu0 %1574, %v1571
        %v1576 = vpop.permute.xlu0 %1575
        %1579 = vset.pattern.permute.xlu0 0
        %1580 = vperm.xlu0 %1579, %v1572
        %v1581 = vpop.permute.xlu0 %1580
        %1583 = vmatprep.subr.mxu0 0.0
        %1584 = vmatpush1.msra.mxu0 %v1553
        %1585 = vmatprep.subr.mxu0 0.0
        %1586 = vmatpush1.msra.mxu0 %v1554
        %1587 = vmatprep.subr.mxu0 0.0
        %1588 = vmatpush1.msra.mxu0 %v1555
        %1589 = vmatprep.subr.mxu0 0.0
        %1590 = vmatpush1.msra.mxu0 %v1556
        %1591 = vmatprep.subr.mxu0 0.0
        %1592 = vmatpush1.msra.mxu0 %v1557
        %1593 = vmatprep.subr.mxu0 0.0
        %1594 = vmatpush1.msra.mxu0 %v1558
        %1595 = vmatprep.subr.mxu0 0.0
        %1596 = vmatpush1.msra.mxu0 %v1559
        %1597 = vmatprep.subr.mxu0 0.0
        %1598 = vmatpush1.msra.mxu0 %v1560
        %1599 = vmatprep.subr.mxu0 0.0
        %1600 = vmatpush1.msra.mxu0 %v1561
        %1601 = vmatprep.subr.mxu0 0.0
        %1602 = vmatpush1.msra.mxu0 %v1562
        %1603 = vmatprep.subr.mxu0 0.0
        %1604 = vmatpush1.msra.mxu0 %v1563
        %1605 = vmatprep.subr.mxu0 0.0
        %1606 = vmatpush1.msra.mxu0 %v1564
        %1607 = vmatprep.subr.mxu0 0.0
        %1608 = vmatpush1.msra.mxu0 %v1565
        %1609 = vmatprep.subr.mxu0 0.0
        %1610 = vmatpush1.msra.mxu0 %v1566
        %1611 = vmatprep.subr.mxu0 0.0
        %1612 = vmatpush1.msra.mxu0 %v1567
        %1613 = vmatprep.subr.mxu0 0.0
        %1614 = vmatpush1.msra.mxu0 %v1568
        %1615 = vmatprep.subr.mxu0 0.0
        %1616 = vmatpush1.msra.mxu0 0.0
        %1617 = vmatprep.subr.mxu0 0.0
        %1618 = vmatpush1.msra.mxu0 0.0
        %1619 = vmatprep.subr.mxu0 0.0
        %1620 = vmatpush1.msra.mxu0 0.0
        %1621 = vmatprep.subr.mxu0 0.0
        %1622 = vmatpush1.msra.mxu0 0.0
        %1623 = vmatprep.subr.mxu0 0.0
        %1624 = vmatpush1.msra.mxu0 0.0
        %1625 = vmatprep.subr.mxu0 0.0
        %1626 = vmatpush1.msra.mxu0 0.0
        %1627 = vmatprep.subr.mxu0 0.0
        %1628 = vmatpush1.msra.mxu0 0.0
        %1629 = vmatprep.subr.mxu0 0.0
        %1630 = vmatpush1.msra.mxu0 0.0
        %1631 = vmatprep.subr.mxu0 0.0
        %1632 = vmatpush1.msra.mxu0 0.0
        %1633 = vmatprep.subr.mxu0 0.0
        %1634 = vmatpush1.msra.mxu0 0.0
        %1635 = vmatprep.subr.mxu0 0.0
        %1636 = vmatpush1.msra.mxu0 0.0
        %1637 = vmatprep.subr.mxu0 0.0
        %1638 = vmatpush1.msra.mxu0 0.0
        %1639 = vmatprep.subr.mxu0 0.0
        %1640 = vmatpush1.msra.mxu0 0.0
        %1641 = vmatprep.subr.mxu0 0.0
        %1642 = vmatpush1.msra.mxu0 0.0
        %1643 = vmatprep.subr.mxu0 0.0
        %1644 = vmatpush1.msra.mxu0 0.0
        %1645 = vmatprep.subr.mxu0 0.0
        %1646 = vmatpush1.msra.mxu0 0.0
        %1647 = vmatprep.mubr.f32.mxu0 0.0
        %1648 = vmatmul.mubr.f32.gmra.mrb[0].mxu0 %v1569
        %v1649 = vpop.f32.mrb[0].mxu0
        %v1650 = vadd.f32 %v1576, %v1649
        %v1651 = vpop.f32.mrb[0].mxu0
        %1652 = vmatprep.mubr.f32.mxu0 0.0
        %1653 = vmatmul.mubr.f32.gmra.mrb[0].mxu0 %v1570
        %v1654 = vpop.f32.mrb[0].mxu0
        %v1655 = vadd.f32 %v1581, %v1654
        %v1656 = vpop.f32.mrb[0].mxu0
        %1657 = vdwg.mxu0
        %v1658 = vmax.f32 %v1650, %v1655
        %v1659 = vrot.slane %v1658, 4
        %v1660 = vmax.f32 %v1658, %v1659
        %v1661 = vrot.slane %v1660, 2
        %v1662 = vmax.f32 %v1660, %v1661
        %v1663 = vrot.slane %v1662, 1
        %v1664 = vmax.f32 %v1662, %v1663
        %v1665 = vsub.f32 %v1650, %v1664
        %v1666 = vsub.f32 %v1655, %v1664
        %v1667 = vmul.f32 %v1665, 1.442695
        %v1668 = vpow.pop %v1667
        %v1669 = vmul.f32 %v1666, 1.442695
        %v1670 = vpow.pop %v1669
        %v1671 = vadd.f32 %v1668, %v1670
        %v1672 = vrot.slane %v1671, 4
        %v1673 = vadd.f32 %v1671, %v1672
        %v1674 = vrot.slane %v1673, 2
        %v1675 = vadd.f32 %v1673, %v1674
        %v1676 = vrot.slane %v1675, 1
        %v1677 = vadd.f32 %v1675, %v1676
        %v1678 = vrcp.pop %v1677
        %v1679 = vmul.f32 %v1668, %v1678
        %v1680 = vmul.f32 %v1670, %v1678
        %1681 = vst [vmem:[%s338] sm:$0xff] %v1679
        %1682 = vst [vmem:[%s338 + $0x8] sm:$0xff] %v1680
        %s1683 = sand.u32 %s226, 1
        %s1684 = scalar_lea.sflag [#allocation4], %s1683
        %s1685 = sand.u32 %s226, 1
        %s1686 = smul.addr %s1685, 16
        %s1687 = scalar_lea.vmem [#allocation5], %s1686
        // Predicated region
        $region61: #{tpu_custom_call.1} parent=55 // pred_check
          %p1688 = pneg %p236
        $region62: #{tpu_custom_call.1} parent=55 // pred_check_branch
          %1690 = sbr.rel (%p1688) target = $region64
        $region63: #{tpu_custom_call.1} parent=55 // pred_region
          %s1692 = ssub.s32 256, 256
          %1693 = vsyncadd %s1684, %s1692
          %s1694 = smul.addr %s24, 2
          %s1695 = smul.addr %s1694, 128
          %s1696 = scalar_lea.hbm %s9, %s1695
          %s1697 = sshll.u32 %s1687, 4
          %s1698 = int_to_ptr.vmem [resolvable:$true] %s1697
          %1703 = dma.vmem_to_hbm [thread:$0]  %s1698, 256, %s1696, %s1684, 128, 128, 8
        $region64: #{tpu_custom_call.1} parent=55 // pred_fallthru
          _
      $region56: #{tpu_custom_call.1} parent=5 // pred_fallthru
        _
      %p1704 = scmp.le.s32.totalorder 2, %s19
      // Predicated region
      $region65: #{tpu_custom_call.1} parent=5 // pred_check
        %p1705 = pneg %p1704
      $region66: #{tpu_custom_call.1} parent=5 // pred_check_branch
        %1707 = sbr.rel (%p1705) target = $region68
      $region67: #{tpu_custom_call.1} parent=5 // pred_region
        %s1708 = ssub.s32 %s19, 2
        // Predicated region
        $region69: #{tpu_custom_call.1} parent=67 // pred_check
          %p1709 = pneg %p242
        $region70: #{tpu_custom_call.1} parent=67 // pred_check_branch
          %1711 = sbr.rel (%p1709) target = $region72
        $region71: #{tpu_custom_call.1} parent=67 // pred_region
          %s1712 = sand.u32 %s227, 1
          %s1713 = scalar_lea.sflag [#allocation4], %s1712
          %s1714 = sand.u32 %s227, 1
          %s1715 = smul.addr %s1714, 16
          %s1716 = scalar_lea.vmem [#allocation5], %s1715
          %1717 = dma.done %s1713, 256
        $region72: #{tpu_custom_call.1} parent=67 // pred_fallthru
          _
      $region68: #{tpu_custom_call.1} parent=5 // pred_fallthru
        _
    $region6: #{tpu_custom_call.1} parent=1 // loop_footer
      %s23 = sadd.s32 1, %s19
    $region7: #{tpu_custom_call.1} parent=1 // loop_footer_branch
      %18 = sbr.rel target = $region3
    $region8: #{tpu_custom_call.1} parent=1 // loop_exit
      _
    %1718 = vsyncpa [#allocation3], 1
    %s1719 = scalar_lea.sflag [#allocation3], 1
    %1720 = vsyncpa %s1719, 1
    %1721 = vsyncpa [#allocation4], 1
    %s1722 = scalar_lea.sflag [#allocation4], 1
    %1723 = vsyncpa %s1722, 1

</llo_original>
